<compile_context>
chip_gen: v6e
topology: v6e:2x2x1
jax: 0.10.0
libtpu: 0.0.40
codegen_flags: <defaults>
</compile_context>

<pallas_src>
import jax
import jax.numpy as jnp
from jax import lax
from jax.experimental import pallas as pl
from jax.experimental.pallas import tpu as pltpu

# Conservative per-kernel VMEM budget: fits v7x's 64 MiB physical VMEM with
# pipeline/internal-scratch headroom; raised above the 16/32 MiB default scoped
# limits explicitly via vmem_limit_bytes.
_VMEM_BUDGET_BYTES = 36 << 20

# Single-buffering of constant-index blocks is attempted first and disabled
# process-wide if this Pallas/Mosaic build rejects pipeline_mode.
_FLAGS = {"single_buffer_consts": True}


def _round_up(x, m):
    return (x + m - 1) // m * m


def _batch_splits(B):
    """Leading 'parallel' grid axis: 2 sub-batches the megacore (v7x: 2 TCs) can
    shard; each half must stay sublane-aligned (so B % 16 == 0)."""
    return 2 if (B >= 16 and B % 16 == 0) else 1


def _const_spec(block_shape, index_map, single_buffer):
    """BlockSpec for a constant-index block (weights/bias).  The second pipeline
    buffer is pure VMEM waste for constant blocks, so single-buffer when asked."""
    if single_buffer:
        return pl.BlockSpec(block_shape, index_map, pipeline_mode=pl.Buffered(1))
    return pl.BlockSpec(block_shape, index_map)


def _run_with_const_fallback(run_fn):
    """Run with single-buffered constant blocks; fall back to the default
    double-buffered specs if this Pallas version rejects pipeline_mode."""
    if _FLAGS["single_buffer_consts"]:
        try:
            return run_fn(True)
        except Exception:  # compatibility fallback; real errors re-raise below
            _FLAGS["single_buffer_consts"] = False
    return run_fn(False)


def _lstm_vmem_bytes(TC, Bs, D_in, H, const_bufs, gx_bytes):
    """Upper-bound resident VMEM footprint of one LSTM-layer grid step."""
    bf16, f32 = 2, 4
    total = 2 * TC * Bs * D_in * bf16                 # x chunk (double-buffered)
    total += 2 * TC * Bs * H * bf16                   # h_seq chunk (double-buffered)
    total += const_bufs * (D_in + H) * 4 * H * bf16   # W_ih^T + W_hh^T
    total += const_bufs * 4 * H * f32                 # fused bias
    total += 4 * Bs * H * f32                         # h0/c0 input blocks
    total += 4 * Bs * H * f32                         # h_n/c_n output blocks
    total += 2 * Bs * H * f32                         # h/c carry scratch
    total += TC * Bs * 4 * H * gx_bytes               # hoisted input-gate scratch
    return total


def _pick_time_chunk(T, Bs, D_in, H, const_bufs, gx_bytes,
                     budget=_VMEM_BUDGET_BYTES, max_chunk=64):
    """Largest time-chunk that fits the VMEM budget.  Prefers a divisor of T
    (no time padding) unless that would more than halve the chunk size; never
    falls back to a whole-sequence chunk."""
    cap = max(1, min(T, max_chunk))
    best = 1
    for tc in range(1, cap + 1):
        if _lstm_vmem_bytes(tc, Bs, D_in, H, const_bufs, gx_bytes) <= budget:
            best = tc
    for tc in range(best, 0, -1):
        if T % tc == 0:
            if 2 * tc >= best:
                return tc
            break
    return best


# ---------------------------------------------------------------------------
# LSTM layer.  Grid = (batch-split, time-chunk).  Per grid step:
#   phase 1: gx = X_chunk (TC*Bs, D_in) @ W_ih^T          (one big MXU matmul)
#   phase 2: serial: gates = gx[row] + b + h @ W_hh^T ; PyTorch gate order i,f,g,o.
# ---------------------------------------------------------------------------
def run_lstm_layer(x_s, w_ih_t, w_hh_t, b, h0, c0,
                   vmem_budget_bytes=_VMEM_BUDGET_BYTES):
    """One LSTM layer over a full sequence.

    x_s:    (S, T, Bs, D_in) bf16 time-major activations, batch pre-split.
    h0, c0: (S*Bs, H) f32 initial states.
    Returns (h_seq (S, T, Bs, H) bf16, h_n (S*Bs, H) f32, c_n (S*Bs, H) f32).
    """
    S, T, Bs, D_in = x_s.shape
    H = h0.shape[-1]
    h0s = h0.reshape(S, Bs, H).astype(jnp.float32)
    c0s = c0.reshape(S, Bs, H).astype(jnp.float32)
    b2 = b.reshape(1, 4 * H).astype(jnp.float32)
    # Hoisted input-projection scratch is bf16 when its per-step rows stay
    # aligned to the packed bf16 sublane tile; f32 for tiny/unaligned batches.
    gx_dtype = jnp.bfloat16 if Bs % 16 == 0 else jnp.float32
    gx_bytes = 2 if gx_dtype == jnp.bfloat16 else 4

    def run(single_buffer):
        const_bufs = 1 if single_buffer else 2
        TC = _pick_time_chunk(T, Bs, D_in, H, const_bufs, gx_bytes,
                              vmem_budget_bytes)
        n_chunks = (T + TC - 1) // TC
        Tp = n_chunks * TC
        padded = Tp != T
        xp = jnp.pad(x_s, ((0, 0), (0, Tp - T), (0, 0), (0, 0))) if padded else x_s
        x_flat = xp.reshape(S, Tp * Bs, D_in)         # free: collapse (T, Bs)

        def kernel(x_ref, wih_ref, whh_ref, b_ref, h0_ref, c0_ref,
                   hseq_ref, hN_ref, cN_ref, h_sc, c_sc, gx_sc):
            chunk = pl.program_id(1)

            @pl.when(chunk == 0)
            def _():
                h_sc[...] = h0_ref[...]
                c_sc[...] = c0_ref[...]

            # Phase 1: hoisted input projection for the whole time-chunk -- one
            # big MXU matmul off the serial critical path, stored compactly.
            gx_sc[...] = jnp.dot(x_ref[...], wih_ref[...],
                                 preferred_element_type=jnp.float32
                                 ).astype(gx_sc.dtype)

            bias = b_ref[...]                                    # (1, 4H) f32

            # Phase 2: serial recurrence; only the small (Bs,H)x(H,4H) matmul
            # and the gate math are time-serial.  State carried in f32.
            def step(tc, carry):
                h, c = carry                                     # f32 (Bs, H)
                row = tc * Bs
                if Bs % 8 == 0:
                    row = pl.multiple_of(row, 16 if Bs % 16 == 0 else 8)
                gates = (gx_sc[pl.ds(row, Bs), :].astype(jnp.float32) + bias
                         + jnp.dot(h.astype(whh_ref.dtype), whh_ref[...],
                                   preferred_element_type=jnp.float32))
                i_g = jax.nn.sigmoid(gates[:, 0 * H:1 * H])
                f_g = jax.nn.sigmoid(gates[:, 1 * H:2 * H])
                g_g = jnp.tanh(gates[:, 2 * H:3 * H])
                o_g = jax.nn.sigmoid(gates[:, 3 * H:4 * H])
                c_new = f_g * c + i_g * g_g
                h_new = o_g * jnp.tanh(c_new)
                if padded:
                    valid = (chunk * TC + tc) < T
                    h_new = jnp.where(valid, h_new, h)
                    c_new = jnp.where(valid, c_new, c)
                hseq_ref[tc] = h_new.astype(hseq_ref.dtype)
                return (h_new, c_new)

            # Partial unroll keeps LLO scheduling visibility without blowing up
            # code size / vreg live ranges at large chunk sizes.
            h_fin, c_fin = lax.fori_loop(0, TC, step, (h_sc[...], c_sc[...]),
                                         unroll=(TC if TC <= 8 else 4))
            h_sc[...] = h_fin
            c_sc[...] = c_fin

            # Final states written once, on the last chunk of this split only.
            @pl.when(chunk == pl.num_programs(1) - 1)
            def _():
                hN_ref[...] = h_fin.astype(hN_ref.dtype)
                cN_ref[...] = c_fin.astype(cN_ref.dtype)

        grid_spec = pltpu.PrefetchScalarGridSpec(
            num_scalar_prefetch=0,
            grid=(S, n_chunks),
            in_specs=[
                pl.BlockSpec((None, TC * Bs, D_in), lambda s, c: (s, c, 0)),
                _const_spec((D_in, 4 * H), lambda s, c: (0, 0), single_buffer),
                _const_spec((H, 4 * H), lambda s, c: (0, 0), single_buffer),
                _const_spec((1, 4 * H), lambda s, c: (0, 0), single_buffer),
                pl.BlockSpec((None, Bs, H), lambda s, c: (s, 0, 0)),
                pl.BlockSpec((None, Bs, H), lambda s, c: (s, 0, 0)),
            ],
            out_specs=[
                pl.BlockSpec((None, TC, Bs, H), lambda s, c: (s, c, 0, 0)),
                pl.BlockSpec((None, Bs, H), lambda s, c: (s, 0, 0)),
                pl.BlockSpec((None, Bs, H), lambda s, c: (s, 0, 0)),
            ],
            scratch_shapes=[
                pltpu.VMEM((Bs, H), jnp.float32),                 # h carry
                pltpu.VMEM((Bs, H), jnp.float32),                 # c carry
                pltpu.VMEM((TC * Bs, 4 * H), gx_dtype),           # hoisted gates
            ],
        )
        vmem_bytes = _lstm_vmem_bytes(TC, Bs, D_in, H, const_bufs, gx_bytes)
        vmem_limit = int(min(max(vmem_bytes + (12 << 20), 32 << 20), 56 << 20))

        out_shapes = (jax.ShapeDtypeStruct((S, Tp, Bs, H), jnp.bfloat16),
                      jax.ShapeDtypeStruct((S, Bs, H), jnp.float32),
                      jax.ShapeDtypeStruct((S, Bs, H), jnp.float32))

        h_seq, h_n, c_n = pl.pallas_call(
            kernel,
            out_shape=out_shapes,
            grid_spec=grid_spec,
            compiler_params=pltpu.CompilerParams(
                # batch splits independent -> 'parallel' (v7x megacore shard);
                # h/c carried across time chunks -> 'arbitrary'.
                dimension_semantics=("parallel", "arbitrary"),
                vmem_limit_bytes=vmem_limit),
        )(x_flat, w_ih_t, w_hh_t, b2, h0s, c0s)

        if padded:
            h_seq = h_seq[:, :T]
        return h_seq, h_n.reshape(S * Bs, H), c_n.reshape(S * Bs, H)

    # TODO(synk): fuse all layers into a single pallas_call (keep inter-layer
    # h_seq chunks in VMEM) to remove the per-layer HBM round trip.
    return _run_with_const_fallback(run)


# ---------------------------------------------------------------------------
# FC head: out = x @ W^T + b on a row-tiled slab; vocab padded to a 128-lane
# multiple so logit stores are lane-dense (padding sliced off outside).
# ---------------------------------------------------------------------------
def _fc_vmem_bytes(tile_n, H, Vp, const_bufs):
    bf16, f32 = 2, 4
    return (2 * tile_n * H * bf16 + const_bufs * (H * Vp * bf16 + Vp * f32)
            + 2 * tile_n * Vp * f32)


def fc_kernel(x_ref, w_ref, b_ref, o_ref):
    o_ref[...] = (jnp.dot(x_ref[...], w_ref[...],
                          preferred_element_type=jnp.float32) + b_ref[...])


def run_fc(x_flat, w_t, b, *, max_row_tile=1024,
           vmem_budget_bytes=_VMEM_BUDGET_BYTES):
    N, H = x_flat.shape
    V = w_t.shape[-1]
    Vp = _round_up(V, 128)
    if Vp != V:
        w_t = jnp.pad(w_t, ((0, 0), (0, Vp - V)))
        b = jnp.pad(b, ((0, Vp - V),))
    b2 = b.reshape(1, Vp).astype(jnp.float32)

    def run(single_buffer):
        const_bufs = 1 if single_buffer else 2
        tile_n = min(_round_up(N, 8), max_row_tile)
        while tile_n > 8 and _fc_vmem_bytes(tile_n, H, Vp, const_bufs) > vmem_budget_bytes:
            tile_n = _round_up(tile_n // 2, 8)
        Np = _round_up(N, tile_n)
        x_p = jnp.pad(x_flat, ((0, Np - N), (0, 0))) if Np != N else x_flat
        vmem_limit = int(min(max(_fc_vmem_bytes(tile_n, H, Vp, const_bufs)
                                 + (12 << 20), 32 << 20), 56 << 20))
        out = pl.pallas_call(
            fc_kernel,
            out_shape=jax.ShapeDtypeStruct((Np, Vp), jnp.float32),
            grid_spec=pltpu.PrefetchScalarGridSpec(
                num_scalar_prefetch=0,
                grid=(Np // tile_n,),
                in_specs=[
                    pl.BlockSpec((tile_n, H), lambda i: (i, 0)),
                    _const_spec((H, Vp), lambda i: (0, 0), single_buffer),
                    _const_spec((1, Vp), lambda i: (0, 0), single_buffer),
                ],
                out_specs=pl.BlockSpec((tile_n, Vp), lambda i: (i, 0)),
            ),
            compiler_params=pltpu.CompilerParams(
                dimension_semantics=("parallel",),
                vmem_limit_bytes=vmem_limit),
        )(x_p, w_t, b2)
        return out[:N, :V]

    return _run_with_const_fallback(run)


# ---------------------------------------------------------------------------
# CharRNN forward (eval mode)
# ---------------------------------------------------------------------------
def char_rnn_forward(x, hidden, params, n_layers):
    """x: (B, T, V) one-hot float, batch_first.  hidden = (h0, c0), each (L, B, H).
    Returns (out (B*T, V) f32, (h_n, c_n) each (L, B, H) f32)."""
    h0_all, c0_all = hidden
    B, T, V = x.shape
    S = _batch_splits(B)
    Bs = B // S

    # One-time layout change: batch-first -> (split, time, sub-batch, feat).
    # All inter-layer handoffs stay in this layout (free reshapes only), so no
    # per-layer HBM transposes are paid.
    layer_in = (x.astype(jnp.bfloat16)
                 .reshape(S, Bs, T, V)
                 .transpose(0, 2, 1, 3))                          # (S, T, Bs, V)

    h_n_list, c_n_list = [], []
    h_seq = None
    for l in range(n_layers):
        p = params[f"lstm_l{l}"]
        h_seq, h_n, c_n = run_lstm_layer(layer_in, p["w_ih_t"], p["w_hh_t"],
                                         p["b"], h0_all[l], c0_all[l])
        h_n_list.append(h_n)
        c_n_list.append(c_n)
        # TODO(synk): inter-layer dropout (p=0.5) and self.dropout are identity
        # in eval mode; no stochastic dropout applied here.
        layer_in = h_seq                                          # (S, T, Bs, H)

    # FC directly on the time-major slab; only the (small) logits are reordered
    # back to PyTorch's (batch, time) row ordering.
    H = h_seq.shape[-1]
    logits = run_fc(h_seq.reshape(S * T * Bs, H),
                    params["fc"]["w_t"], params["fc"]["b"])       # (S*T*Bs, V)
    out = (logits.reshape(S, T, Bs, V)
                 .transpose(0, 2, 1, 3)                           # (S, Bs, T, V)
                 .reshape(B * T, V))
    return out, (jnp.stack(h_n_list, axis=0), jnp.stack(c_n_list, axis=0))


# ---------------------------------------------------------------------------
# Deterministic parameter init (PyTorch-like uniform(-1/sqrt(H), 1/sqrt(H))).
# MXU operands stored in bf16; biases / states kept f32.
# ---------------------------------------------------------------------------
def init_params(key, vocab, n_hidden, n_layers):
    params = {}
    bound = 1.0 / jnp.sqrt(jnp.float32(n_hidden))
    for l in range(n_layers):
        d_in = vocab if l == 0 else n_hidden
        key, k1, k2, k3, k4 = jax.random.split(key, 5)
        w_ih = jax.random.uniform(k1, (4 * n_hidden, d_in), jnp.float32, -bound, bound)
        w_hh = jax.random.uniform(k2, (4 * n_hidden, n_hidden), jnp.float32, -bound, bound)
        b_ih = jax.random.uniform(k3, (4 * n_hidden,), jnp.float32, -bound, bound)
        b_hh = jax.random.uniform(k4, (4 * n_hidden,), jnp.float32, -bound, bound)
        params[f"lstm_l{l}"] = {
            "w_ih_t": w_ih.T.astype(jnp.bfloat16),   # (d_in, 4H) for x @ W_ih^T
            "w_hh_t": w_hh.T.astype(jnp.bfloat16),   # (H, 4H)    for h @ W_hh^T
            "b": (b_ih + b_hh).astype(jnp.float32),  # fused bias, f32
        }
    key, k1, k2 = jax.random.split(key, 3)
    w_fc = jax.random.uniform(k1, (vocab, n_hidden), jnp.float32, -bound, bound)
    b_fc = jax.random.uniform(k2, (vocab,), jnp.float32, -bound, bound)
    params["fc"] = {"w_t": w_fc.T.astype(jnp.bfloat16), "b": b_fc}
    return params


# Pure-JAX f32 reference (same bf16-stored weights, f32 math) for validation.
def lstm_reference(x, hidden, params, n_layers):
    h0_all, c0_all = hidden
    B, T, _ = x.shape
    inp = x.astype(jnp.float32)
    h_ns, c_ns = [], []
    for l in range(n_layers):
        p = params[f"lstm_l{l}"]
        wih = p["w_ih_t"].astype(jnp.float32)
        whh = p["w_hh_t"].astype(jnp.float32)
        bias = p["b"]

        def step(carry, x_t, wih=wih, whh=whh, bias=bias):
            h, c = carry
            g = x_t @ wih + h @ whh + bias
            i, f, gg, o = jnp.split(g, 4, axis=-1)
            c = jax.nn.sigmoid(f) * c + jax.nn.sigmoid(i) * jnp.tanh(gg)
            h = jax.nn.sigmoid(o) * jnp.tanh(c)
            return (h, c), h

        (h_n, c_n), hs = lax.scan(step, (h0_all[l], c0_all[l]),
                                  jnp.swapaxes(inp, 0, 1))
        h_ns.append(h_n)
        c_ns.append(c_n)
        inp = jnp.swapaxes(hs, 0, 1)                              # (B, T, H)
    out = (inp.reshape(B * T, -1) @ params["fc"]["w_t"].astype(jnp.float32)
           + params["fc"]["b"])
    return out, (jnp.stack(h_ns), jnp.stack(c_ns))


if __name__ == "__main__":
    configs = [
        # (B, T, VOCAB, H, L): small shapes consistent with the module.
        (2, 8, 16, 32, 2),     # tiny, single-split path
        (32, 8, 16, 128, 2),   # batch-split ("parallel") path, bf16 gate scratch
    ]
    key = jax.random.PRNGKey(0)
    for (B, T, VOCAB, H, L) in configs:
        key, kx, kp = jax.random.split(key, 3)
        char_ids = jax.random.randint(kx, (B, T), 0, VOCAB)
        x = jax.nn.one_hot(char_ids, VOCAB, dtype=jnp.float32)    # (B, T, V)
        h0 = jnp.zeros((L, B, H), jnp.float32)                    # init_hidden
        c0 = jnp.zeros((L, B, H), jnp.float32)
        params = init_params(kp, VOCAB, H, L)

        out, (h_n, c_n) = char_rnn_forward(x, (h0, c0), params, L)
        jax.block_until_ready(out)
        assert out.shape == (B * T, VOCAB)
        assert h_n.shape == (L, B, H) and c_n.shape == (L, B, H)

        out_ref, (h_ref, c_ref) = lstm_reference(x, (h0, c0), params, L)
        assert float(jnp.max(jnp.abs(out - out_ref))) < 5e-2
        assert float(jnp.max(jnp.abs(h_n - h_ref))) < 5e-2
        assert float(jnp.max(jnp.abs(c_n - c_ref))) < 5e-2

    print("KERNEL_OK")
</pallas_src>

<mosaic_0001>
module attributes {stable_mosaic.version = 11 : i64} {
  func.func @kernel(%arg0: i32, %arg1: i32, %arg2: memref<1x16x16xbf16, #tpu.memory_space<vmem>>, %arg3: memref<16x128xbf16, #tpu.memory_space<vmem>>, %arg4: memref<32x128xbf16, #tpu.memory_space<vmem>>, %arg5: memref<1x128xf32, #tpu.memory_space<vmem>>, %arg6: memref<1x2x32xf32, #tpu.memory_space<vmem>>, %arg7: memref<1x2x32xf32, #tpu.memory_space<vmem>>, %arg8: memref<1x8x2x32xbf16, #tpu.memory_space<vmem>>, %arg9: memref<1x2x32xf32, #tpu.memory_space<vmem>>, %arg10: memref<1x2x32xf32, #tpu.memory_space<vmem>>, %arg11: memref<2x32xf32, #tpu.memory_space<vmem>>, %arg12: memref<2x32xf32, #tpu.memory_space<vmem>>, %arg13: memref<16x128xf32, #tpu.memory_space<vmem>>) attributes {dimension_semantics = [#tpu.dimension_semantics<parallel>, #tpu.dimension_semantics<arbitrary>], iteration_bounds = array<i64: 1, 1>, scalar_prefetch = 0 : i64, scratch_operands = 3 : i64, tpu.core_type = #tpu.core_type<tc>, window_params = [{transform_indices = @transform_0, window_bounds = array<i64: 1, 16, 16>}, {pipeline_mode = #tpu.pipeline_mode<synchronous>, transform_indices = @transform_1, window_bounds = array<i64: 16, 128>}, {pipeline_mode = #tpu.pipeline_mode<synchronous>, transform_indices = @transform_2, window_bounds = array<i64: 32, 128>}, {pipeline_mode = #tpu.pipeline_mode<synchronous>, transform_indices = @transform_3, window_bounds = array<i64: 1, 128>}, {transform_indices = @transform_4, window_bounds = array<i64: 1, 2, 32>}, {transform_indices = @transform_5, window_bounds = array<i64: 1, 2, 32>}, {transform_indices = @transform_6, window_bounds = array<i64: 1, 8, 2, 32>}, {transform_indices = @transform_7, window_bounds = array<i64: 1, 2, 32>}, {transform_indices = @transform_8, window_bounds = array<i64: 1, 2, 32>}]} {
    %c0_i32 = arith.constant 0 : i32
    %0 = arith.cmpi eq, %arg1, %c0_i32 : i32
    %1 = arith.extui %0 : i1 to i32
    %c0_i32_0 = arith.constant 0 : i32
    %2 = arith.cmpi ne, %1, %c0_i32_0 : i32
    scf.if %2 {
      %c0_108 = arith.constant 0 : index
      %c0_109 = arith.constant 0 : index
      %c0_110 = arith.constant 0 : index
      %328 = vector.load %arg6[%c0_108, %c0_109, %c0_110] : memref<1x2x32xf32, #tpu.memory_space<vmem>>, vector<1x2x32xf32>
      %329 = vector.shape_cast %328 : vector<1x2x32xf32> to vector<2x32xf32>
      %c0_111 = arith.constant 0 : index
      %c0_112 = arith.constant 0 : index
      %330 = vector.load %arg11[%c0_111, %c0_112] : memref<2x32xf32, #tpu.memory_space<vmem>>, vector<2x32xf32>
      tpu.vector_store %arg11[%c0_111, %c0_112], %329 {strides = array<i32>} : memref<2x32xf32, #tpu.memory_space<vmem>>, vector<2x32xf32>,
      %c0_113 = arith.constant 0 : index
      %c0_114 = arith.constant 0 : index
      %c0_115 = arith.constant 0 : index
      %331 = vector.load %arg7[%c0_113, %c0_114, %c0_115] : memref<1x2x32xf32, #tpu.memory_space<vmem>>, vector<1x2x32xf32>
      %332 = vector.shape_cast %331 : vector<1x2x32xf32> to vector<2x32xf32>
      %c0_116 = arith.constant 0 : index
      %c0_117 = arith.constant 0 : index
      %333 = vector.load %arg12[%c0_116, %c0_117] : memref<2x32xf32, #tpu.memory_space<vmem>>, vector<2x32xf32>
      tpu.vector_store %arg12[%c0_116, %c0_117], %332 {strides = array<i32>} : memref<2x32xf32, #tpu.memory_space<vmem>>, vector<2x32xf32>,
    } else {
    }
    %c0 = arith.constant 0 : index
    %c0_1 = arith.constant 0 : index
    %c0_2 = arith.constant 0 : index
    %3 = vector.load %arg2[%c0, %c0_1, %c0_2] : memref<1x16x16xbf16, #tpu.memory_space<vmem>>, vector<1x16x16xbf16>
    %4 = vector.shape_cast %3 : vector<1x16x16xbf16> to vector<16x16xbf16>
    %c0_3 = arith.constant 0 : index
    %c0_4 = arith.constant 0 : index
    %5 = vector.load %arg3[%c0_3, %c0_4] : memref<16x128xbf16, #tpu.memory_space<vmem>>, vector<16x128xbf16>
    %cst = arith.constant dense<0.000000e+00> : vector<16x128xf32>
    %6 = tpu.matmul %4, %5, %cst {dimension_numbers = #tpu.dot_dimension_numbers<[1], [0], [0], [1], [0, 0, 1, 1], [], []>} : vector<16x16xbf16>, vector<16x128xbf16>, vector<16x128xf32> -> vector<16x128xf32>
    %c0_5 = arith.constant 0 : index
    %c0_6 = arith.constant 0 : index
    %7 = vector.load %arg13[%c0_5, %c0_6] : memref<16x128xf32, #tpu.memory_space<vmem>>, vector<16x128xf32>
    tpu.vector_store %arg13[%c0_5, %c0_6], %6 {strides = array<i32>} : memref<16x128xf32, #tpu.memory_space<vmem>>, vector<16x128xf32>,
    %c0_7 = arith.constant 0 : index
    %c0_8 = arith.constant 0 : index
    %8 = vector.load %arg5[%c0_7, %c0_8] : memref<1x128xf32, #tpu.memory_space<vmem>>, vector<1x128xf32>
    %c0_9 = arith.constant 0 : index
    %c0_10 = arith.constant 0 : index
    %9 = vector.load %arg11[%c0_9, %c0_10] : memref<2x32xf32, #tpu.memory_space<vmem>>, vector<2x32xf32>
    %c0_11 = arith.constant 0 : index
    %c0_12 = arith.constant 0 : index
    %10 = vector.load %arg12[%c0_11, %c0_12] : memref<2x32xf32, #tpu.memory_space<vmem>>, vector<2x32xf32>
    %c0_i32_13 = arith.constant 0 : i32
    %c2_i32 = arith.constant 2 : i32
    %11 = arith.muli %c0_i32_13, %c2_i32 : i32
    %12 = arith.index_cast %11 : i32 to index
    %c0_14 = arith.constant 0 : index
    %13 = vector.load %arg13[%12, %c0_14] : memref<16x128xf32, #tpu.memory_space<vmem>>, vector<2x128xf32>
    %14 = vector.broadcast %8 : vector<1x128xf32> to vector<2x128xf32>
    %15 = arith.addf %13, %14 : vector<2x128xf32>
    %16 = arith.truncf %9 : vector<2x32xf32> to vector<2x32xbf16>
    %c0_15 = arith.constant 0 : index
    %c0_16 = arith.constant 0 : index
    %17 = vector.load %arg4[%c0_15, %c0_16] : memref<32x128xbf16, #tpu.memory_space<vmem>>, vector<32x128xbf16>
    %cst_17 = arith.constant dense<0.000000e+00> : vector<2x128xf32>
    %18 = tpu.matmul %16, %17, %cst_17 {dimension_numbers = #tpu.dot_dimension_numbers<[1], [0], [0], [1], [0, 0, 1, 1], [], []>} : vector<2x32xbf16>, vector<32x128xbf16>, vector<2x128xf32> -> vector<2x128xf32>
    %19 = arith.addf %15, %18 : vector<2x128xf32>
    %20 = vector.extract_strided_slice %19 {offsets = [0, 0], sizes = [2, 32], strides = [1, 1]} : vector<2x128xf32> to vector<2x32xf32>
    %21 = arith.negf %20 : vector<2x32xf32>
    %22 = math.exp %21 : vector<2x32xf32>
    %cst_18 = arith.constant 1.000000e+00 : f32
    %23 = vector.broadcast %cst_18 : f32 to vector<2x32xf32>
    %24 = arith.addf %23, %22 : vector<2x32xf32>
    %25 = arith.divf %23, %24 : vector<2x32xf32>
    %26 = vector.extract_strided_slice %19 {offsets = [0, 32], sizes = [2, 32], strides = [1, 1]} : vector<2x128xf32> to vector<2x32xf32>
    %27 = arith.negf %26 : vector<2x32xf32>
    %28 = math.exp %27 : vector<2x32xf32>
    %cst_19 = arith.constant 1.000000e+00 : f32
    %29 = vector.broadcast %cst_19 : f32 to vector<2x32xf32>
    %30 = arith.addf %29, %28 : vector<2x32xf32>
    %31 = arith.divf %29, %30 : vector<2x32xf32>
    %32 = vector.extract_strided_slice %19 {offsets = [0, 64], sizes = [2, 32], strides = [1, 1]} : vector<2x128xf32> to vector<2x32xf32>
    %33 = math.tanh %32 : vector<2x32xf32>
    %34 = vector.extract_strided_slice %19 {offsets = [0, 96], sizes = [2, 32], strides = [1, 1]} : vector<2x128xf32> to vector<2x32xf32>
    %35 = arith.negf %34 : vector<2x32xf32>
    %36 = math.exp %35 : vector<2x32xf32>
    %cst_20 = arith.constant 1.000000e+00 : f32
    %37 = vector.broadcast %cst_20 : f32 to vector<2x32xf32>
    %38 = arith.addf %37, %36 : vector<2x32xf32>
    %39 = arith.divf %37, %38 : vector<2x32xf32>
    %40 = arith.mulf %31, %10 : vector<2x32xf32>
    %41 = arith.mulf %25, %33 : vector<2x32xf32>
    %42 = arith.addf %40, %41 : vector<2x32xf32>
    %43 = math.tanh %42 : vector<2x32xf32>
    %44 = arith.mulf %39, %43 : vector<2x32xf32>
    %45 = arith.truncf %44 : vector<2x32xf32> to vector<2x32xbf16>
    %c0_21 = arith.constant 0 : index
    %46 = arith.index_cast %c0_i32_13 : i32 to index
    %c0_22 = arith.constant 0 : index
    %c0_23 = arith.constant 0 : index
    %47 = vector.load %arg8[%c0_21, %46, %c0_22, %c0_23] : memref<1x8x2x32xbf16, #tpu.memory_space<vmem>>, vector<1x1x2x32xbf16>
    %48 = vector.shape_cast %47 : vector<1x1x2x32xbf16> to vector<2x32xbf16>
    %49 = vector.shape_cast %45 : vector<2x32xbf16> to vector<1x1x2x32xbf16>
    tpu.vector_store %arg8[%c0_21, %46, %c0_22, %c0_23], %49 {strides = array<i32>} : memref<1x8x2x32xbf16, #tpu.memory_space<vmem>>, vector<1x1x2x32xbf16>,
    %c1_i32 = arith.constant 1 : i32
    %c2_i32_24 = arith.constant 2 : i32
    %50 = arith.muli %c1_i32, %c2_i32_24 : i32
    %51 = arith.index_cast %50 : i32 to index
    %c0_25 = arith.constant 0 : index
    %52 = vector.load %arg13[%51, %c0_25] : memref<16x128xf32, #tpu.memory_space<vmem>>, vector<2x128xf32>
    %53 = vector.broadcast %8 : vector<1x128xf32> to vector<2x128xf32>
    %54 = arith.addf %52, %53 : vector<2x128xf32>
    %55 = arith.truncf %44 : vector<2x32xf32> to vector<2x32xbf16>
    %c0_26 = arith.constant 0 : index
    %c0_27 = arith.constant 0 : index
    %56 = vector.load %arg4[%c0_26, %c0_27] : memref<32x128xbf16, #tpu.memory_space<vmem>>, vector<32x128xbf16>
    %cst_28 = arith.constant dense<0.000000e+00> : vector<2x128xf32>
    %57 = tpu.matmul %55, %56, %cst_28 {dimension_numbers = #tpu.dot_dimension_numbers<[1], [0], [0], [1], [0, 0, 1, 1], [], []>} : vector<2x32xbf16>, vector<32x128xbf16>, vector<2x128xf32> -> vector<2x128xf32>
    %58 = arith.addf %54, %57 : vector<2x128xf32>
    %59 = vector.extract_strided_slice %58 {offsets = [0, 0], sizes = [2, 32], strides = [1, 1]} : vector<2x128xf32> to vector<2x32xf32>
    %60 = arith.negf %59 : vector<2x32xf32>
    %61 = math.exp %60 : vector<2x32xf32>
    %cst_29 = arith.constant 1.000000e+00 : f32
    %62 = vector.broadcast %cst_29 : f32 to vector<2x32xf32>
    %63 = arith.addf %62, %61 : vector<2x32xf32>
    %64 = arith.divf %62, %63 : vector<2x32xf32>
    %65 = vector.extract_strided_slice %58 {offsets = [0, 32], sizes = [2, 32], strides = [1, 1]} : vector<2x128xf32> to vector<2x32xf32>
    %66 = arith.negf %65 : vector<2x32xf32>
    %67 = math.exp %66 : vector<2x32xf32>
    %cst_30 = arith.constant 1.000000e+00 : f32
    %68 = vector.broadcast %cst_30 : f32 to vector<2x32xf32>
    %69 = arith.addf %68, %67 : vector<2x32xf32>
    %70 = arith.divf %68, %69 : vector<2x32xf32>
    %71 = vector.extract_strided_slice %58 {offsets = [0, 64], sizes = [2, 32], strides = [1, 1]} : vector<2x128xf32> to vector<2x32xf32>
    %72 = math.tanh %71 : vector<2x32xf32>
    %73 = vector.extract_strided_slice %58 {offsets = [0, 96], sizes = [2, 32], strides = [1, 1]} : vector<2x128xf32> to vector<2x32xf32>
    %74 = arith.negf %73 : vector<2x32xf32>
    %75 = math.exp %74 : vector<2x32xf32>
    %cst_31 = arith.constant 1.000000e+00 : f32
    %76 = vector.broadcast %cst_31 : f32 to vector<2x32xf32>
    %77 = arith.addf %76, %75 : vector<2x32xf32>
    %78 = arith.divf %76, %77 : vector<2x32xf32>
    %79 = arith.mulf %70, %42 : vector<2x32xf32>
    %80 = arith.mulf %64, %72 : vector<2x32xf32>
    %81 = arith.addf %79, %80 : vector<2x32xf32>
    %82 = math.tanh %81 : vector<2x32xf32>
    %83 = arith.mulf %78, %82 : vector<2x32xf32>
    %84 = arith.truncf %83 : vector<2x32xf32> to vector<2x32xbf16>
    %c0_32 = arith.constant 0 : index
    %85 = arith.index_cast %c1_i32 : i32 to index
    %c0_33 = arith.constant 0 : index
    %c0_34 = arith.constant 0 : index
    %86 = vector.load %arg8[%c0_32, %85, %c0_33, %c0_34] : memref<1x8x2x32xbf16, #tpu.memory_space<vmem>>, vector<1x1x2x32xbf16>
    %87 = vector.shape_cast %86 : vector<1x1x2x32xbf16> to vector<2x32xbf16>
    %88 = vector.shape_cast %84 : vector<2x32xbf16> to vector<1x1x2x32xbf16>
    tpu.vector_store %arg8[%c0_32, %85, %c0_33, %c0_34], %88 {strides = array<i32>} : memref<1x8x2x32xbf16, #tpu.memory_space<vmem>>, vector<1x1x2x32xbf16>,
    %c2_i32_35 = arith.constant 2 : i32
    %c2_i32_36 = arith.constant 2 : i32
    %89 = arith.muli %c2_i32_35, %c2_i32_36 : i32
    %90 = arith.index_cast %89 : i32 to index
    %c0_37 = arith.constant 0 : index
    %91 = vector.load %arg13[%90, %c0_37] : memref<16x128xf32, #tpu.memory_space<vmem>>, vector<2x128xf32>
    %92 = vector.broadcast %8 : vector<1x128xf32> to vector<2x128xf32>
    %93 = arith.addf %91, %92 : vector<2x128xf32>
    %94 = arith.truncf %83 : vector<2x32xf32> to vector<2x32xbf16>
    %c0_38 = arith.constant 0 : index
    %c0_39 = arith.constant 0 : index
    %95 = vector.load %arg4[%c0_38, %c0_39] : memref<32x128xbf16, #tpu.memory_space<vmem>>, vector<32x128xbf16>
    %cst_40 = arith.constant dense<0.000000e+00> : vector<2x128xf32>
    %96 = tpu.matmul %94, %95, %cst_40 {dimension_numbers = #tpu.dot_dimension_numbers<[1], [0], [0], [1], [0, 0, 1, 1], [], []>} : vector<2x32xbf16>, vector<32x128xbf16>, vector<2x128xf32> -> vector<2x128xf32>
    %97 = arith.addf %93, %96 : vector<2x128xf32>
    %98 = vector.extract_strided_slice %97 {offsets = [0, 0], sizes = [2, 32], strides = [1, 1]} : vector<2x128xf32> to vector<2x32xf32>
    %99 = arith.negf %98 : vector<2x32xf32>
    %100 = math.exp %99 : vector<2x32xf32>
    %cst_41 = arith.constant 1.000000e+00 : f32
    %101 = vector.broadcast %cst_41 : f32 to vector<2x32xf32>
    %102 = arith.addf %101, %100 : vector<2x32xf32>
    %103 = arith.divf %101, %102 : vector<2x32xf32>
    %104 = vector.extract_strided_slice %97 {offsets = [0, 32], sizes = [2, 32], strides = [1, 1]} : vector<2x128xf32> to vector<2x32xf32>
    %105 = arith.negf %104 : vector<2x32xf32>
    %106 = math.exp %105 : vector<2x32xf32>
    %cst_42 = arith.constant 1.000000e+00 : f32
    %107 = vector.broadcast %cst_42 : f32 to vector<2x32xf32>
    %108 = arith.addf %107, %106 : vector<2x32xf32>
    %109 = arith.divf %107, %108 : vector<2x32xf32>
    %110 = vector.extract_strided_slice %97 {offsets = [0, 64], sizes = [2, 32], strides = [1, 1]} : vector<2x128xf32> to vector<2x32xf32>
    %111 = math.tanh %110 : vector<2x32xf32>
    %112 = vector.extract_strided_slice %97 {offsets = [0, 96], sizes = [2, 32], strides = [1, 1]} : vector<2x128xf32> to vector<2x32xf32>
    %113 = arith.negf %112 : vector<2x32xf32>
    %114 = math.exp %113 : vector<2x32xf32>
    %cst_43 = arith.constant 1.000000e+00 : f32
    %115 = vector.broadcast %cst_43 : f32 to vector<2x32xf32>
    %116 = arith.addf %115, %114 : vector<2x32xf32>
    %117 = arith.divf %115, %116 : vector<2x32xf32>
    %118 = arith.mulf %109, %81 : vector<2x32xf32>
    %119 = arith.mulf %103, %111 : vector<2x32xf32>
    %120 = arith.addf %118, %119 : vector<2x32xf32>
    %121 = math.tanh %120 : vector<2x32xf32>
    %122 = arith.mulf %117, %121 : vector<2x32xf32>
    %123 = arith.truncf %122 : vector<2x32xf32> to vector<2x32xbf16>
    %c0_44 = arith.constant 0 : index
    %124 = arith.index_cast %c2_i32_35 : i32 to index
    %c0_45 = arith.constant 0 : index
    %c0_46 = arith.constant 0 : index
    %125 = vector.load %arg8[%c0_44, %124, %c0_45, %c0_46] : memref<1x8x2x32xbf16, #tpu.memory_space<vmem>>, vector<1x1x2x32xbf16>
    %126 = vector.shape_cast %125 : vector<1x1x2x32xbf16> to vector<2x32xbf16>
    %127 = vector.shape_cast %123 : vector<2x32xbf16> to vector<1x1x2x32xbf16>
    tpu.vector_store %arg8[%c0_44, %124, %c0_45, %c0_46], %127 {strides = array<i32>} : memref<1x8x2x32xbf16, #tpu.memory_space<vmem>>, vector<1x1x2x32xbf16>,
    %c3_i32 = arith.constant 3 : i32
    %c2_i32_47 = arith.constant 2 : i32
    %128 = arith.muli %c3_i32, %c2_i32_47 : i32
    %129 = arith.index_cast %128 : i32 to index
    %c0_48 = arith.constant 0 : index
    %130 = vector.load %arg13[%129, %c0_48] : memref<16x128xf32, #tpu.memory_space<vmem>>, vector<2x128xf32>
    %131 = vector.broadcast %8 : vector<1x128xf32> to vector<2x128xf32>
    %132 = arith.addf %130, %131 : vector<2x128xf32>
    %133 = arith.truncf %122 : vector<2x32xf32> to vector<2x32xbf16>
    %c0_49 = arith.constant 0 : index
    %c0_50 = arith.constant 0 : index
    %134 = vector.load %arg4[%c0_49, %c0_50] : memref<32x128xbf16, #tpu.memory_space<vmem>>, vector<32x128xbf16>
    %cst_51 = arith.constant dense<0.000000e+00> : vector<2x128xf32>
    %135 = tpu.matmul %133, %134, %cst_51 {dimension_numbers = #tpu.dot_dimension_numbers<[1], [0], [0], [1], [0, 0, 1, 1], [], []>} : vector<2x32xbf16>, vector<32x128xbf16>, vector<2x128xf32> -> vector<2x128xf32>
    %136 = arith.addf %132, %135 : vector<2x128xf32>
    %137 = vector.extract_strided_slice %136 {offsets = [0, 0], sizes = [2, 32], strides = [1, 1]} : vector<2x128xf32> to vector<2x32xf32>
    %138 = arith.negf %137 : vector<2x32xf32>
    %139 = math.exp %138 : vector<2x32xf32>
    %cst_52 = arith.constant 1.000000e+00 : f32
    %140 = vector.broadcast %cst_52 : f32 to vector<2x32xf32>
    %141 = arith.addf %140, %139 : vector<2x32xf32>
    %142 = arith.divf %140, %141 : vector<2x32xf32>
    %143 = vector.extract_strided_slice %136 {offsets = [0, 32], sizes = [2, 32], strides = [1, 1]} : vector<2x128xf32> to vector<2x32xf32>
    %144 = arith.negf %143 : vector<2x32xf32>
    %145 = math.exp %144 : vector<2x32xf32>
    %cst_53 = arith.constant 1.000000e+00 : f32
    %146 = vector.broadcast %cst_53 : f32 to vector<2x32xf32>
    %147 = arith.addf %146, %145 : vector<2x32xf32>
    %148 = arith.divf %146, %147 : vector<2x32xf32>
    %149 = vector.extract_strided_slice %136 {offsets = [0, 64], sizes = [2, 32], strides = [1, 1]} : vector<2x128xf32> to vector<2x32xf32>
    %150 = math.tanh %149 : vector<2x32xf32>
    %151 = vector.extract_strided_slice %136 {offsets = [0, 96], sizes = [2, 32], strides = [1, 1]} : vector<2x128xf32> to vector<2x32xf32>
    %152 = arith.negf %151 : vector<2x32xf32>
    %153 = math.exp %152 : vector<2x32xf32>
    %cst_54 = arith.constant 1.000000e+00 : f32
    %154 = vector.broadcast %cst_54 : f32 to vector<2x32xf32>
    %155 = arith.addf %154, %153 : vector<2x32xf32>
    %156 = arith.divf %154, %155 : vector<2x32xf32>
    %157 = arith.mulf %148, %120 : vector<2x32xf32>
    %158 = arith.mulf %142, %150 : vector<2x32xf32>
    %159 = arith.addf %157, %158 : vector<2x32xf32>
    %160 = math.tanh %159 : vector<2x32xf32>
    %161 = arith.mulf %156, %160 : vector<2x32xf32>
    %162 = arith.truncf %161 : vector<2x32xf32> to vector<2x32xbf16>
    %c0_55 = arith.constant 0 : index
    %163 = arith.index_cast %c3_i32 : i32 to index
    %c0_56 = arith.constant 0 : index
    %c0_57 = arith.constant 0 : index
    %164 = vector.load %arg8[%c0_55, %163, %c0_56, %c0_57] : memref<1x8x2x32xbf16, #tpu.memory_space<vmem>>, vector<1x1x2x32xbf16>
    %165 = vector.shape_cast %164 : vector<1x1x2x32xbf16> to vector<2x32xbf16>
    %166 = vector.shape_cast %162 : vector<2x32xbf16> to vector<1x1x2x32xbf16>
    tpu.vector_store %arg8[%c0_55, %163, %c0_56, %c0_57], %166 {strides = array<i32>} : memref<1x8x2x32xbf16, #tpu.memory_space<vmem>>, vector<1x1x2x32xbf16>,
    %c4_i32 = arith.constant 4 : i32
    %c2_i32_58 = arith.constant 2 : i32
    %167 = arith.muli %c4_i32, %c2_i32_58 : i32
    %168 = arith.index_cast %167 : i32 to index
    %c0_59 = arith.constant 0 : index
    %169 = vector.load %arg13[%168, %c0_59] : memref<16x128xf32, #tpu.memory_space<vmem>>, vector<2x128xf32>
    %170 = vector.broadcast %8 : vector<1x128xf32> to vector<2x128xf32>
    %171 = arith.addf %169, %170 : vector<2x128xf32>
    %172 = arith.truncf %161 : vector<2x32xf32> to vector<2x32xbf16>
    %c0_60 = arith.constant 0 : index
    %c0_61 = arith.constant 0 : index
    %173 = vector.load %arg4[%c0_60, %c0_61] : memref<32x128xbf16, #tpu.memory_space<vmem>>, vector<32x128xbf16>
    %cst_62 = arith.constant dense<0.000000e+00> : vector<2x128xf32>
    %174 = tpu.matmul %172, %173, %cst_62 {dimension_numbers = #tpu.dot_dimension_numbers<[1], [0], [0], [1], [0, 0, 1, 1], [], []>} : vector<2x32xbf16>, vector<32x128xbf16>, vector<2x128xf32> -> vector<2x128xf32>
    %175 = arith.addf %171, %174 : vector<2x128xf32>
    %176 = vector.extract_strided_slice %175 {offsets = [0, 0], sizes = [2, 32], strides = [1, 1]} : vector<2x128xf32> to vector<2x32xf32>
    %177 = arith.negf %176 : vector<2x32xf32>
    %178 = math.exp %177 : vector<2x32xf32>
    %cst_63 = arith.constant 1.000000e+00 : f32
    %179 = vector.broadcast %cst_63 : f32 to vector<2x32xf32>
    %180 = arith.addf %179, %178 : vector<2x32xf32>
    %181 = arith.divf %179, %180 : vector<2x32xf32>
    %182 = vector.extract_strided_slice %175 {offsets = [0, 32], sizes = [2, 32], strides = [1, 1]} : vector<2x128xf32> to vector<2x32xf32>
    %183 = arith.negf %182 : vector<2x32xf32>
    %184 = math.exp %183 : vector<2x32xf32>
    %cst_64 = arith.constant 1.000000e+00 : f32
    %185 = vector.broadcast %cst_64 : f32 to vector<2x32xf32>
    %186 = arith.addf %185, %184 : vector<2x32xf32>
    %187 = arith.divf %185, %186 : vector<2x32xf32>
    %188 = vector.extract_strided_slice %175 {offsets = [0, 64], sizes = [2, 32], strides = [1, 1]} : vector<2x128xf32> to vector<2x32xf32>
    %189 = math.tanh %188 : vector<2x32xf32>
    %190 = vector.extract_strided_slice %175 {offsets = [0, 96], sizes = [2, 32], strides = [1, 1]} : vector<2x128xf32> to vector<2x32xf32>
    %191 = arith.negf %190 : vector<2x32xf32>
    %192 = math.exp %191 : vector<2x32xf32>
    %cst_65 = arith.constant 1.000000e+00 : f32
    %193 = vector.broadcast %cst_65 : f32 to vector<2x32xf32>
    %194 = arith.addf %193, %192 : vector<2x32xf32>
    %195 = arith.divf %193, %194 : vector<2x32xf32>
    %196 = arith.mulf %187, %159 : vector<2x32xf32>
    %197 = arith.mulf %181, %189 : vector<2x32xf32>
    %198 = arith.addf %196, %197 : vector<2x32xf32>
    %199 = math.tanh %198 : vector<2x32xf32>
    %200 = arith.mulf %195, %199 : vector<2x32xf32>
    %201 = arith.truncf %200 : vector<2x32xf32> to vector<2x32xbf16>
    %c0_66 = arith.constant 0 : index
    %202 = arith.index_cast %c4_i32 : i32 to index
    %c0_67 = arith.constant 0 : index
    %c0_68 = arith.constant 0 : index
    %203 = vector.load %arg8[%c0_66, %202, %c0_67, %c0_68] : memref<1x8x2x32xbf16, #tpu.memory_space<vmem>>, vector<1x1x2x32xbf16>
    %204 = vector.shape_cast %203 : vector<1x1x2x32xbf16> to vector<2x32xbf16>
    %205 = vector.shape_cast %201 : vector<2x32xbf16> to vector<1x1x2x32xbf16>
    tpu.vector_store %arg8[%c0_66, %202, %c0_67, %c0_68], %205 {strides = array<i32>} : memref<1x8x2x32xbf16, #tpu.memory_space<vmem>>, vector<1x1x2x32xbf16>,
    %c5_i32 = arith.constant 5 : i32
    %c2_i32_69 = arith.constant 2 : i32
    %206 = arith.muli %c5_i32, %c2_i32_69 : i32
    %207 = arith.index_cast %206 : i32 to index
    %c0_70 = arith.constant 0 : index
    %208 = vector.load %arg13[%207, %c0_70] : memref<16x128xf32, #tpu.memory_space<vmem>>, vector<2x128xf32>
    %209 = vector.broadcast %8 : vector<1x128xf32> to vector<2x128xf32>
    %210 = arith.addf %208, %209 : vector<2x128xf32>
    %211 = arith.truncf %200 : vector<2x32xf32> to vector<2x32xbf16>
    %c0_71 = arith.constant 0 : index
    %c0_72 = arith.constant 0 : index
    %212 = vector.load %arg4[%c0_71, %c0_72] : memref<32x128xbf16, #tpu.memory_space<vmem>>, vector<32x128xbf16>
    %cst_73 = arith.constant dense<0.000000e+00> : vector<2x128xf32>
    %213 = tpu.matmul %211, %212, %cst_73 {dimension_numbers = #tpu.dot_dimension_numbers<[1], [0], [0], [1], [0, 0, 1, 1], [], []>} : vector<2x32xbf16>, vector<32x128xbf16>, vector<2x128xf32> -> vector<2x128xf32>
    %214 = arith.addf %210, %213 : vector<2x128xf32>
    %215 = vector.extract_strided_slice %214 {offsets = [0, 0], sizes = [2, 32], strides = [1, 1]} : vector<2x128xf32> to vector<2x32xf32>
    %216 = arith.negf %215 : vector<2x32xf32>
    %217 = math.exp %216 : vector<2x32xf32>
    %cst_74 = arith.constant 1.000000e+00 : f32
    %218 = vector.broadcast %cst_74 : f32 to vector<2x32xf32>
    %219 = arith.addf %218, %217 : vector<2x32xf32>
    %220 = arith.divf %218, %219 : vector<2x32xf32>
    %221 = vector.extract_strided_slice %214 {offsets = [0, 32], sizes = [2, 32], strides = [1, 1]} : vector<2x128xf32> to vector<2x32xf32>
    %222 = arith.negf %221 : vector<2x32xf32>
    %223 = math.exp %222 : vector<2x32xf32>
    %cst_75 = arith.constant 1.000000e+00 : f32
    %224 = vector.broadcast %cst_75 : f32 to vector<2x32xf32>
    %225 = arith.addf %224, %223 : vector<2x32xf32>
    %226 = arith.divf %224, %225 : vector<2x32xf32>
    %227 = vector.extract_strided_slice %214 {offsets = [0, 64], sizes = [2, 32], strides = [1, 1]} : vector<2x128xf32> to vector<2x32xf32>
    %228 = math.tanh %227 : vector<2x32xf32>
    %229 = vector.extract_strided_slice %214 {offsets = [0, 96], sizes = [2, 32], strides = [1, 1]} : vector<2x128xf32> to vector<2x32xf32>
    %230 = arith.negf %229 : vector<2x32xf32>
    %231 = math.exp %230 : vector<2x32xf32>
    %cst_76 = arith.constant 1.000000e+00 : f32
    %232 = vector.broadcast %cst_76 : f32 to vector<2x32xf32>
    %233 = arith.addf %232, %231 : vector<2x32xf32>
    %234 = arith.divf %232, %233 : vector<2x32xf32>
    %235 = arith.mulf %226, %198 : vector<2x32xf32>
    %236 = arith.mulf %220, %228 : vector<2x32xf32>
    %237 = arith.addf %235, %236 : vector<2x32xf32>
    %238 = math.tanh %237 : vector<2x32xf32>
    %239 = arith.mulf %234, %238 : vector<2x32xf32>
    %240 = arith.truncf %239 : vector<2x32xf32> to vector<2x32xbf16>
    %c0_77 = arith.constant 0 : index
    %241 = arith.index_cast %c5_i32 : i32 to index
    %c0_78 = arith.constant 0 : index
    %c0_79 = arith.constant 0 : index
    %242 = vector.load %arg8[%c0_77, %241, %c0_78, %c0_79] : memref<1x8x2x32xbf16, #tpu.memory_space<vmem>>, vector<1x1x2x32xbf16>
    %243 = vector.shape_cast %242 : vector<1x1x2x32xbf16> to vector<2x32xbf16>
    %244 = vector.shape_cast %240 : vector<2x32xbf16> to vector<1x1x2x32xbf16>
    tpu.vector_store %arg8[%c0_77, %241, %c0_78, %c0_79], %244 {strides = array<i32>} : memref<1x8x2x32xbf16, #tpu.memory_space<vmem>>, vector<1x1x2x32xbf16>,
    %c6_i32 = arith.constant 6 : i32
    %c2_i32_80 = arith.constant 2 : i32
    %245 = arith.muli %c6_i32, %c2_i32_80 : i32
    %246 = arith.index_cast %245 : i32 to index
    %c0_81 = arith.constant 0 : index
    %247 = vector.load %arg13[%246, %c0_81] : memref<16x128xf32, #tpu.memory_space<vmem>>, vector<2x128xf32>
    %248 = vector.broadcast %8 : vector<1x128xf32> to vector<2x128xf32>
    %249 = arith.addf %247, %248 : vector<2x128xf32>
    %250 = arith.truncf %239 : vector<2x32xf32> to vector<2x32xbf16>
    %c0_82 = arith.constant 0 : index
    %c0_83 = arith.constant 0 : index
    %251 = vector.load %arg4[%c0_82, %c0_83] : memref<32x128xbf16, #tpu.memory_space<vmem>>, vector<32x128xbf16>
    %cst_84 = arith.constant dense<0.000000e+00> : vector<2x128xf32>
    %252 = tpu.matmul %250, %251, %cst_84 {dimension_numbers = #tpu.dot_dimension_numbers<[1], [0], [0], [1], [0, 0, 1, 1], [], []>} : vector<2x32xbf16>, vector<32x128xbf16>, vector<2x128xf32> -> vector<2x128xf32>
    %253 = arith.addf %249, %252 : vector<2x128xf32>
    %254 = vector.extract_strided_slice %253 {offsets = [0, 0], sizes = [2, 32], strides = [1, 1]} : vector<2x128xf32> to vector<2x32xf32>
    %255 = arith.negf %254 : vector<2x32xf32>
    %256 = math.exp %255 : vector<2x32xf32>
    %cst_85 = arith.constant 1.000000e+00 : f32
    %257 = vector.broadcast %cst_85 : f32 to vector<2x32xf32>
    %258 = arith.addf %257, %256 : vector<2x32xf32>
    %259 = arith.divf %257, %258 : vector<2x32xf32>
    %260 = vector.extract_strided_slice %253 {offsets = [0, 32], sizes = [2, 32], strides = [1, 1]} : vector<2x128xf32> to vector<2x32xf32>
    %261 = arith.negf %260 : vector<2x32xf32>
    %262 = math.exp %261 : vector<2x32xf32>
    %cst_86 = arith.constant 1.000000e+00 : f32
    %263 = vector.broadcast %cst_86 : f32 to vector<2x32xf32>
    %264 = arith.addf %263, %262 : vector<2x32xf32>
    %265 = arith.divf %263, %264 : vector<2x32xf32>
    %266 = vector.extract_strided_slice %253 {offsets = [0, 64], sizes = [2, 32], strides = [1, 1]} : vector<2x128xf32> to vector<2x32xf32>
    %267 = math.tanh %266 : vector<2x32xf32>
    %268 = vector.extract_strided_slice %253 {offsets = [0, 96], sizes = [2, 32], strides = [1, 1]} : vector<2x128xf32> to vector<2x32xf32>
    %269 = arith.negf %268 : vector<2x32xf32>
    %270 = math.exp %269 : vector<2x32xf32>
    %cst_87 = arith.constant 1.000000e+00 : f32
    %271 = vector.broadcast %cst_87 : f32 to vector<2x32xf32>
    %272 = arith.addf %271, %270 : vector<2x32xf32>
    %273 = arith.divf %271, %272 : vector<2x32xf32>
    %274 = arith.mulf %265, %237 : vector<2x32xf32>
    %275 = arith.mulf %259, %267 : vector<2x32xf32>
    %276 = arith.addf %274, %275 : vector<2x32xf32>
    %277 = math.tanh %276 : vector<2x32xf32>
    %278 = arith.mulf %273, %277 : vector<2x32xf32>
    %279 = arith.truncf %278 : vector<2x32xf32> to vector<2x32xbf16>
    %c0_88 = arith.constant 0 : index
    %280 = arith.index_cast %c6_i32 : i32 to index
    %c0_89 = arith.constant 0 : index
    %c0_90 = arith.constant 0 : index
    %281 = vector.load %arg8[%c0_88, %280, %c0_89, %c0_90] : memref<1x8x2x32xbf16, #tpu.memory_space<vmem>>, vector<1x1x2x32xbf16>
    %282 = vector.shape_cast %281 : vector<1x1x2x32xbf16> to vector<2x32xbf16>
    %283 = vector.shape_cast %279 : vector<2x32xbf16> to vector<1x1x2x32xbf16>
    tpu.vector_store %arg8[%c0_88, %280, %c0_89, %c0_90], %283 {strides = array<i32>} : memref<1x8x2x32xbf16, #tpu.memory_space<vmem>>, vector<1x1x2x32xbf16>,
    %c7_i32 = arith.constant 7 : i32
    %c2_i32_91 = arith.constant 2 : i32
    %284 = arith.muli %c7_i32, %c2_i32_91 : i32
    %285 = arith.index_cast %284 : i32 to index
    %c0_92 = arith.constant 0 : index
    %286 = vector.load %arg13[%285, %c0_92] : memref<16x128xf32, #tpu.memory_space<vmem>>, vector<2x128xf32>
    %287 = vector.broadcast %8 : vector<1x128xf32> to vector<2x128xf32>
    %288 = arith.addf %286, %287 : vector<2x128xf32>
    %289 = arith.truncf %278 : vector<2x32xf32> to vector<2x32xbf16>
    %c0_93 = arith.constant 0 : index
    %c0_94 = arith.constant 0 : index
    %290 = vector.load %arg4[%c0_93, %c0_94] : memref<32x128xbf16, #tpu.memory_space<vmem>>, vector<32x128xbf16>
    %cst_95 = arith.constant dense<0.000000e+00> : vector<2x128xf32>
    %291 = tpu.matmul %289, %290, %cst_95 {dimension_numbers = #tpu.dot_dimension_numbers<[1], [0], [0], [1], [0, 0, 1, 1], [], []>} : vector<2x32xbf16>, vector<32x128xbf16>, vector<2x128xf32> -> vector<2x128xf32>
    %292 = arith.addf %288, %291 : vector<2x128xf32>
    %293 = vector.extract_strided_slice %292 {offsets = [0, 0], sizes = [2, 32], strides = [1, 1]} : vector<2x128xf32> to vector<2x32xf32>
    %294 = arith.negf %293 : vector<2x32xf32>
    %295 = math.exp %294 : vector<2x32xf32>
    %cst_96 = arith.constant 1.000000e+00 : f32
    %296 = vector.broadcast %cst_96 : f32 to vector<2x32xf32>
    %297 = arith.addf %296, %295 : vector<2x32xf32>
    %298 = arith.divf %296, %297 : vector<2x32xf32>
    %299 = vector.extract_strided_slice %292 {offsets = [0, 32], sizes = [2, 32], strides = [1, 1]} : vector<2x128xf32> to vector<2x32xf32>
    %300 = arith.negf %299 : vector<2x32xf32>
    %301 = math.exp %300 : vector<2x32xf32>
    %cst_97 = arith.constant 1.000000e+00 : f32
    %302 = vector.broadcast %cst_97 : f32 to vector<2x32xf32>
    %303 = arith.addf %302, %301 : vector<2x32xf32>
    %304 = arith.divf %302, %303 : vector<2x32xf32>
    %305 = vector.extract_strided_slice %292 {offsets = [0, 64], sizes = [2, 32], strides = [1, 1]} : vector<2x128xf32> to vector<2x32xf32>
    %306 = math.tanh %305 : vector<2x32xf32>
    %307 = vector.extract_strided_slice %292 {offsets = [0, 96], sizes = [2, 32], strides = [1, 1]} : vector<2x128xf32> to vector<2x32xf32>
    %308 = arith.negf %307 : vector<2x32xf32>
    %309 = math.exp %308 : vector<2x32xf32>
    %cst_98 = arith.constant 1.000000e+00 : f32
    %310 = vector.broadcast %cst_98 : f32 to vector<2x32xf32>
    %311 = arith.addf %310, %309 : vector<2x32xf32>
    %312 = arith.divf %310, %311 : vector<2x32xf32>
    %313 = arith.mulf %304, %276 : vector<2x32xf32>
    %314 = arith.mulf %298, %306 : vector<2x32xf32>
    %315 = arith.addf %313, %314 : vector<2x32xf32>
    %316 = math.tanh %315 : vector<2x32xf32>
    %317 = arith.mulf %312, %316 : vector<2x32xf32>
    %318 = arith.truncf %317 : vector<2x32xf32> to vector<2x32xbf16>
    %c0_99 = arith.constant 0 : index
    %319 = arith.index_cast %c7_i32 : i32 to index
    %c0_100 = arith.constant 0 : index
    %c0_101 = arith.constant 0 : index
    %320 = vector.load %arg8[%c0_99, %319, %c0_100, %c0_101] : memref<1x8x2x32xbf16, #tpu.memory_space<vmem>>, vector<1x1x2x32xbf16>
    %321 = vector.shape_cast %320 : vector<1x1x2x32xbf16> to vector<2x32xbf16>
    %322 = vector.shape_cast %318 : vector<2x32xbf16> to vector<1x1x2x32xbf16>
    tpu.vector_store %arg8[%c0_99, %319, %c0_100, %c0_101], %322 {strides = array<i32>} : memref<1x8x2x32xbf16, #tpu.memory_space<vmem>>, vector<1x1x2x32xbf16>,
    %c8_i32 = arith.constant 8 : i32
    %c0_102 = arith.constant 0 : index
    %c0_103 = arith.constant 0 : index
    %323 = vector.load %arg11[%c0_102, %c0_103] : memref<2x32xf32, #tpu.memory_space<vmem>>, vector<2x32xf32>
    tpu.vector_store %arg11[%c0_102, %c0_103], %317 {strides = array<i32>} : memref<2x32xf32, #tpu.memory_space<vmem>>, vector<2x32xf32>,
    %c0_104 = arith.constant 0 : index
    %c0_105 = arith.constant 0 : index
    %324 = vector.load %arg12[%c0_104, %c0_105] : memref<2x32xf32, #tpu.memory_space<vmem>>, vector<2x32xf32>
    tpu.vector_store %arg12[%c0_104, %c0_105], %315 {strides = array<i32>} : memref<2x32xf32, #tpu.memory_space<vmem>>, vector<2x32xf32>,
    %c0_i32_106 = arith.constant 0 : i32
    %325 = arith.cmpi eq, %arg1, %c0_i32_106 : i32
    %326 = arith.extui %325 : i1 to i32
    %c0_i32_107 = arith.constant 0 : i32
    %327 = arith.cmpi ne, %326, %c0_i32_107 : i32
    scf.if %327 {
      %c0_108 = arith.constant 0 : index
      %c0_109 = arith.constant 0 : index
      %c0_110 = arith.constant 0 : index
      %328 = vector.load %arg9[%c0_108, %c0_109, %c0_110] : memref<1x2x32xf32, #tpu.memory_space<vmem>>, vector<1x2x32xf32>
      %329 = vector.shape_cast %328 : vector<1x2x32xf32> to vector<2x32xf32>
      %330 = vector.shape_cast %317 : vector<2x32xf32> to vector<1x2x32xf32>
      tpu.vector_store %arg9[%c0_108, %c0_109, %c0_110], %330 {strides = array<i32>} : memref<1x2x32xf32, #tpu.memory_space<vmem>>, vector<1x2x32xf32>,
      %c0_111 = arith.constant 0 : index
      %c0_112 = arith.constant 0 : index
      %c0_113 = arith.constant 0 : index
      %331 = vector.load %arg10[%c0_111, %c0_112, %c0_113] : memref<1x2x32xf32, #tpu.memory_space<vmem>>, vector<1x2x32xf32>
      %332 = vector.shape_cast %331 : vector<1x2x32xf32> to vector<2x32xf32>
      %333 = vector.shape_cast %315 : vector<2x32xf32> to vector<1x2x32xf32>
      tpu.vector_store %arg10[%c0_111, %c0_112, %c0_113], %333 {strides = array<i32>} : memref<1x2x32xf32, #tpu.memory_space<vmem>>, vector<1x2x32xf32>,
    } else {
    }
    return
  }
  func.func @transform_0(%arg0: i32, %arg1: i32) -> (i32, i32, i32) {
    %c0_i32 = arith.constant 0 : i32
    %c0_i32_0 = arith.constant 0 : i32
    return %arg0, %arg1, %c0_i32 : i32, i32, i32
  }
  func.func @transform_1(%arg0: i32, %arg1: i32) -> (i32, i32) {
    %c0_i32 = arith.constant 0 : i32
    %c0_i32_0 = arith.constant 0 : i32
    %c0_i32_1 = arith.constant 0 : i32
    return %c0_i32, %c0_i32_0 : i32, i32
  }
  func.func @transform_2(%arg0: i32, %arg1: i32) -> (i32, i32) {
    %c0_i32 = arith.constant 0 : i32
    %c0_i32_0 = arith.constant 0 : i32
    %c0_i32_1 = arith.constant 0 : i32
    return %c0_i32, %c0_i32_0 : i32, i32
  }
  func.func @transform_3(%arg0: i32, %arg1: i32) -> (i32, i32) {
    %c0_i32 = arith.constant 0 : i32
    %c0_i32_0 = arith.constant 0 : i32
    %c0_i32_1 = arith.constant 0 : i32
    return %c0_i32, %c0_i32_0 : i32, i32
  }
  func.func @transform_4(%arg0: i32, %arg1: i32) -> (i32, i32, i32) {
    %c0_i32 = arith.constant 0 : i32
    %c0_i32_0 = arith.constant 0 : i32
    %c0_i32_1 = arith.constant 0 : i32
    return %arg0, %c0_i32, %c0_i32_0 : i32, i32, i32
  }
  func.func @transform_5(%arg0: i32, %arg1: i32) -> (i32, i32, i32) {
    %c0_i32 = arith.constant 0 : i32
    %c0_i32_0 = arith.constant 0 : i32
    %c0_i32_1 = arith.constant 0 : i32
    return %arg0, %c0_i32, %c0_i32_0 : i32, i32, i32
  }
  func.func @transform_6(%arg0: i32, %arg1: i32) -> (i32, i32, i32, i32) {
    %c0_i32 = arith.constant 0 : i32
    %c0_i32_0 = arith.constant 0 : i32
    %c0_i32_1 = arith.constant 0 : i32
    return %arg0, %arg1, %c0_i32, %c0_i32_0 : i32, i32, i32, i32
  }
  func.func @transform_7(%arg0: i32, %arg1: i32) -> (i32, i32, i32) {
    %c0_i32 = arith.constant 0 : i32
    %c0_i32_0 = arith.constant 0 : i32
    %c0_i32_1 = arith.constant 0 : i32
    return %arg0, %c0_i32, %c0_i32_0 : i32, i32, i32
  }
  func.func @transform_8(%arg0: i32, %arg1: i32) -> (i32, i32, i32) {
    %c0_i32 = arith.constant 0 : i32
    %c0_i32_0 = arith.constant 0 : i32
    %c0_i32_1 = arith.constant 0 : i32
    return %arg0, %c0_i32, %c0_i32_0 : i32, i32, i32
  }
}

module attributes {stable_mosaic.version = 11 : i64} {
  func.func @kernel(%arg0: i32, %arg1: i32, %arg2: memref<1x16x16xbf16, #tpu.memory_space<vmem>>, %arg3: memref<16x128xbf16, #tpu.memory_space<vmem>>, %arg4: memref<32x128xbf16, #tpu.memory_space<vmem>>, %arg5: memref<1x128xf32, #tpu.memory_space<vmem>>, %arg6: memref<1x2x32xf32, #tpu.memory_space<vmem>>, %arg7: memref<1x2x32xf32, #tpu.memory_space<vmem>>, %arg8: memref<1x8x2x32xbf16, #tpu.memory_space<vmem>>, %arg9: memref<1x2x32xf32, #tpu.memory_space<vmem>>, %arg10: memref<1x2x32xf32, #tpu.memory_space<vmem>>, %arg11: memref<2x32xf32, #tpu.memory_space<vmem>>, %arg12: memref<2x32xf32, #tpu.memory_space<vmem>>, %arg13: memref<16x128xf32, #tpu.memory_space<vmem>>) attributes {dimension_semantics = [#tpu.dimension_semantics<parallel>, #tpu.dimension_semantics<arbitrary>], iteration_bounds = array<i64: 1, 1>, scalar_prefetch = 0 : i64, scratch_operands = 3 : i64, tpu.core_type = #tpu.core_type<tc>, window_params = [{transform_indices = @transform_0, window_bounds = array<i64: 1, 16, 16>}, {pipeline_mode = #tpu.pipeline_mode<synchronous>, transform_indices = @transform_1, window_bounds = array<i64: 16, 128>}, {pipeline_mode = #tpu.pipeline_mode<synchronous>, transform_indices = @transform_2, window_bounds = array<i64: 32, 128>}, {pipeline_mode = #tpu.pipeline_mode<synchronous>, transform_indices = @transform_3, window_bounds = array<i64: 1, 128>}, {transform_indices = @transform_4, window_bounds = array<i64: 1, 2, 32>}, {transform_indices = @transform_5, window_bounds = array<i64: 1, 2, 32>}, {transform_indices = @transform_6, window_bounds = array<i64: 1, 8, 2, 32>}, {transform_indices = @transform_7, window_bounds = array<i64: 1, 2, 32>}, {transform_indices = @transform_8, window_bounds = array<i64: 1, 2, 32>}]} {
    %c0_i32 = arith.constant 0 : i32
    %0 = arith.cmpi eq, %arg1, %c0_i32 : i32
    %1 = arith.extui %0 : i1 to i32
    %c0_i32_0 = arith.constant 0 : i32
    %2 = arith.cmpi ne, %1, %c0_i32_0 : i32
    scf.if %2 {
      %c0_108 = arith.constant 0 : index
      %c0_109 = arith.constant 0 : index
      %c0_110 = arith.constant 0 : index
      %328 = vector.load %arg6[%c0_108, %c0_109, %c0_110] : memref<1x2x32xf32, #tpu.memory_space<vmem>>, vector<1x2x32xf32>
      %329 = vector.shape_cast %328 : vector<1x2x32xf32> to vector<2x32xf32>
      %c0_111 = arith.constant 0 : index
      %c0_112 = arith.constant 0 : index
      %330 = vector.load %arg11[%c0_111, %c0_112] : memref<2x32xf32, #tpu.memory_space<vmem>>, vector<2x32xf32>
      tpu.vector_store %arg11[%c0_111, %c0_112], %329 {strides = array<i32>} : memref<2x32xf32, #tpu.memory_space<vmem>>, vector<2x32xf32>,
      %c0_113 = arith.constant 0 : index
      %c0_114 = arith.constant 0 : index
      %c0_115 = arith.constant 0 : index
      %331 = vector.load %arg7[%c0_113, %c0_114, %c0_115] : memref<1x2x32xf32, #tpu.memory_space<vmem>>, vector<1x2x32xf32>
      %332 = vector.shape_cast %331 : vector<1x2x32xf32> to vector<2x32xf32>
      %c0_116 = arith.constant 0 : index
      %c0_117 = arith.constant 0 : index
      %333 = vector.load %arg12[%c0_116, %c0_117] : memref<2x32xf32, #tpu.memory_space<vmem>>, vector<2x32xf32>
      tpu.vector_store %arg12[%c0_116, %c0_117], %332 {strides = array<i32>} : memref<2x32xf32, #tpu.memory_space<vmem>>, vector<2x32xf32>,
    } else {
    }
    %c0 = arith.constant 0 : index
    %c0_1 = arith.constant 0 : index
    %c0_2 = arith.constant 0 : index
    %3 = vector.load %arg2[%c0, %c0_1, %c0_2] : memref<1x16x16xbf16, #tpu.memory_space<vmem>>, vector<1x16x16xbf16>
    %4 = vector.shape_cast %3 : vector<1x16x16xbf16> to vector<16x16xbf16>
    %c0_3 = arith.constant 0 : index
    %c0_4 = arith.constant 0 : index
    %5 = vector.load %arg3[%c0_3, %c0_4] : memref<16x128xbf16, #tpu.memory_space<vmem>>, vector<16x128xbf16>
    %cst = arith.constant dense<0.000000e+00> : vector<16x128xf32>
    %6 = tpu.matmul %4, %5, %cst {dimension_numbers = #tpu.dot_dimension_numbers<[1], [0], [0], [1], [0, 0, 1, 1], [], []>} : vector<16x16xbf16>, vector<16x128xbf16>, vector<16x128xf32> -> vector<16x128xf32>
    %c0_5 = arith.constant 0 : index
    %c0_6 = arith.constant 0 : index
    %7 = vector.load %arg13[%c0_5, %c0_6] : memref<16x128xf32, #tpu.memory_space<vmem>>, vector<16x128xf32>
    tpu.vector_store %arg13[%c0_5, %c0_6], %6 {strides = array<i32>} : memref<16x128xf32, #tpu.memory_space<vmem>>, vector<16x128xf32>,
    %c0_7 = arith.constant 0 : index
    %c0_8 = arith.constant 0 : index
    %8 = vector.load %arg5[%c0_7, %c0_8] : memref<1x128xf32, #tpu.memory_space<vmem>>, vector<1x128xf32>
    %c0_9 = arith.constant 0 : index
    %c0_10 = arith.constant 0 : index
    %9 = vector.load %arg11[%c0_9, %c0_10] : memref<2x32xf32, #tpu.memory_space<vmem>>, vector<2x32xf32>
    %c0_11 = arith.constant 0 : index
    %c0_12 = arith.constant 0 : index
    %10 = vector.load %arg12[%c0_11, %c0_12] : memref<2x32xf32, #tpu.memory_space<vmem>>, vector<2x32xf32>
    %c0_i32_13 = arith.constant 0 : i32
    %c2_i32 = arith.constant 2 : i32
    %11 = arith.muli %c0_i32_13, %c2_i32 : i32
    %12 = arith.index_cast %11 : i32 to index
    %c0_14 = arith.constant 0 : index
    %13 = vector.load %arg13[%12, %c0_14] : memref<16x128xf32, #tpu.memory_space<vmem>>, vector<2x128xf32>
    %14 = vector.broadcast %8 : vector<1x128xf32> to vector<2x128xf32>
    %15 = arith.addf %13, %14 : vector<2x128xf32>
    %16 = arith.truncf %9 : vector<2x32xf32> to vector<2x32xbf16>
    %c0_15 = arith.constant 0 : index
    %c0_16 = arith.constant 0 : index
    %17 = vector.load %arg4[%c0_15, %c0_16] : memref<32x128xbf16, #tpu.memory_space<vmem>>, vector<32x128xbf16>
    %cst_17 = arith.constant dense<0.000000e+00> : vector<2x128xf32>
    %18 = tpu.matmul %16, %17, %cst_17 {dimension_numbers = #tpu.dot_dimension_numbers<[1], [0], [0], [1], [0, 0, 1, 1], [], []>} : vector<2x32xbf16>, vector<32x128xbf16>, vector<2x128xf32> -> vector<2x128xf32>
    %19 = arith.addf %15, %18 : vector<2x128xf32>
    %20 = vector.extract_strided_slice %19 {offsets = [0, 0], sizes = [2, 32], strides = [1, 1]} : vector<2x128xf32> to vector<2x32xf32>
    %21 = arith.negf %20 : vector<2x32xf32>
    %22 = math.exp %21 : vector<2x32xf32>
    %cst_18 = arith.constant 1.000000e+00 : f32
    %23 = vector.broadcast %cst_18 : f32 to vector<2x32xf32>
    %24 = arith.addf %23, %22 : vector<2x32xf32>
    %25 = arith.divf %23, %24 : vector<2x32xf32>
    %26 = vector.extract_strided_slice %19 {offsets = [0, 32], sizes = [2, 32], strides = [1, 1]} : vector<2x128xf32> to vector<2x32xf32>
    %27 = arith.negf %26 : vector<2x32xf32>
    %28 = math.exp %27 : vector<2x32xf32>
    %cst_19 = arith.constant 1.000000e+00 : f32
    %29 = vector.broadcast %cst_19 : f32 to vector<2x32xf32>
    %30 = arith.addf %29, %28 : vector<2x32xf32>
    %31 = arith.divf %29, %30 : vector<2x32xf32>
    %32 = vector.extract_strided_slice %19 {offsets = [0, 64], sizes = [2, 32], strides = [1, 1]} : vector<2x128xf32> to vector<2x32xf32>
    %33 = math.tanh %32 : vector<2x32xf32>
    %34 = vector.extract_strided_slice %19 {offsets = [0, 96], sizes = [2, 32], strides = [1, 1]} : vector<2x128xf32> to vector<2x32xf32>
    %35 = arith.negf %34 : vector<2x32xf32>
    %36 = math.exp %35 : vector<2x32xf32>
    %cst_20 = arith.constant 1.000000e+00 : f32
    %37 = vector.broadcast %cst_20 : f32 to vector<2x32xf32>
    %38 = arith.addf %37, %36 : vector<2x32xf32>
    %39 = arith.divf %37, %38 : vector<2x32xf32>
    %40 = arith.mulf %31, %10 : vector<2x32xf32>
    %41 = arith.mulf %25, %33 : vector<2x32xf32>
    %42 = arith.addf %40, %41 : vector<2x32xf32>
    %43 = math.tanh %42 : vector<2x32xf32>
    %44 = arith.mulf %39, %43 : vector<2x32xf32>
    %45 = arith.truncf %44 : vector<2x32xf32> to vector<2x32xbf16>
    %c0_21 = arith.constant 0 : index
    %46 = arith.index_cast %c0_i32_13 : i32 to index
    %c0_22 = arith.constant 0 : index
    %c0_23 = arith.constant 0 : index
    %47 = vector.load %arg8[%c0_21, %46, %c0_22, %c0_23] : memref<1x8x2x32xbf16, #tpu.memory_space<vmem>>, vector<1x1x2x32xbf16>
    %48 = vector.shape_cast %47 : vector<1x1x2x32xbf16> to vector<2x32xbf16>
    %49 = vector.shape_cast %45 : vector<2x32xbf16> to vector<1x1x2x32xbf16>
    tpu.vector_store %arg8[%c0_21, %46, %c0_22, %c0_23], %49 {strides = array<i32>} : memref<1x8x2x32xbf16, #tpu.memory_space<vmem>>, vector<1x1x2x32xbf16>,
    %c1_i32 = arith.constant 1 : i32
    %c2_i32_24 = arith.constant 2 : i32
    %50 = arith.muli %c1_i32, %c2_i32_24 : i32
    %51 = arith.index_cast %50 : i32 to index
    %c0_25 = arith.constant 0 : index
    %52 = vector.load %arg13[%51, %c0_25] : memref<16x128xf32, #tpu.memory_space<vmem>>, vector<2x128xf32>
    %53 = vector.broadcast %8 : vector<1x128xf32> to vector<2x128xf32>
    %54 = arith.addf %52, %53 : vector<2x128xf32>
    %55 = arith.truncf %44 : vector<2x32xf32> to vector<2x32xbf16>
    %c0_26 = arith.constant 0 : index
    %c0_27 = arith.constant 0 : index
    %56 = vector.load %arg4[%c0_26, %c0_27] : memref<32x128xbf16, #tpu.memory_space<vmem>>, vector<32x128xbf16>
    %cst_28 = arith.constant dense<0.000000e+00> : vector<2x128xf32>
    %57 = tpu.matmul %55, %56, %cst_28 {dimension_numbers = #tpu.dot_dimension_numbers<[1], [0], [0], [1], [0, 0, 1, 1], [], []>} : vector<2x32xbf16>, vector<32x128xbf16>, vector<2x128xf32> -> vector<2x128xf32>
    %58 = arith.addf %54, %57 : vector<2x128xf32>
    %59 = vector.extract_strided_slice %58 {offsets = [0, 0], sizes = [2, 32], strides = [1, 1]} : vector<2x128xf32> to vector<2x32xf32>
    %60 = arith.negf %59 : vector<2x32xf32>
    %61 = math.exp %60 : vector<2x32xf32>
    %cst_29 = arith.constant 1.000000e+00 : f32
    %62 = vector.broadcast %cst_29 : f32 to vector<2x32xf32>
    %63 = arith.addf %62, %61 : vector<2x32xf32>
    %64 = arith.divf %62, %63 : vector<2x32xf32>
    %65 = vector.extract_strided_slice %58 {offsets = [0, 32], sizes = [2, 32], strides = [1, 1]} : vector<2x128xf32> to vector<2x32xf32>
    %66 = arith.negf %65 : vector<2x32xf32>
    %67 = math.exp %66 : vector<2x32xf32>
    %cst_30 = arith.constant 1.000000e+00 : f32
    %68 = vector.broadcast %cst_30 : f32 to vector<2x32xf32>
    %69 = arith.addf %68, %67 : vector<2x32xf32>
    %70 = arith.divf %68, %69 : vector<2x32xf32>
    %71 = vector.extract_strided_slice %58 {offsets = [0, 64], sizes = [2, 32], strides = [1, 1]} : vector<2x128xf32> to vector<2x32xf32>
    %72 = math.tanh %71 : vector<2x32xf32>
    %73 = vector.extract_strided_slice %58 {offsets = [0, 96], sizes = [2, 32], strides = [1, 1]} : vector<2x128xf32> to vector<2x32xf32>
    %74 = arith.negf %73 : vector<2x32xf32>
    %75 = math.exp %74 : vector<2x32xf32>
    %cst_31 = arith.constant 1.000000e+00 : f32
    %76 = vector.broadcast %cst_31 : f32 to vector<2x32xf32>
    %77 = arith.addf %76, %75 : vector<2x32xf32>
    %78 = arith.divf %76, %77 : vector<2x32xf32>
    %79 = arith.mulf %70, %42 : vector<2x32xf32>
    %80 = arith.mulf %64, %72 : vector<2x32xf32>
    %81 = arith.addf %79, %80 : vector<2x32xf32>
    %82 = math.tanh %81 : vector<2x32xf32>
    %83 = arith.mulf %78, %82 : vector<2x32xf32>
    %84 = arith.truncf %83 : vector<2x32xf32> to vector<2x32xbf16>
    %c0_32 = arith.constant 0 : index
    %85 = arith.index_cast %c1_i32 : i32 to index
    %c0_33 = arith.constant 0 : index
    %c0_34 = arith.constant 0 : index
    %86 = vector.load %arg8[%c0_32, %85, %c0_33, %c0_34] : memref<1x8x2x32xbf16, #tpu.memory_space<vmem>>, vector<1x1x2x32xbf16>
    %87 = vector.shape_cast %86 : vector<1x1x2x32xbf16> to vector<2x32xbf16>
    %88 = vector.shape_cast %84 : vector<2x32xbf16> to vector<1x1x2x32xbf16>
    tpu.vector_store %arg8[%c0_32, %85, %c0_33, %c0_34], %88 {strides = array<i32>} : memref<1x8x2x32xbf16, #tpu.memory_space<vmem>>, vector<1x1x2x32xbf16>,
    %c2_i32_35 = arith.constant 2 : i32
    %c2_i32_36 = arith.constant 2 : i32
    %89 = arith.muli %c2_i32_35, %c2_i32_36 : i32
    %90 = arith.index_cast %89 : i32 to index
    %c0_37 = arith.constant 0 : index
    %91 = vector.load %arg13[%90, %c0_37] : memref<16x128xf32, #tpu.memory_space<vmem>>, vector<2x128xf32>
    %92 = vector.broadcast %8 : vector<1x128xf32> to vector<2x128xf32>
    %93 = arith.addf %91, %92 : vector<2x128xf32>
    %94 = arith.truncf %83 : vector<2x32xf32> to vector<2x32xbf16>
    %c0_38 = arith.constant 0 : index
    %c0_39 = arith.constant 0 : index
    %95 = vector.load %arg4[%c0_38, %c0_39] : memref<32x128xbf16, #tpu.memory_space<vmem>>, vector<32x128xbf16>
    %cst_40 = arith.constant dense<0.000000e+00> : vector<2x128xf32>
    %96 = tpu.matmul %94, %95, %cst_40 {dimension_numbers = #tpu.dot_dimension_numbers<[1], [0], [0], [1], [0, 0, 1, 1], [], []>} : vector<2x32xbf16>, vector<32x128xbf16>, vector<2x128xf32> -> vector<2x128xf32>
    %97 = arith.addf %93, %96 : vector<2x128xf32>
    %98 = vector.extract_strided_slice %97 {offsets = [0, 0], sizes = [2, 32], strides = [1, 1]} : vector<2x128xf32> to vector<2x32xf32>
    %99 = arith.negf %98 : vector<2x32xf32>
    %100 = math.exp %99 : vector<2x32xf32>
    %cst_41 = arith.constant 1.000000e+00 : f32
    %101 = vector.broadcast %cst_41 : f32 to vector<2x32xf32>
    %102 = arith.addf %101, %100 : vector<2x32xf32>
    %103 = arith.divf %101, %102 : vector<2x32xf32>
    %104 = vector.extract_strided_slice %97 {offsets = [0, 32], sizes = [2, 32], strides = [1, 1]} : vector<2x128xf32> to vector<2x32xf32>
    %105 = arith.negf %104 : vector<2x32xf32>
    %106 = math.exp %105 : vector<2x32xf32>
    %cst_42 = arith.constant 1.000000e+00 : f32
    %107 = vector.broadcast %cst_42 : f32 to vector<2x32xf32>
    %108 = arith.addf %107, %106 : vector<2x32xf32>
    %109 = arith.divf %107, %108 : vector<2x32xf32>
    %110 = vector.extract_strided_slice %97 {offsets = [0, 64], sizes = [2, 32], strides = [1, 1]} : vector<2x128xf32> to vector<2x32xf32>
    %111 = math.tanh %110 : vector<2x32xf32>
    %112 = vector.extract_strided_slice %97 {offsets = [0, 96], sizes = [2, 32], strides = [1, 1]} : vector<2x128xf32> to vector<2x32xf32>
    %113 = arith.negf %112 : vector<2x32xf32>
    %114 = math.exp %113 : vector<2x32xf32>
    %cst_43 = arith.constant 1.000000e+00 : f32
    %115 = vector.broadcast %cst_43 : f32 to vector<2x32xf32>
    %116 = arith.addf %115, %114 : vector<2x32xf32>
    %117 = arith.divf %115, %116 : vector<2x32xf32>
    %118 = arith.mulf %109, %81 : vector<2x32xf32>
    %119 = arith.mulf %103, %111 : vector<2x32xf32>
    %120 = arith.addf %118, %119 : vector<2x32xf32>
    %121 = math.tanh %120 : vector<2x32xf32>
    %122 = arith.mulf %117, %121 : vector<2x32xf32>
    %123 = arith.truncf %122 : vector<2x32xf32> to vector<2x32xbf16>
    %c0_44 = arith.constant 0 : index
    %124 = arith.index_cast %c2_i32_35 : i32 to index
    %c0_45 = arith.constant 0 : index
    %c0_46 = arith.constant 0 : index
    %125 = vector.load %arg8[%c0_44, %124, %c0_45, %c0_46] : memref<1x8x2x32xbf16, #tpu.memory_space<vmem>>, vector<1x1x2x32xbf16>
    %126 = vector.shape_cast %125 : vector<1x1x2x32xbf16> to vector<2x32xbf16>
    %127 = vector.shape_cast %123 : vector<2x32xbf16> to vector<1x1x2x32xbf16>
    tpu.vector_store %arg8[%c0_44, %124, %c0_45, %c0_46], %127 {strides = array<i32>} : memref<1x8x2x32xbf16, #tpu.memory_space<vmem>>, vector<1x1x2x32xbf16>,
    %c3_i32 = arith.constant 3 : i32
    %c2_i32_47 = arith.constant 2 : i32
    %128 = arith.muli %c3_i32, %c2_i32_47 : i32
    %129 = arith.index_cast %128 : i32 to index
    %c0_48 = arith.constant 0 : index
    %130 = vector.load %arg13[%129, %c0_48] : memref<16x128xf32, #tpu.memory_space<vmem>>, vector<2x128xf32>
    %131 = vector.broadcast %8 : vector<1x128xf32> to vector<2x128xf32>
    %132 = arith.addf %130, %131 : vector<2x128xf32>
    %133 = arith.truncf %122 : vector<2x32xf32> to vector<2x32xbf16>
    %c0_49 = arith.constant 0 : index
    %c0_50 = arith.constant 0 : index
    %134 = vector.load %arg4[%c0_49, %c0_50] : memref<32x128xbf16, #tpu.memory_space<vmem>>, vector<32x128xbf16>
    %cst_51 = arith.constant dense<0.000000e+00> : vector<2x128xf32>
    %135 = tpu.matmul %133, %134, %cst_51 {dimension_numbers = #tpu.dot_dimension_numbers<[1], [0], [0], [1], [0, 0, 1, 1], [], []>} : vector<2x32xbf16>, vector<32x128xbf16>, vector<2x128xf32> -> vector<2x128xf32>
    %136 = arith.addf %132, %135 : vector<2x128xf32>
    %137 = vector.extract_strided_slice %136 {offsets = [0, 0], sizes = [2, 32], strides = [1, 1]} : vector<2x128xf32> to vector<2x32xf32>
    %138 = arith.negf %137 : vector<2x32xf32>
    %139 = math.exp %138 : vector<2x32xf32>
    %cst_52 = arith.constant 1.000000e+00 : f32
    %140 = vector.broadcast %cst_52 : f32 to vector<2x32xf32>
    %141 = arith.addf %140, %139 : vector<2x32xf32>
    %142 = arith.divf %140, %141 : vector<2x32xf32>
    %143 = vector.extract_strided_slice %136 {offsets = [0, 32], sizes = [2, 32], strides = [1, 1]} : vector<2x128xf32> to vector<2x32xf32>
    %144 = arith.negf %143 : vector<2x32xf32>
    %145 = math.exp %144 : vector<2x32xf32>
    %cst_53 = arith.constant 1.000000e+00 : f32
    %146 = vector.broadcast %cst_53 : f32 to vector<2x32xf32>
    %147 = arith.addf %146, %145 : vector<2x32xf32>
    %148 = arith.divf %146, %147 : vector<2x32xf32>
    %149 = vector.extract_strided_slice %136 {offsets = [0, 64], sizes = [2, 32], strides = [1, 1]} : vector<2x128xf32> to vector<2x32xf32>
    %150 = math.tanh %149 : vector<2x32xf32>
    %151 = vector.extract_strided_slice %136 {offsets = [0, 96], sizes = [2, 32], strides = [1, 1]} : vector<2x128xf32> to vector<2x32xf32>
    %152 = arith.negf %151 : vector<2x32xf32>
    %153 = math.exp %152 : vector<2x32xf32>
    %cst_54 = arith.constant 1.000000e+00 : f32
    %154 = vector.broadcast %cst_54 : f32 to vector<2x32xf32>
    %155 = arith.addf %154, %153 : vector<2x32xf32>
    %156 = arith.divf %154, %155 : vector<2x32xf32>
    %157 = arith.mulf %148, %120 : vector<2x32xf32>
    %158 = arith.mulf %142, %150 : vector<2x32xf32>
    %159 = arith.addf %157, %158 : vector<2x32xf32>
    %160 = math.tanh %159 : vector<2x32xf32>
    %161 = arith.mulf %156, %160 : vector<2x32xf32>
    %162 = arith.truncf %161 : vector<2x32xf32> to vector<2x32xbf16>
    %c0_55 = arith.constant 0 : index
    %163 = arith.index_cast %c3_i32 : i32 to index
    %c0_56 = arith.constant 0 : index
    %c0_57 = arith.constant 0 : index
    %164 = vector.load %arg8[%c0_55, %163, %c0_56, %c0_57] : memref<1x8x2x32xbf16, #tpu.memory_space<vmem>>, vector<1x1x2x32xbf16>
    %165 = vector.shape_cast %164 : vector<1x1x2x32xbf16> to vector<2x32xbf16>
    %166 = vector.shape_cast %162 : vector<2x32xbf16> to vector<1x1x2x32xbf16>
    tpu.vector_store %arg8[%c0_55, %163, %c0_56, %c0_57], %166 {strides = array<i32>} : memref<1x8x2x32xbf16, #tpu.memory_space<vmem>>, vector<1x1x2x32xbf16>,
    %c4_i32 = arith.constant 4 : i32
    %c2_i32_58 = arith.constant 2 : i32
    %167 = arith.muli %c4_i32, %c2_i32_58 : i32
    %168 = arith.index_cast %167 : i32 to index
    %c0_59 = arith.constant 0 : index
    %169 = vector.load %arg13[%168, %c0_59] : memref<16x128xf32, #tpu.memory_space<vmem>>, vector<2x128xf32>
    %170 = vector.broadcast %8 : vector<1x128xf32> to vector<2x128xf32>
    %171 = arith.addf %169, %170 : vector<2x128xf32>
    %172 = arith.truncf %161 : vector<2x32xf32> to vector<2x32xbf16>
    %c0_60 = arith.constant 0 : index
    %c0_61 = arith.constant 0 : index
    %173 = vector.load %arg4[%c0_60, %c0_61] : memref<32x128xbf16, #tpu.memory_space<vmem>>, vector<32x128xbf16>
    %cst_62 = arith.constant dense<0.000000e+00> : vector<2x128xf32>
    %174 = tpu.matmul %172, %173, %cst_62 {dimension_numbers = #tpu.dot_dimension_numbers<[1], [0], [0], [1], [0, 0, 1, 1], [], []>} : vector<2x32xbf16>, vector<32x128xbf16>, vector<2x128xf32> -> vector<2x128xf32>
    %175 = arith.addf %171, %174 : vector<2x128xf32>
    %176 = vector.extract_strided_slice %175 {offsets = [0, 0], sizes = [2, 32], strides = [1, 1]} : vector<2x128xf32> to vector<2x32xf32>
    %177 = arith.negf %176 : vector<2x32xf32>
    %178 = math.exp %177 : vector<2x32xf32>
    %cst_63 = arith.constant 1.000000e+00 : f32
    %179 = vector.broadcast %cst_63 : f32 to vector<2x32xf32>
    %180 = arith.addf %179, %178 : vector<2x32xf32>
    %181 = arith.divf %179, %180 : vector<2x32xf32>
    %182 = vector.extract_strided_slice %175 {offsets = [0, 32], sizes = [2, 32], strides = [1, 1]} : vector<2x128xf32> to vector<2x32xf32>
    %183 = arith.negf %182 : vector<2x32xf32>
    %184 = math.exp %183 : vector<2x32xf32>
    %cst_64 = arith.constant 1.000000e+00 : f32
    %185 = vector.broadcast %cst_64 : f32 to vector<2x32xf32>
    %186 = arith.addf %185, %184 : vector<2x32xf32>
    %187 = arith.divf %185, %186 : vector<2x32xf32>
    %188 = vector.extract_strided_slice %175 {offsets = [0, 64], sizes = [2, 32], strides = [1, 1]} : vector<2x128xf32> to vector<2x32xf32>
    %189 = math.tanh %188 : vector<2x32xf32>
    %190 = vector.extract_strided_slice %175 {offsets = [0, 96], sizes = [2, 32], strides = [1, 1]} : vector<2x128xf32> to vector<2x32xf32>
    %191 = arith.negf %190 : vector<2x32xf32>
    %192 = math.exp %191 : vector<2x32xf32>
    %cst_65 = arith.constant 1.000000e+00 : f32
    %193 = vector.broadcast %cst_65 : f32 to vector<2x32xf32>
    %194 = arith.addf %193, %192 : vector<2x32xf32>
    %195 = arith.divf %193, %194 : vector<2x32xf32>
    %196 = arith.mulf %187, %159 : vector<2x32xf32>
    %197 = arith.mulf %181, %189 : vector<2x32xf32>
    %198 = arith.addf %196, %197 : vector<2x32xf32>
    %199 = math.tanh %198 : vector<2x32xf32>
    %200 = arith.mulf %195, %199 : vector<2x32xf32>
    %201 = arith.truncf %200 : vector<2x32xf32> to vector<2x32xbf16>
    %c0_66 = arith.constant 0 : index
    %202 = arith.index_cast %c4_i32 : i32 to index
    %c0_67 = arith.constant 0 : index
    %c0_68 = arith.constant 0 : index
    %203 = vector.load %arg8[%c0_66, %202, %c0_67, %c0_68] : memref<1x8x2x32xbf16, #tpu.memory_space<vmem>>, vector<1x1x2x32xbf16>
    %204 = vector.shape_cast %203 : vector<1x1x2x32xbf16> to vector<2x32xbf16>
    %205 = vector.shape_cast %201 : vector<2x32xbf16> to vector<1x1x2x32xbf16>
    tpu.vector_store %arg8[%c0_66, %202, %c0_67, %c0_68], %205 {strides = array<i32>} : memref<1x8x2x32xbf16, #tpu.memory_space<vmem>>, vector<1x1x2x32xbf16>,
    %c5_i32 = arith.constant 5 : i32
    %c2_i32_69 = arith.constant 2 : i32
    %206 = arith.muli %c5_i32, %c2_i32_69 : i32
    %207 = arith.index_cast %206 : i32 to index
    %c0_70 = arith.constant 0 : index
    %208 = vector.load %arg13[%207, %c0_70] : memref<16x128xf32, #tpu.memory_space<vmem>>, vector<2x128xf32>
    %209 = vector.broadcast %8 : vector<1x128xf32> to vector<2x128xf32>
    %210 = arith.addf %208, %209 : vector<2x128xf32>
    %211 = arith.truncf %200 : vector<2x32xf32> to vector<2x32xbf16>
    %c0_71 = arith.constant 0 : index
    %c0_72 = arith.constant 0 : index
    %212 = vector.load %arg4[%c0_71, %c0_72] : memref<32x128xbf16, #tpu.memory_space<vmem>>, vector<32x128xbf16>
    %cst_73 = arith.constant dense<0.000000e+00> : vector<2x128xf32>
    %213 = tpu.matmul %211, %212, %cst_73 {dimension_numbers = #tpu.dot_dimension_numbers<[1], [0], [0], [1], [0, 0, 1, 1], [], []>} : vector<2x32xbf16>, vector<32x128xbf16>, vector<2x128xf32> -> vector<2x128xf32>
    %214 = arith.addf %210, %213 : vector<2x128xf32>
    %215 = vector.extract_strided_slice %214 {offsets = [0, 0], sizes = [2, 32], strides = [1, 1]} : vector<2x128xf32> to vector<2x32xf32>
    %216 = arith.negf %215 : vector<2x32xf32>
    %217 = math.exp %216 : vector<2x32xf32>
    %cst_74 = arith.constant 1.000000e+00 : f32
    %218 = vector.broadcast %cst_74 : f32 to vector<2x32xf32>
    %219 = arith.addf %218, %217 : vector<2x32xf32>
    %220 = arith.divf %218, %219 : vector<2x32xf32>
    %221 = vector.extract_strided_slice %214 {offsets = [0, 32], sizes = [2, 32], strides = [1, 1]} : vector<2x128xf32> to vector<2x32xf32>
    %222 = arith.negf %221 : vector<2x32xf32>
    %223 = math.exp %222 : vector<2x32xf32>
    %cst_75 = arith.constant 1.000000e+00 : f32
    %224 = vector.broadcast %cst_75 : f32 to vector<2x32xf32>
    %225 = arith.addf %224, %223 : vector<2x32xf32>
    %226 = arith.divf %224, %225 : vector<2x32xf32>
    %227 = vector.extract_strided_slice %214 {offsets = [0, 64], sizes = [2, 32], strides = [1, 1]} : vector<2x128xf32> to vector<2x32xf32>
    %228 = math.tanh %227 : vector<2x32xf32>
    %229 = vector.extract_strided_slice %214 {offsets = [0, 96], sizes = [2, 32], strides = [1, 1]} : vector<2x128xf32> to vector<2x32xf32>
    %230 = arith.negf %229 : vector<2x32xf32>
    %231 = math.exp %230 : vector<2x32xf32>
    %cst_76 = arith.constant 1.000000e+00 : f32
    %232 = vector.broadcast %cst_76 : f32 to vector<2x32xf32>
    %233 = arith.addf %232, %231 : vector<2x32xf32>
    %234 = arith.divf %232, %233 : vector<2x32xf32>
    %235 = arith.mulf %226, %198 : vector<2x32xf32>
    %236 = arith.mulf %220, %228 : vector<2x32xf32>
    %237 = arith.addf %235, %236 : vector<2x32xf32>
    %238 = math.tanh %237 : vector<2x32xf32>
    %239 = arith.mulf %234, %238 : vector<2x32xf32>
    %240 = arith.truncf %239 : vector<2x32xf32> to vector<2x32xbf16>
    %c0_77 = arith.constant 0 : index
    %241 = arith.index_cast %c5_i32 : i32 to index
    %c0_78 = arith.constant 0 : index
    %c0_79 = arith.constant 0 : index
    %242 = vector.load %arg8[%c0_77, %241, %c0_78, %c0_79] : memref<1x8x2x32xbf16, #tpu.memory_space<vmem>>, vector<1x1x2x32xbf16>
    %243 = vector.shape_cast %242 : vector<1x1x2x32xbf16> to vector<2x32xbf16>
    %244 = vector.shape_cast %240 : vector<2x32xbf16> to vector<1x1x2x32xbf16>
    tpu.vector_store %arg8[%c0_77, %241, %c0_78, %c0_79], %244 {strides = array<i32>} : memref<1x8x2x32xbf16, #tpu.memory_space<vmem>>, vector<1x1x2x32xbf16>,
    %c6_i32 = arith.constant 6 : i32
    %c2_i32_80 = arith.constant 2 : i32
    %245 = arith.muli %c6_i32, %c2_i32_80 : i32
    %246 = arith.index_cast %245 : i32 to index
    %c0_81 = arith.constant 0 : index
    %247 = vector.load %arg13[%246, %c0_81] : memref<16x128xf32, #tpu.memory_space<vmem>>, vector<2x128xf32>
    %248 = vector.broadcast %8 : vector<1x128xf32> to vector<2x128xf32>
    %249 = arith.addf %247, %248 : vector<2x128xf32>
    %250 = arith.truncf %239 : vector<2x32xf32> to vector<2x32xbf16>
    %c0_82 = arith.constant 0 : index
    %c0_83 = arith.constant 0 : index
    %251 = vector.load %arg4[%c0_82, %c0_83] : memref<32x128xbf16, #tpu.memory_space<vmem>>, vector<32x128xbf16>
    %cst_84 = arith.constant dense<0.000000e+00> : vector<2x128xf32>
    %252 = tpu.matmul %250, %251, %cst_84 {dimension_numbers = #tpu.dot_dimension_numbers<[1], [0], [0], [1], [0, 0, 1, 1], [], []>} : vector<2x32xbf16>, vector<32x128xbf16>, vector<2x128xf32> -> vector<2x128xf32>
    %253 = arith.addf %249, %252 : vector<2x128xf32>
    %254 = vector.extract_strided_slice %253 {offsets = [0, 0], sizes = [2, 32], strides = [1, 1]} : vector<2x128xf32> to vector<2x32xf32>
    %255 = arith.negf %254 : vector<2x32xf32>
    %256 = math.exp %255 : vector<2x32xf32>
    %cst_85 = arith.constant 1.000000e+00 : f32
    %257 = vector.broadcast %cst_85 : f32 to vector<2x32xf32>
    %258 = arith.addf %257, %256 : vector<2x32xf32>
    %259 = arith.divf %257, %258 : vector<2x32xf32>
    %260 = vector.extract_strided_slice %253 {offsets = [0, 32], sizes = [2, 32], strides = [1, 1]} : vector<2x128xf32> to vector<2x32xf32>
    %261 = arith.negf %260 : vector<2x32xf32>
    %262 = math.exp %261 : vector<2x32xf32>
    %cst_86 = arith.constant 1.000000e+00 : f32
    %263 = vector.broadcast %cst_86 : f32 to vector<2x32xf32>
    %264 = arith.addf %263, %262 : vector<2x32xf32>
    %265 = arith.divf %263, %264 : vector<2x32xf32>
    %266 = vector.extract_strided_slice %253 {offsets = [0, 64], sizes = [2, 32], strides = [1, 1]} : vector<2x128xf32> to vector<2x32xf32>
    %267 = math.tanh %266 : vector<2x32xf32>
    %268 = vector.extract_strided_slice %253 {offsets = [0, 96], sizes = [2, 32], strides = [1, 1]} : vector<2x128xf32> to vector<2x32xf32>
    %269 = arith.negf %268 : vector<2x32xf32>
    %270 = math.exp %269 : vector<2x32xf32>
    %cst_87 = arith.constant 1.000000e+00 : f32
    %271 = vector.broadcast %cst_87 : f32 to vector<2x32xf32>
    %272 = arith.addf %271, %270 : vector<2x32xf32>
    %273 = arith.divf %271, %272 : vector<2x32xf32>
    %274 = arith.mulf %265, %237 : vector<2x32xf32>
    %275 = arith.mulf %259, %267 : vector<2x32xf32>
    %276 = arith.addf %274, %275 : vector<2x32xf32>
    %277 = math.tanh %276 : vector<2x32xf32>
    %278 = arith.mulf %273, %277 : vector<2x32xf32>
    %279 = arith.truncf %278 : vector<2x32xf32> to vector<2x32xbf16>
    %c0_88 = arith.constant 0 : index
    %280 = arith.index_cast %c6_i32 : i32 to index
    %c0_89 = arith.constant 0 : index
    %c0_90 = arith.constant 0 : index
    %281 = vector.load %arg8[%c0_88, %280, %c0_89, %c0_90] : memref<1x8x2x32xbf16, #tpu.memory_space<vmem>>, vector<1x1x2x32xbf16>
    %282 = vector.shape_cast %281 : vector<1x1x2x32xbf16> to vector<2x32xbf16>
    %283 = vector.shape_cast %279 : vector<2x32xbf16> to vector<1x1x2x32xbf16>
    tpu.vector_store %arg8[%c0_88, %280, %c0_89, %c0_90], %283 {strides = array<i32>} : memref<1x8x2x32xbf16, #tpu.memory_space<vmem>>, vector<1x1x2x32xbf16>,
    %c7_i32 = arith.constant 7 : i32
    %c2_i32_91 = arith.constant 2 : i32
    %284 = arith.muli %c7_i32, %c2_i32_91 : i32
    %285 = arith.index_cast %284 : i32 to index
    %c0_92 = arith.constant 0 : index
    %286 = vector.load %arg13[%285, %c0_92] : memref<16x128xf32, #tpu.memory_space<vmem>>, vector<2x128xf32>
    %287 = vector.broadcast %8 : vector<1x128xf32> to vector<2x128xf32>
    %288 = arith.addf %286, %287 : vector<2x128xf32>
    %289 = arith.truncf %278 : vector<2x32xf32> to vector<2x32xbf16>
    %c0_93 = arith.constant 0 : index
    %c0_94 = arith.constant 0 : index
    %290 = vector.load %arg4[%c0_93, %c0_94] : memref<32x128xbf16, #tpu.memory_space<vmem>>, vector<32x128xbf16>
    %cst_95 = arith.constant dense<0.000000e+00> : vector<2x128xf32>
    %291 = tpu.matmul %289, %290, %cst_95 {dimension_numbers = #tpu.dot_dimension_numbers<[1], [0], [0], [1], [0, 0, 1, 1], [], []>} : vector<2x32xbf16>, vector<32x128xbf16>, vector<2x128xf32> -> vector<2x128xf32>
    %292 = arith.addf %288, %291 : vector<2x128xf32>
    %293 = vector.extract_strided_slice %292 {offsets = [0, 0], sizes = [2, 32], strides = [1, 1]} : vector<2x128xf32> to vector<2x32xf32>
    %294 = arith.negf %293 : vector<2x32xf32>
    %295 = math.exp %294 : vector<2x32xf32>
    %cst_96 = arith.constant 1.000000e+00 : f32
    %296 = vector.broadcast %cst_96 : f32 to vector<2x32xf32>
    %297 = arith.addf %296, %295 : vector<2x32xf32>
    %298 = arith.divf %296, %297 : vector<2x32xf32>
    %299 = vector.extract_strided_slice %292 {offsets = [0, 32], sizes = [2, 32], strides = [1, 1]} : vector<2x128xf32> to vector<2x32xf32>
    %300 = arith.negf %299 : vector<2x32xf32>
    %301 = math.exp %300 : vector<2x32xf32>
    %cst_97 = arith.constant 1.000000e+00 : f32
    %302 = vector.broadcast %cst_97 : f32 to vector<2x32xf32>
    %303 = arith.addf %302, %301 : vector<2x32xf32>
    %304 = arith.divf %302, %303 : vector<2x32xf32>
    %305 = vector.extract_strided_slice %292 {offsets = [0, 64], sizes = [2, 32], strides = [1, 1]} : vector<2x128xf32> to vector<2x32xf32>
    %306 = math.tanh %305 : vector<2x32xf32>
    %307 = vector.extract_strided_slice %292 {offsets = [0, 96], sizes = [2, 32], strides = [1, 1]} : vector<2x128xf32> to vector<2x32xf32>
    %308 = arith.negf %307 : vector<2x32xf32>
    %309 = math.exp %308 : vector<2x32xf32>
    %cst_98 = arith.constant 1.000000e+00 : f32
    %310 = vector.broadcast %cst_98 : f32 to vector<2x32xf32>
    %311 = arith.addf %310, %309 : vector<2x32xf32>
    %312 = arith.divf %310, %311 : vector<2x32xf32>
    %313 = arith.mulf %304, %276 : vector<2x32xf32>
    %314 = arith.mulf %298, %306 : vector<2x32xf32>
    %315 = arith.addf %313, %314 : vector<2x32xf32>
    %316 = math.tanh %315 : vector<2x32xf32>
    %317 = arith.mulf %312, %316 : vector<2x32xf32>
    %318 = arith.truncf %317 : vector<2x32xf32> to vector<2x32xbf16>
    %c0_99 = arith.constant 0 : index
    %319 = arith.index_cast %c7_i32 : i32 to index
    %c0_100 = arith.constant 0 : index
    %c0_101 = arith.constant 0 : index
    %320 = vector.load %arg8[%c0_99, %319, %c0_100, %c0_101] : memref<1x8x2x32xbf16, #tpu.memory_space<vmem>>, vector<1x1x2x32xbf16>
    %321 = vector.shape_cast %320 : vector<1x1x2x32xbf16> to vector<2x32xbf16>
    %322 = vector.shape_cast %318 : vector<2x32xbf16> to vector<1x1x2x32xbf16>
    tpu.vector_store %arg8[%c0_99, %319, %c0_100, %c0_101], %322 {strides = array<i32>} : memref<1x8x2x32xbf16, #tpu.memory_space<vmem>>, vector<1x1x2x32xbf16>,
    %c8_i32 = arith.constant 8 : i32
    %c0_102 = arith.constant 0 : index
    %c0_103 = arith.constant 0 : index
    %323 = vector.load %arg11[%c0_102, %c0_103] : memref<2x32xf32, #tpu.memory_space<vmem>>, vector<2x32xf32>
    tpu.vector_store %arg11[%c0_102, %c0_103], %317 {strides = array<i32>} : memref<2x32xf32, #tpu.memory_space<vmem>>, vector<2x32xf32>,
    %c0_104 = arith.constant 0 : index
    %c0_105 = arith.constant 0 : index
    %324 = vector.load %arg12[%c0_104, %c0_105] : memref<2x32xf32, #tpu.memory_space<vmem>>, vector<2x32xf32>
    tpu.vector_store %arg12[%c0_104, %c0_105], %315 {strides = array<i32>} : memref<2x32xf32, #tpu.memory_space<vmem>>, vector<2x32xf32>,
    %c0_i32_106 = arith.constant 0 : i32
    %325 = arith.cmpi eq, %arg1, %c0_i32_106 : i32
    %326 = arith.extui %325 : i1 to i32
    %c0_i32_107 = arith.constant 0 : i32
    %327 = arith.cmpi ne, %326, %c0_i32_107 : i32
    scf.if %327 {
      %c0_108 = arith.constant 0 : index
      %c0_109 = arith.constant 0 : index
      %c0_110 = arith.constant 0 : index
      %328 = vector.load %arg9[%c0_108, %c0_109, %c0_110] : memref<1x2x32xf32, #tpu.memory_space<vmem>>, vector<1x2x32xf32>
      %329 = vector.shape_cast %328 : vector<1x2x32xf32> to vector<2x32xf32>
      %330 = vector.shape_cast %317 : vector<2x32xf32> to vector<1x2x32xf32>
      tpu.vector_store %arg9[%c0_108, %c0_109, %c0_110], %330 {strides = array<i32>} : memref<1x2x32xf32, #tpu.memory_space<vmem>>, vector<1x2x32xf32>,
      %c0_111 = arith.constant 0 : index
      %c0_112 = arith.constant 0 : index
      %c0_113 = arith.constant 0 : index
      %331 = vector.load %arg10[%c0_111, %c0_112, %c0_113] : memref<1x2x32xf32, #tpu.memory_space<vmem>>, vector<1x2x32xf32>
      %332 = vector.shape_cast %331 : vector<1x2x32xf32> to vector<2x32xf32>
      %333 = vector.shape_cast %315 : vector<2x32xf32> to vector<1x2x32xf32>
      tpu.vector_store %arg10[%c0_111, %c0_112, %c0_113], %333 {strides = array<i32>} : memref<1x2x32xf32, #tpu.memory_space<vmem>>, vector<1x2x32xf32>,
    } else {
    }
    return
  }
  func.func @transform_0(%arg0: i32, %arg1: i32) -> (i32, i32, i32) {
    %c0_i32 = arith.constant 0 : i32
    %c0_i32_0 = arith.constant 0 : i32
    return %arg0, %arg1, %c0_i32 : i32, i32, i32
  }
  func.func @transform_1(%arg0: i32, %arg1: i32) -> (i32, i32) {
    %c0_i32 = arith.constant 0 : i32
    %c0_i32_0 = arith.constant 0 : i32
    %c0_i32_1 = arith.constant 0 : i32
    return %c0_i32, %c0_i32_0 : i32, i32
  }
  func.func @transform_2(%arg0: i32, %arg1: i32) -> (i32, i32) {
    %c0_i32 = arith.constant 0 : i32
    %c0_i32_0 = arith.constant 0 : i32
    %c0_i32_1 = arith.constant 0 : i32
    return %c0_i32, %c0_i32_0 : i32, i32
  }
  func.func @transform_3(%arg0: i32, %arg1: i32) -> (i32, i32) {
    %c0_i32 = arith.constant 0 : i32
    %c0_i32_0 = arith.constant 0 : i32
    %c0_i32_1 = arith.constant 0 : i32
    return %c0_i32, %c0_i32_0 : i32, i32
  }
  func.func @transform_4(%arg0: i32, %arg1: i32) -> (i32, i32, i32) {
    %c0_i32 = arith.constant 0 : i32
    %c0_i32_0 = arith.constant 0 : i32
    %c0_i32_1 = arith.constant 0 : i32
    return %arg0, %c0_i32, %c0_i32_0 : i32, i32, i32
  }
  func.func @transform_5(%arg0: i32, %arg1: i32) -> (i32, i32, i32) {
    %c0_i32 = arith.constant 0 : i32
    %c0_i32_0 = arith.constant 0 : i32
    %c0_i32_1 = arith.constant 0 : i32
    return %arg0, %c0_i32, %c0_i32_0 : i32, i32, i32
  }
  func.func @transform_6(%arg0: i32, %arg1: i32) -> (i32, i32, i32, i32) {
    %c0_i32 = arith.constant 0 : i32
    %c0_i32_0 = arith.constant 0 : i32
    %c0_i32_1 = arith.constant 0 : i32
    return %arg0, %arg1, %c0_i32, %c0_i32_0 : i32, i32, i32, i32
  }
  func.func @transform_7(%arg0: i32, %arg1: i32) -> (i32, i32, i32) {
    %c0_i32 = arith.constant 0 : i32
    %c0_i32_0 = arith.constant 0 : i32
    %c0_i32_1 = arith.constant 0 : i32
    return %arg0, %c0_i32, %c0_i32_0 : i32, i32, i32
  }
  func.func @transform_8(%arg0: i32, %arg1: i32) -> (i32, i32, i32) {
    %c0_i32 = arith.constant 0 : i32
    %c0_i32_0 = arith.constant 0 : i32
    %c0_i32_1 = arith.constant 0 : i32
    return %arg0, %c0_i32, %c0_i32_0 : i32, i32, i32
  }
}

</mosaic_0001>

<llo_original>
// kernel: tpu_custom_call.1
$region0: #{tpu_custom_call.1}
  #allocation0 [shape = 'u32[]', space=smem, size = 0x4, offset = 0x4, fixed_abs, tag = 'smem constant byte address 0x4 - core index']
  #allocation1 [shape = 'u32[144,128]{1,0:T(1,128)}', space=vmem, size = 0x12000, scoped, tag = 'internal scratch']
  #allocation2 [shape = 'f32[2,32]{1,0:T(2,128)}', space=vmem, size = 0x400, scoped, tag = 'scratch operand']
  #allocation3 [shape = 'f32[2,32]{1,0:T(2,128)}', space=vmem, size = 0x400, scoped, tag = 'scratch operand']
  #allocation4 [shape = 'f32[16,128]{1,0:T(8,128)}', space=vmem, size = 0x2000, scoped, tag = 'scratch operand']
  %s0 = inlined_call_operand.hbm [shape: bf16[1,16,16], index: 0, kind: input, shape index: {}]
  %s1 = inlined_call_operand.hbm [shape: bf16[16,128], index: 1, kind: input, shape index: {}]
  %s2 = inlined_call_operand.hbm [shape: bf16[32,128], index: 2, kind: input, shape index: {}]
  %s3 = inlined_call_operand.vmem [shape: f32[1,128], index: 3, kind: input, shape index: {}]
  %s4 = inlined_call_operand.vmem [shape: f32[1,2,32], index: 4, kind: input, shape index: {}]
  %s5 = inlined_call_operand.vmem [shape: f32[1,2,32], index: 5, kind: input, shape index: {}]
  %s6 = inlined_call_operand.hbm [shape: bf16[1,8,2,32], index: 6, kind: output, shape index: {0}]
  %s7 = inlined_call_operand.hbm [shape: f32[1,2,32], index: 7, kind: output, shape index: {1}]
  %s8 = inlined_call_operand.hbm [shape: f32[1,2,32], index: 8, kind: output, shape index: {2}]
  %9 = xla_tuple %s6, %s7, %s8
  %s10 = sld [smem:[#allocation0]]
  $region70: #{tpu_custom_call.1} parent=0
    _
  %s12 = ssub.s32 1, %s10
  %s13 = scalar_select 0, %s12, %s10
  $region1: #{tpu_custom_call.1} parent=0
    #allocation5 [shape = 'u8[4096]{0}', space=vmem, size = 0x1000, scoped, tag = 'input window, operand 0, single buffered']
    #allocation6 [shape = 's32[1]{0}', space=sflag, size = 0x4, scoped, tag = 'scoped memory for tpu_custom_call.1']
    #allocation7 [shape = 's32[1]{0}', space=sflag, size = 0x4, scoped, tag = 'scoped memory for tpu_custom_call.1']
    #allocation8 [shape = 'u8[4096]{0}', space=vmem, size = 0x1000, scoped, tag = 'input window, operand 1, single buffered']
    #allocation9 [shape = 's32[1]{0}', space=sflag, size = 0x4, scoped, tag = 'scoped memory for tpu_custom_call.1']
    #allocation10 [shape = 'u8[8192]{0}', space=vmem, size = 0x2000, scoped, tag = 'input window, operand 2, single buffered']
    #allocation11 [shape = 'u8[4096]{0}', space=vmem, size = 0x1000, scoped, tag = 'output window, operand 0, single buffered']
    #allocation12 [shape = 'u8[1024]{0}', space=vmem, size = 0x400, scoped, tag = 'output window, operand 1, single buffered']
    #allocation13 [shape = 's32[1]{0}', space=sflag, size = 0x4, scoped, tag = 'scoped memory for tpu_custom_call.1']
    #allocation14 [shape = 'u8[1024]{0}', space=vmem, size = 0x400, scoped, tag = 'output window, operand 2, single buffered']
    %14 = vsyncpa [#allocation6], 0
    %15 = vsyncpa [#allocation9], 0
    %16 = vsyncpa [#allocation7], 0
    %17 = vsyncpa [#allocation13], 0
    // Predicated region
    $region2: #{tpu_custom_call.1} parent=1 // pred_check
      _
    $region3: #{tpu_custom_call.1} parent=1 // pred_check_branch
      %19 = sbr.rel (0) target = $region5
    $region4: #{tpu_custom_call.1} parent=1 // pred_region
      %s21 = ssub.s32 128, 128
      %22 = vsyncadd [#allocation6], %s21
      %s23 = sshll.u32 [#allocation5], 4
      %s24 = int_to_ptr.vmem [resolvable:$true] %s23
      %29 = dma.hbm_to_vmem [thread:$0]  %s0, 128, %s24, [#allocation6], 64, 64, 4
    $region5: #{tpu_custom_call.1} parent=1 // pred_fallthru
      _
    // Predicated region
    $region6: #{tpu_custom_call.1} parent=1 // pred_check
      _
    $region7: #{tpu_custom_call.1} parent=1 // pred_check_branch
      %31 = sbr.rel (0) target = $region9
    $region8: #{tpu_custom_call.1} parent=1 // pred_region
      %s33 = ssub.s32 128, 128
      %34 = vsyncadd [#allocation9], %s33
      %s35 = sshll.u32 [#allocation8], 4
      %s36 = int_to_ptr.vmem [resolvable:$true] %s35
      %41 = dma.hbm_to_vmem [thread:$0]  %s1, 128, %s36, [#allocation9], 64, 64, 4
    $region9: #{tpu_custom_call.1} parent=1 // pred_fallthru
      _
    // Predicated region
    $region10: #{tpu_custom_call.1} parent=1 // pred_check
      _
    $region11: #{tpu_custom_call.1} parent=1 // pred_check_branch
      %43 = sbr.rel (0) target = $region13
    $region12: #{tpu_custom_call.1} parent=1 // pred_region
      %s45 = ssub.s32 256, 256
      %46 = vsyncadd [#allocation9], %s45
      %s47 = sshll.u32 [#allocation10], 4
      %s48 = int_to_ptr.vmem [resolvable:$true] %s47
      %53 = dma.hbm_to_vmem [thread:$0]  %s2, 256, %s48, [#allocation9], 64, 64, 4
    $region13: #{tpu_custom_call.1} parent=1 // pred_fallthru
      _
    // Predicated region
    $region14: #{tpu_custom_call.1} parent=1 // pred_check
      _
    $region15: #{tpu_custom_call.1} parent=1 // pred_check_branch
      %55 = sbr.rel (0) target = $region17
    $region16: #{tpu_custom_call.1} parent=1 // pred_region
      _
    $region17: #{tpu_custom_call.1} parent=1 // pred_fallthru
      _
    // Predicated region
    $region18: #{tpu_custom_call.1} parent=1 // pred_check
      _
    $region19: #{tpu_custom_call.1} parent=1 // pred_check_branch
      %57 = sbr.rel (0) target = $region21
    $region20: #{tpu_custom_call.1} parent=1 // pred_region
      _
    $region21: #{tpu_custom_call.1} parent=1 // pred_fallthru
      _
    // Predicated region
    $region22: #{tpu_custom_call.1} parent=1 // pred_check
      _
    $region23: #{tpu_custom_call.1} parent=1 // pred_check_branch
      %59 = sbr.rel (0) target = $region25
    $region24: #{tpu_custom_call.1} parent=1 // pred_region
      _
    $region25: #{tpu_custom_call.1} parent=1 // pred_fallthru
      _
    // Predicated region
    $region26: #{tpu_custom_call.1} parent=1 // pred_check
      _
    $region27: #{tpu_custom_call.1} parent=1 // pred_check_branch
      %61 = sbr.rel (0) target = $region29
    $region28: #{tpu_custom_call.1} parent=1 // pred_region
      %62 = dma.done [#allocation6], 128
    $region29: #{tpu_custom_call.1} parent=1 // pred_fallthru
      _
    // Predicated region
    $region30: #{tpu_custom_call.1} parent=1 // pred_check
      _
    $region31: #{tpu_custom_call.1} parent=1 // pred_check_branch
      %64 = sbr.rel (0) target = $region33
    $region32: #{tpu_custom_call.1} parent=1 // pred_region
      %65 = dma.done [#allocation9], 128
    $region33: #{tpu_custom_call.1} parent=1 // pred_fallthru
      _
    // Predicated region
    $region34: #{tpu_custom_call.1} parent=1 // pred_check
      _
    $region35: #{tpu_custom_call.1} parent=1 // pred_check_branch
      %67 = sbr.rel (0) target = $region37
    $region36: #{tpu_custom_call.1} parent=1 // pred_region
      %68 = dma.done [#allocation9], 256
    $region37: #{tpu_custom_call.1} parent=1 // pred_fallthru
      _
    %p70 = scmp.eq.s32.totalorder 0, 0
    // Predicated region
    $region38: #{tpu_custom_call.1} parent=1 // pred_check
      %p71 = pneg %p70
    $region39: #{tpu_custom_call.1} parent=1 // pred_check_branch
      %73 = sbr.rel (%p71) target = $region41
    $region40: #{tpu_custom_call.1} parent=1 // pred_region
      %v74 = vld [vmem:[%s4] sm:$0x3]
      %vm75 = vcmask 254976
      %76 = vst.msk [vmem:[#allocation2] sm:$0x3] %vm75, %v74
      %v77 = vld [vmem:[%s5] sm:$0x3]
      %78 = vst.msk [vmem:[#allocation3] sm:$0x3] %vm75, %v77
    $region41: #{tpu_custom_call.1} parent=1 // pred_fallthru
      _
    %v79 = vld [vmem:[#allocation5] sm:$0xf]
    %v80 = vld [vmem:[#allocation5 + $0x4] sm:$0xf]
    %v81 = vld [vmem:[#allocation8] sm:$0xf]
    %v82 = vld [vmem:[#allocation8 + $0x4] sm:$0xf]
    %v85 = vunpack.c.l.b16 %v79
    %v86 = vunpack.c.l.b16 %v80
    %v87 = vpack.c.b16 %v86, %v85
    %v90 = vunpack.c.l.b16 %v81
    %v91 = vunpack.c.l.b16 %v82
    %v92 = vpack.c.b16 %v91, %v90
    %vm94 = vcmask 130048
    %v96 = vsel %vm94, %v87, 0
    %98 = vmatprep.subr.bf16.mxu0 0
    %99 = vmatpush1.bf16.msra.mxu0 0
    %100 = vmatprep.subr.bf16.mxu0 0
    %101 = vmatpush1.bf16.msra.mxu0 0
    %102 = vmatprep.subr.bf16.mxu0 0
    %103 = vmatpush1.bf16.msra.mxu0 0
    %104 = vmatprep.subr.bf16.mxu0 0
    %105 = vmatpush1.bf16.msra.mxu0 0
    %106 = vmatprep.subr.bf16.mxu0 0
    %107 = vmatpush1.bf16.msra.mxu0 0
    %108 = vmatprep.subr.bf16.mxu0 0
    %109 = vmatpush1.bf16.msra.mxu0 0
    %110 = vmatprep.subr.bf16.mxu0 0
    %111 = vmatpush1.bf16.msra.mxu0 0
    %112 = vmatprep.subr.bf16.mxu0 0
    %113 = vmatpush1.bf16.msra.mxu0 %v92
    %114 = vmatprep.subr.bf16.mxu0 0
    %115 = vmatpush2.bf16.msra.mxu0 0
    %116 = vmatprep.subr.bf16.mxu0 0
    %117 = vmatpush2.bf16.msra.mxu0 0
    %118 = vmatprep.subr.bf16.mxu0 0
    %119 = vmatpush2.bf16.msra.mxu0 0
    %120 = vmatprep.subr.bf16.mxu0 0
    %121 = vmatpush2.bf16.msra.mxu0 0
    %122 = vmatprep.subr.bf16.mxu0 0
    %123 = vmatpush2.bf16.msra.mxu0 0
    %124 = vmatprep.subr.bf16.mxu0 0
    %125 = vmatpush2.bf16.msra.mxu0 0
    %126 = vmatprep.subr.bf16.mxu0 0
    %127 = vmatpush2.bf16.msra.mxu0 0
    %128 = vmatprep.subr.bf16.mxu0 0
    %129 = vmatpush2.bf16.msra.mxu0 0
    %130 = vmatprep.mubr.bf16.mxu0 0
    %131 = vmatmul.mubr.bf16.gmra.mxu0 %v96
    %v132 = vpop.f32.mrf.mxu0
    %v133 = vadd.f32 0.0, %v132
    %v134 = vpop.f32.mrf.mxu0
    %v135 = vpop.f32.mrf.mxu0
    %v136 = vadd.f32 0.0, %v135
    %v137 = vpop.f32.mrf.mxu0
    %138 = vdwg.mxu0
    %139 = vst [vmem:[#allocation4] sm:$0xff] %v133
    %140 = vst [vmem:[#allocation4 + $0x8] sm:$0xff] %v136
    %v141 = vld [vmem:[%s3] sm:$0x1]
    %v142 = vld [vmem:[#allocation2] sm:$0x3]
    %v143 = vld [vmem:[#allocation3] sm:$0x3]
    %v144 = vld [vmem:[#allocation4] sm:$0x3]
    %v146 = vlaneseq
    %v147 = vshrl.u32 %v146, 7
    %v148 = vsub.s32 0, %v147
    %v149 = vrot.slane %v141, %v148
    %v151 = vadd.f32 %v144, %v149
    %v152 = vpack.c.bf16 %v142, %v142
    %v153 = vld [vmem:[#allocation10] sm:$0xf]
    %v154 = vld [vmem:[#allocation10 + $0x4] sm:$0xf]
    %v155 = vld [vmem:[#allocation10 + $0x8] sm:$0xf]
    %v156 = vld [vmem:[#allocation10 + $0xc] sm:$0xf]
    %v161 = vunpack.c.l.b16 %v153
    %v162 = vunpack.c.l.b16 %v154
    %v163 = vunpack.c.l.b16 %v155
    %v164 = vunpack.c.l.b16 %v156
    %v165 = vpack.c.b16 %v162, %v161
    %v166 = vpack.c.b16 %v164, %v163
    %vm169 = vcmask 261120
    %v171 = vsel %vm169, %v152, 0
    %173 = vmatprep.subr.bf16.mxu0 0
    %174 = vmatpush1.bf16.msra.mxu0 0
    %175 = vmatprep.subr.bf16.mxu0 0
    %176 = vmatpush1.bf16.msra.mxu0 0
    %177 = vmatprep.subr.bf16.mxu0 0
    %178 = vmatpush1.bf16.msra.mxu0 0
    %179 = vmatprep.subr.bf16.mxu0 0
    %180 = vmatpush1.bf16.msra.mxu0 0
    %181 = vmatprep.subr.bf16.mxu0 0
    %182 = vmatpush1.bf16.msra.mxu0 0
    %183 = vmatprep.subr.bf16.mxu0 0
    %184 = vmatpush1.bf16.msra.mxu0 0
    %185 = vmatprep.subr.bf16.mxu0 0
    %186 = vmatpush1.bf16.msra.mxu0 %v166
    %187 = vmatprep.subr.bf16.mxu0 0
    %188 = vmatpush1.bf16.msra.mxu0 %v165
    %189 = vmatprep.subr.bf16.mxu0 0
    %190 = vmatpush2.bf16.msra.mxu0 0
    %191 = vmatprep.subr.bf16.mxu0 0
    %192 = vmatpush2.bf16.msra.mxu0 0
    %193 = vmatprep.subr.bf16.mxu0 0
    %194 = vmatpush2.bf16.msra.mxu0 0
    %195 = vmatprep.subr.bf16.mxu0 0
    %196 = vmatpush2.bf16.msra.mxu0 0
    %197 = vmatprep.subr.bf16.mxu0 0
    %198 = vmatpush2.bf16.msra.mxu0 0
    %199 = vmatprep.subr.bf16.mxu0 0
    %200 = vmatpush2.bf16.msra.mxu0 0
    %201 = vmatprep.subr.bf16.mxu0 0
    %202 = vmatpush2.bf16.msra.mxu0 0
    %203 = vmatprep.subr.bf16.mxu0 0
    %204 = vmatpush2.bf16.msra.mxu0 0
    %205 = vmatprep.mubr.bf16.mxu0 0
    %206 = vmatmul.mubr.bf16.gmra.mxu0 %v171
    %v207 = vpop.f32.mrf.mxu0
    %v208 = vadd.f32 0.0, %v207
    %v209 = vpop.f32.mrf.mxu0
    %v210 = vpop.f32.mrf.mxu0
    %v211 = vpop.f32.mrf.mxu0
    %212 = vdwg.mxu0
    %v213 = vadd.f32 %v151, %v208
    %v214 = vxor.u32 %v213, 2147483648
    %v215 = vmul.f32 %v214, 1.442695
    %v216 = vpow.pop %v215
    %v217 = vadd.f32 %v216, 1.0
    %v218 = vrcp.pop %v217
    %v219 = vmul.f32 1.0, %v218
    %v220 = vtanh.pop %v213
    %222 = vrot.lane.b32.xlu0 %v143, 32
    %v223 = vpop.permute.xlu0 %222
    %v225 = vmul.f32 %v219, %v223
    %227 = vrot.lane.b32.xlu0 %v220, 64
    %v228 = vpop.permute.xlu0 %227
    %v230 = vmul.f32 %v219, %v228
    %232 = vrot.lane.b32.xlu0 %v230, 32
    %v233 = vpop.permute.xlu0 %232
    %v235 = vadd.f32 %v225, %v233
    %v236 = vtanh.pop %v235
    %238 = vrot.lane.b32.xlu0 %v236, 64
    %v239 = vpop.permute.xlu0 %238
    %v241 = vmul.f32 %v219, %v239
    %v242 = vpack.c.bf16 %v241, %v241
    %v245 = vunpack.c.l.s4 1966171168
    %v246 = vunpack.c.0.s8 %v245
    %v247 = vlaneseq
    %v248 = vshrl.u32 %v247, 7
    %v249 = vsub.s32 %v246, %v248
    %v250 = vrot.slane %v242, %v249
    %v252 = vunpack.c.l.s4 1966171168
    %v253 = vunpack.c.0.s8 %v252
    %v254 = vlaneseq
    %v255 = vshrl.u32 %v254, 7
    %v256 = vsub.s32 %v253, %v255
    %v257 = vrot.slane %v250, %v256
    %258 = vrot.lane.b32.xlu0 %v257, 32
    %v259 = vpop.permute.xlu0 %258
    %vm261 = vcmask 253952
    %262 = vst.msk [vmem:[#allocation11] sm:$0x1] %vm261, %v259
    %v263 = vld [vmem:[#allocation4 + $0x2] sm:$0x3]
    %v264 = vadd.f32 %v263, %v149
    %v265 = vld [vmem:[#allocation10] sm:$0xf]
    %v266 = vld [vmem:[#allocation10 + $0x4] sm:$0xf]
    %v267 = vld [vmem:[#allocation10 + $0x8] sm:$0xf]
    %v268 = vld [vmem:[#allocation10 + $0xc] sm:$0xf]
    %269 = vrot.lane.b32.xlu0 %v242, 32
    %v270 = vpop.permute.xlu0 %269
    %v275 = vunpack.c.l.b16 %v265
    %v276 = vunpack.c.l.b16 %v266
    %v277 = vunpack.c.l.b16 %v267
    %v278 = vunpack.c.l.b16 %v268
    %v279 = vpack.c.b16 %v276, %v275
    %v280 = vpack.c.b16 %v278, %v277
    %v284 = vsel %vm169, %v270, 0
    %286 = vmatprep.subr.bf16.mxu0 0
    %287 = vmatpush1.bf16.msra.mxu0 0
    %288 = vmatprep.subr.bf16.mxu0 0
    %289 = vmatpush1.bf16.msra.mxu0 0
    %290 = vmatprep.subr.bf16.mxu0 0
    %291 = vmatpush1.bf16.msra.mxu0 0
    %292 = vmatprep.subr.bf16.mxu0 0
    %293 = vmatpush1.bf16.msra.mxu0 0
    %294 = vmatprep.subr.bf16.mxu0 0
    %295 = vmatpush1.bf16.msra.mxu0 0
    %296 = vmatprep.subr.bf16.mxu0 0
    %297 = vmatpush1.bf16.msra.mxu0 0
    %298 = vmatprep.subr.bf16.mxu0 0
    %299 = vmatpush1.bf16.msra.mxu0 %v280
    %300 = vmatprep.subr.bf16.mxu0 0
    %301 = vmatpush1.bf16.msra.mxu0 %v279
    %302 = vmatprep.subr.bf16.mxu0 0
    %303 = vmatpush2.bf16.msra.mxu0 0
    %304 = vmatprep.subr.bf16.mxu0 0
    %305 = vmatpush2.bf16.msra.mxu0 0
    %306 = vmatprep.subr.bf16.mxu0 0
    %307 = vmatpush2.bf16.msra.mxu0 0
    %308 = vmatprep.subr.bf16.mxu0 0
    %309 = vmatpush2.bf16.msra.mxu0 0
    %310 = vmatprep.subr.bf16.mxu0 0
    %311 = vmatpush2.bf16.msra.mxu0 0
    %312 = vmatprep.subr.bf16.mxu0 0
    %313 = vmatpush2.bf16.msra.mxu0 0
    %314 = vmatprep.subr.bf16.mxu0 0
    %315 = vmatpush2.bf16.msra.mxu0 0
    %316 = vmatprep.subr.bf16.mxu0 0
    %317 = vmatpush2.bf16.msra.mxu0 0
    %318 = vmatprep.mubr.bf16.mxu0 0
    %319 = vmatmul.mubr.bf16.gmra.mxu0 %v284
    %v320 = vpop.f32.mrf.mxu0
    %v321 = vadd.f32 0.0, %v320
    %v322 = vpop.f32.mrf.mxu0
    %v323 = vpop.f32.mrf.mxu0
    %v324 = vpop.f32.mrf.mxu0
    %325 = vdwg.mxu0
    %v326 = vadd.f32 %v264, %v321
    %v327 = vxor.u32 %v326, 2147483648
    %v328 = vmul.f32 %v327, 1.442695
    %v329 = vpow.pop %v328
    %v330 = vadd.f32 %v329, 1.0
    %v331 = vrcp.pop %v330
    %v332 = vmul.f32 1.0, %v331
    %v333 = vtanh.pop %v326
    %v334 = vmul.f32 %v332, %v235
    %336 = vrot.lane.b32.xlu0 %v333, 64
    %v337 = vpop.permute.xlu0 %336
    %v339 = vmul.f32 %v332, %v337
    %341 = vrot.lane.b32.xlu0 %v339, 32
    %v342 = vpop.permute.xlu0 %341
    %v344 = vadd.f32 %v334, %v342
    %v345 = vtanh.pop %v344
    %347 = vrot.lane.b32.xlu0 %v345, 64
    %v348 = vpop.permute.xlu0 %347
    %v350 = vmul.f32 %v332, %v348
    %v351 = vpack.c.bf16 %v350, %v350
    %v354 = vunpack.c.l.s4 1966171168
    %v355 = vunpack.c.0.s8 %v354
    %v356 = vlaneseq
    %v357 = vshrl.u32 %v356, 7
    %v358 = vsub.s32 %v355, %v357
    %v359 = vrot.slane %v351, %v358
    %v361 = vunpack.c.l.s4 1966171168
    %v362 = vunpack.c.0.s8 %v361
    %v363 = vlaneseq
    %v364 = vshrl.u32 %v363, 7
    %v365 = vsub.s32 %v362, %v364
    %v366 = vrot.slane %v359, %v365
    %367 = vrot.lane.b32.xlu0 %v366, 32
    %v368 = vpop.permute.xlu0 %367
    %s370 = scalar_lea.vmem [#allocation11], 1
    %371 = vst.msk [vmem:[%s370] sm:$0x1] %vm261, %v368
    %v372 = vld [vmem:[#allocation4 + $0x4] sm:$0x3]
    %v373 = vadd.f32 %v372, %v149
    %v374 = vld [vmem:[#allocation10] sm:$0xf]
    %v375 = vld [vmem:[#allocation10 + $0x4] sm:$0xf]
    %v376 = vld [vmem:[#allocation10 + $0x8] sm:$0xf]
    %v377 = vld [vmem:[#allocation10 + $0xc] sm:$0xf]
    %378 = vrot.lane.b32.xlu0 %v351, 32
    %v379 = vpop.permute.xlu0 %378
    %v384 = vunpack.c.l.b16 %v374
    %v385 = vunpack.c.l.b16 %v375
    %v386 = vunpack.c.l.b16 %v376
    %v387 = vunpack.c.l.b16 %v377
    %v388 = vpack.c.b16 %v385, %v384
    %v389 = vpack.c.b16 %v387, %v386
    %v393 = vsel %vm169, %v379, 0
    %395 = vmatprep.subr.bf16.mxu0 0
    %396 = vmatpush1.bf16.msra.mxu0 0
    %397 = vmatprep.subr.bf16.mxu0 0
    %398 = vmatpush1.bf16.msra.mxu0 0
    %399 = vmatprep.subr.bf16.mxu0 0
    %400 = vmatpush1.bf16.msra.mxu0 0
    %401 = vmatprep.subr.bf16.mxu0 0
    %402 = vmatpush1.bf16.msra.mxu0 0
    %403 = vmatprep.subr.bf16.mxu0 0
    %404 = vmatpush1.bf16.msra.mxu0 0
    %405 = vmatprep.subr.bf16.mxu0 0
    %406 = vmatpush1.bf16.msra.mxu0 0
    %407 = vmatprep.subr.bf16.mxu0 0
    %408 = vmatpush1.bf16.msra.mxu0 %v389
    %409 = vmatprep.subr.bf16.mxu0 0
    %410 = vmatpush1.bf16.msra.mxu0 %v388
    %411 = vmatprep.subr.bf16.mxu0 0
    %412 = vmatpush2.bf16.msra.mxu0 0
    %413 = vmatprep.subr.bf16.mxu0 0
    %414 = vmatpush2.bf16.msra.mxu0 0
    %415 = vmatprep.subr.bf16.mxu0 0
    %416 = vmatpush2.bf16.msra.mxu0 0
    %417 = vmatprep.subr.bf16.mxu0 0
    %418 = vmatpush2.bf16.msra.mxu0 0
    %419 = vmatprep.subr.bf16.mxu0 0
    %420 = vmatpush2.bf16.msra.mxu0 0
    %421 = vmatprep.subr.bf16.mxu0 0
    %422 = vmatpush2.bf16.msra.mxu0 0
    %423 = vmatprep.subr.bf16.mxu0 0
    %424 = vmatpush2.bf16.msra.mxu0 0
    %425 = vmatprep.subr.bf16.mxu0 0
    %426 = vmatpush2.bf16.msra.mxu0 0
    %427 = vmatprep.mubr.bf16.mxu0 0
    %428 = vmatmul.mubr.bf16.gmra.mxu0 %v393
    %v429 = vpop.f32.mrf.mxu0
    %v430 = vadd.f32 0.0, %v429
    %v431 = vpop.f32.mrf.mxu0
    %v432 = vpop.f32.mrf.mxu0
    %v433 = vpop.f32.mrf.mxu0
    %434 = vdwg.mxu0
    %v435 = vadd.f32 %v373, %v430
    %v436 = vxor.u32 %v435, 2147483648
    %v437 = vmul.f32 %v436, 1.442695
    %v438 = vpow.pop %v437
    %v439 = vadd.f32 %v438, 1.0
    %v440 = vrcp.pop %v439
    %v441 = vmul.f32 1.0, %v440
    %v442 = vtanh.pop %v435
    %v443 = vmul.f32 %v441, %v344
    %445 = vrot.lane.b32.xlu0 %v442, 64
    %v446 = vpop.permute.xlu0 %445
    %v448 = vmul.f32 %v441, %v446
    %450 = vrot.lane.b32.xlu0 %v448, 32
    %v451 = vpop.permute.xlu0 %450
    %v453 = vadd.f32 %v443, %v451
    %v454 = vtanh.pop %v453
    %456 = vrot.lane.b32.xlu0 %v454, 64
    %v457 = vpop.permute.xlu0 %456
    %v459 = vmul.f32 %v441, %v457
    %v460 = vpack.c.bf16 %v459, %v459
    %v463 = vunpack.c.l.s4 1966171168
    %v464 = vunpack.c.0.s8 %v463
    %v465 = vlaneseq
    %v466 = vshrl.u32 %v465, 7
    %v467 = vsub.s32 %v464, %v466
    %v468 = vrot.slane %v460, %v467
    %v470 = vunpack.c.l.s4 1966171168
    %v471 = vunpack.c.0.s8 %v470
    %v472 = vlaneseq
    %v473 = vshrl.u32 %v472, 7
    %v474 = vsub.s32 %v471, %v473
    %v475 = vrot.slane %v468, %v474
    %476 = vrot.lane.b32.xlu0 %v475, 32
    %v477 = vpop.permute.xlu0 %476
    %s479 = scalar_lea.vmem [#allocation11], 2
    %480 = vst.msk [vmem:[%s479] sm:$0x1] %vm261, %v477
    %v481 = vld [vmem:[#allocation4 + $0x6] sm:$0x3]
    %v482 = vadd.f32 %v481, %v149
    %v483 = vld [vmem:[#allocation10] sm:$0xf]
    %v484 = vld [vmem:[#allocation10 + $0x4] sm:$0xf]
    %v485 = vld [vmem:[#allocation10 + $0x8] sm:$0xf]
    %v486 = vld [vmem:[#allocation10 + $0xc] sm:$0xf]
    %487 = vrot.lane.b32.xlu0 %v460, 32
    %v488 = vpop.permute.xlu0 %487
    %v493 = vunpack.c.l.b16 %v483
    %v494 = vunpack.c.l.b16 %v484
    %v495 = vunpack.c.l.b16 %v485
    %v496 = vunpack.c.l.b16 %v486
    %v497 = vpack.c.b16 %v494, %v493
    %v498 = vpack.c.b16 %v496, %v495
    %v502 = vsel %vm169, %v488, 0
    %504 = vmatprep.subr.bf16.mxu0 0
    %505 = vmatpush1.bf16.msra.mxu0 0
    %506 = vmatprep.subr.bf16.mxu0 0
    %507 = vmatpush1.bf16.msra.mxu0 0
    %508 = vmatprep.subr.bf16.mxu0 0
    %509 = vmatpush1.bf16.msra.mxu0 0
    %510 = vmatprep.subr.bf16.mxu0 0
    %511 = vmatpush1.bf16.msra.mxu0 0
    %512 = vmatprep.subr.bf16.mxu0 0
    %513 = vmatpush1.bf16.msra.mxu0 0
    %514 = vmatprep.subr.bf16.mxu0 0
    %515 = vmatpush1.bf16.msra.mxu0 0
    %516 = vmatprep.subr.bf16.mxu0 0
    %517 = vmatpush1.bf16.msra.mxu0 %v498
    %518 = vmatprep.subr.bf16.mxu0 0
    %519 = vmatpush1.bf16.msra.mxu0 %v497
    %520 = vmatprep.subr.bf16.mxu0 0
    %521 = vmatpush2.bf16.msra.mxu0 0
    %522 = vmatprep.subr.bf16.mxu0 0
    %523 = vmatpush2.bf16.msra.mxu0 0
    %524 = vmatprep.subr.bf16.mxu0 0
    %525 = vmatpush2.bf16.msra.mxu0 0
    %526 = vmatprep.subr.bf16.mxu0 0
    %527 = vmatpush2.bf16.msra.mxu0 0
    %528 = vmatprep.subr.bf16.mxu0 0
    %529 = vmatpush2.bf16.msra.mxu0 0
    %530 = vmatprep.subr.bf16.mxu0 0
    %531 = vmatpush2.bf16.msra.mxu0 0
    %532 = vmatprep.subr.bf16.mxu0 0
    %533 = vmatpush2.bf16.msra.mxu0 0
    %534 = vmatprep.subr.bf16.mxu0 0
    %535 = vmatpush2.bf16.msra.mxu0 0
    %536 = vmatprep.mubr.bf16.mxu0 0
    %537 = vmatmul.mubr.bf16.gmra.mxu0 %v502
    %v538 = vpop.f32.mrf.mxu0
    %v539 = vadd.f32 0.0, %v538
    %v540 = vpop.f32.mrf.mxu0
    %v541 = vpop.f32.mrf.mxu0
    %v542 = vpop.f32.mrf.mxu0
    %543 = vdwg.mxu0
    %v544 = vadd.f32 %v482, %v539
    %v545 = vxor.u32 %v544, 2147483648
    %v546 = vmul.f32 %v545, 1.442695
    %v547 = vpow.pop %v546
    %v548 = vadd.f32 %v547, 1.0
    %v549 = vrcp.pop %v548
    %v550 = vmul.f32 1.0, %v549
    %v551 = vtanh.pop %v544
    %v552 = vmul.f32 %v550, %v453
    %554 = vrot.lane.b32.xlu0 %v551, 64
    %v555 = vpop.permute.xlu0 %554
    %v557 = vmul.f32 %v550, %v555
    %559 = vrot.lane.b32.xlu0 %v557, 32
    %v560 = vpop.permute.xlu0 %559
    %v562 = vadd.f32 %v552, %v560
    %v563 = vtanh.pop %v562
    %565 = vrot.lane.b32.xlu0 %v563, 64
    %v566 = vpop.permute.xlu0 %565
    %v568 = vmul.f32 %v550, %v566
    %v569 = vpack.c.bf16 %v568, %v568
    %v572 = vunpack.c.l.s4 1966171168
    %v573 = vunpack.c.0.s8 %v572
    %v574 = vlaneseq
    %v575 = vshrl.u32 %v574, 7
    %v576 = vsub.s32 %v573, %v575
    %v577 = vrot.slane %v569, %v576
    %v579 = vunpack.c.l.s4 1966171168
    %v580 = vunpack.c.0.s8 %v579
    %v581 = vlaneseq
    %v582 = vshrl.u32 %v581, 7
    %v583 = vsub.s32 %v580, %v582
    %v584 = vrot.slane %v577, %v583
    %585 = vrot.lane.b32.xlu0 %v584, 32
    %v586 = vpop.permute.xlu0 %585
    %s588 = scalar_lea.vmem [#allocation11], 3
    %589 = vst.msk [vmem:[%s588] sm:$0x1] %vm261, %v586
    %v590 = vld [vmem:[#allocation4 + $0x8] sm:$0x3]
    %v591 = vadd.f32 %v590, %v149
    %v592 = vld [vmem:[#allocation10] sm:$0xf]
    %v593 = vld [vmem:[#allocation10 + $0x4] sm:$0xf]
    %v594 = vld [vmem:[#allocation10 + $0x8] sm:$0xf]
    %v595 = vld [vmem:[#allocation10 + $0xc] sm:$0xf]
    %596 = vrot.lane.b32.xlu0 %v569, 32
    %v597 = vpop.permute.xlu0 %596
    %v602 = vunpack.c.l.b16 %v592
    %v603 = vunpack.c.l.b16 %v593
    %v604 = vunpack.c.l.b16 %v594
    %v605 = vunpack.c.l.b16 %v595
    %v606 = vpack.c.b16 %v603, %v602
    %v607 = vpack.c.b16 %v605, %v604
    %v611 = vsel %vm169, %v597, 0
    %613 = vmatprep.subr.bf16.mxu0 0
    %614 = vmatpush1.bf16.msra.mxu0 0
    %615 = vmatprep.subr.bf16.mxu0 0
    %616 = vmatpush1.bf16.msra.mxu0 0
    %617 = vmatprep.subr.bf16.mxu0 0
    %618 = vmatpush1.bf16.msra.mxu0 0
    %619 = vmatprep.subr.bf16.mxu0 0
    %620 = vmatpush1.bf16.msra.mxu0 0
    %621 = vmatprep.subr.bf16.mxu0 0
    %622 = vmatpush1.bf16.msra.mxu0 0
    %623 = vmatprep.subr.bf16.mxu0 0
    %624 = vmatpush1.bf16.msra.mxu0 0
    %625 = vmatprep.subr.bf16.mxu0 0
    %626 = vmatpush1.bf16.msra.mxu0 %v607
    %627 = vmatprep.subr.bf16.mxu0 0
    %628 = vmatpush1.bf16.msra.mxu0 %v606
    %629 = vmatprep.subr.bf16.mxu0 0
    %630 = vmatpush2.bf16.msra.mxu0 0
    %631 = vmatprep.subr.bf16.mxu0 0
    %632 = vmatpush2.bf16.msra.mxu0 0
    %633 = vmatprep.subr.bf16.mxu0 0
    %634 = vmatpush2.bf16.msra.mxu0 0
    %635 = vmatprep.subr.bf16.mxu0 0
    %636 = vmatpush2.bf16.msra.mxu0 0
    %637 = vmatprep.subr.bf16.mxu0 0
    %638 = vmatpush2.bf16.msra.mxu0 0
    %639 = vmatprep.subr.bf16.mxu0 0
    %640 = vmatpush2.bf16.msra.mxu0 0
    %641 = vmatprep.subr.bf16.mxu0 0
    %642 = vmatpush2.bf16.msra.mxu0 0
    %643 = vmatprep.subr.bf16.mxu0 0
    %644 = vmatpush2.bf16.msra.mxu0 0
    %645 = vmatprep.mubr.bf16.mxu0 0
    %646 = vmatmul.mubr.bf16.gmra.mxu0 %v611
    %v647 = vpop.f32.mrf.mxu0
    %v648 = vadd.f32 0.0, %v647
    %v649 = vpop.f32.mrf.mxu0
    %v650 = vpop.f32.mrf.mxu0
    %v651 = vpop.f32.mrf.mxu0
    %652 = vdwg.mxu0
    %v653 = vadd.f32 %v591, %v648
    %v654 = vxor.u32 %v653, 2147483648
    %v655 = vmul.f32 %v654, 1.442695
    %v656 = vpow.pop %v655
    %v657 = vadd.f32 %v656, 1.0
    %v658 = vrcp.pop %v657
    %v659 = vmul.f32 1.0, %v658
    %v660 = vtanh.pop %v653
    %v661 = vmul.f32 %v659, %v562
    %663 = vrot.lane.b32.xlu0 %v660, 64
    %v664 = vpop.permute.xlu0 %663
    %v666 = vmul.f32 %v659, %v664
    %668 = vrot.lane.b32.xlu0 %v666, 32
    %v669 = vpop.permute.xlu0 %668
    %v671 = vadd.f32 %v661, %v669
    %v672 = vtanh.pop %v671
    %674 = vrot.lane.b32.xlu0 %v672, 64
    %v675 = vpop.permute.xlu0 %674
    %v677 = vmul.f32 %v659, %v675
    %v678 = vpack.c.bf16 %v677, %v677
    %v681 = vunpack.c.l.s4 1966171168
    %v682 = vunpack.c.0.s8 %v681
    %v683 = vlaneseq
    %v684 = vshrl.u32 %v683, 7
    %v685 = vsub.s32 %v682, %v684
    %v686 = vrot.slane %v678, %v685
    %v688 = vunpack.c.l.s4 1966171168
    %v689 = vunpack.c.0.s8 %v688
    %v690 = vlaneseq
    %v691 = vshrl.u32 %v690, 7
    %v692 = vsub.s32 %v689, %v691
    %v693 = vrot.slane %v686, %v692
    %694 = vrot.lane.b32.xlu0 %v693, 32
    %v695 = vpop.permute.xlu0 %694
    %s697 = scalar_lea.vmem [#allocation11], 4
    %698 = vst.msk [vmem:[%s697] sm:$0x1] %vm261, %v695
    %v699 = vld [vmem:[#allocation4 + $0xa] sm:$0x3]
    %v700 = vadd.f32 %v699, %v149
    %v701 = vld [vmem:[#allocation10] sm:$0xf]
    %v702 = vld [vmem:[#allocation10 + $0x4] sm:$0xf]
    %v703 = vld [vmem:[#allocation10 + $0x8] sm:$0xf]
    %v704 = vld [vmem:[#allocation10 + $0xc] sm:$0xf]
    %705 = vrot.lane.b32.xlu0 %v678, 32
    %v706 = vpop.permute.xlu0 %705
    %v711 = vunpack.c.l.b16 %v701
    %v712 = vunpack.c.l.b16 %v702
    %v713 = vunpack.c.l.b16 %v703
    %v714 = vunpack.c.l.b16 %v704
    %v715 = vpack.c.b16 %v712, %v711
    %v716 = vpack.c.b16 %v714, %v713
    %v720 = vsel %vm169, %v706, 0
    %722 = vmatprep.subr.bf16.mxu0 0
    %723 = vmatpush1.bf16.msra.mxu0 0
    %724 = vmatprep.subr.bf16.mxu0 0
    %725 = vmatpush1.bf16.msra.mxu0 0
    %726 = vmatprep.subr.bf16.mxu0 0
    %727 = vmatpush1.bf16.msra.mxu0 0
    %728 = vmatprep.subr.bf16.mxu0 0
    %729 = vmatpush1.bf16.msra.mxu0 0
    %730 = vmatprep.subr.bf16.mxu0 0
    %731 = vmatpush1.bf16.msra.mxu0 0
    %732 = vmatprep.subr.bf16.mxu0 0
    %733 = vmatpush1.bf16.msra.mxu0 0
    %734 = vmatprep.subr.bf16.mxu0 0
    %735 = vmatpush1.bf16.msra.mxu0 %v716
    %736 = vmatprep.subr.bf16.mxu0 0
    %737 = vmatpush1.bf16.msra.mxu0 %v715
    %738 = vmatprep.subr.bf16.mxu0 0
    %739 = vmatpush2.bf16.msra.mxu0 0
    %740 = vmatprep.subr.bf16.mxu0 0
    %741 = vmatpush2.bf16.msra.mxu0 0
    %742 = vmatprep.subr.bf16.mxu0 0
    %743 = vmatpush2.bf16.msra.mxu0 0
    %744 = vmatprep.subr.bf16.mxu0 0
    %745 = vmatpush2.bf16.msra.mxu0 0
    %746 = vmatprep.subr.bf16.mxu0 0
    %747 = vmatpush2.bf16.msra.mxu0 0
    %748 = vmatprep.subr.bf16.mxu0 0
    %749 = vmatpush2.bf16.msra.mxu0 0
    %750 = vmatprep.subr.bf16.mxu0 0
    %751 = vmatpush2.bf16.msra.mxu0 0
    %752 = vmatprep.subr.bf16.mxu0 0
    %753 = vmatpush2.bf16.msra.mxu0 0
    %754 = vmatprep.mubr.bf16.mxu0 0
    %755 = vmatmul.mubr.bf16.gmra.mxu0 %v720
    %v756 = vpop.f32.mrf.mxu0
    %v757 = vadd.f32 0.0, %v756
    %v758 = vpop.f32.mrf.mxu0
    %v759 = vpop.f32.mrf.mxu0
    %v760 = vpop.f32.mrf.mxu0
    %761 = vdwg.mxu0
    %v762 = vadd.f32 %v700, %v757
    %v763 = vxor.u32 %v762, 2147483648
    %v764 = vmul.f32 %v763, 1.442695
    %v765 = vpow.pop %v764
    %v766 = vadd.f32 %v765, 1.0
    %v767 = vrcp.pop %v766
    %v768 = vmul.f32 1.0, %v767
    %v769 = vtanh.pop %v762
    %v770 = vmul.f32 %v768, %v671
    %772 = vrot.lane.b32.xlu0 %v769, 64
    %v773 = vpop.permute.xlu0 %772
    %v775 = vmul.f32 %v768, %v773
    %777 = vrot.lane.b32.xlu0 %v775, 32
    %v778 = vpop.permute.xlu0 %777
    %v780 = vadd.f32 %v770, %v778
    %v781 = vtanh.pop %v780
    %783 = vrot.lane.b32.xlu0 %v781, 64
    %v784 = vpop.permute.xlu0 %783
    %v786 = vmul.f32 %v768, %v784
    %v787 = vpack.c.bf16 %v786, %v786
    %v790 = vunpack.c.l.s4 1966171168
    %v791 = vunpack.c.0.s8 %v790
    %v792 = vlaneseq
    %v793 = vshrl.u32 %v792, 7
    %v794 = vsub.s32 %v791, %v793
    %v795 = vrot.slane %v787, %v794
    %v797 = vunpack.c.l.s4 1966171168
    %v798 = vunpack.c.0.s8 %v797
    %v799 = vlaneseq
    %v800 = vshrl.u32 %v799, 7
    %v801 = vsub.s32 %v798, %v800
    %v802 = vrot.slane %v795, %v801
    %803 = vrot.lane.b32.xlu0 %v802, 32
    %v804 = vpop.permute.xlu0 %803
    %s806 = scalar_lea.vmem [#allocation11], 5
    %807 = vst.msk [vmem:[%s806] sm:$0x1] %vm261, %v804
    %v808 = vld [vmem:[#allocation4 + $0xc] sm:$0x3]
    %v809 = vadd.f32 %v808, %v149
    %v810 = vld [vmem:[#allocation10] sm:$0xf]
    %v811 = vld [vmem:[#allocation10 + $0x4] sm:$0xf]
    %v812 = vld [vmem:[#allocation10 + $0x8] sm:$0xf]
    %v813 = vld [vmem:[#allocation10 + $0xc] sm:$0xf]
    %814 = vrot.lane.b32.xlu0 %v787, 32
    %v815 = vpop.permute.xlu0 %814
    %v820 = vunpack.c.l.b16 %v810
    %v821 = vunpack.c.l.b16 %v811
    %v822 = vunpack.c.l.b16 %v812
    %v823 = vunpack.c.l.b16 %v813
    %v824 = vpack.c.b16 %v821, %v820
    %v825 = vpack.c.b16 %v823, %v822
    %v829 = vsel %vm169, %v815, 0
    %831 = vmatprep.subr.bf16.mxu0 0
    %832 = vmatpush1.bf16.msra.mxu0 0
    %833 = vmatprep.subr.bf16.mxu0 0
    %834 = vmatpush1.bf16.msra.mxu0 0
    %835 = vmatprep.subr.bf16.mxu0 0
    %836 = vmatpush1.bf16.msra.mxu0 0
    %837 = vmatprep.subr.bf16.mxu0 0
    %838 = vmatpush1.bf16.msra.mxu0 0
    %839 = vmatprep.subr.bf16.mxu0 0
    %840 = vmatpush1.bf16.msra.mxu0 0
    %841 = vmatprep.subr.bf16.mxu0 0
    %842 = vmatpush1.bf16.msra.mxu0 0
    %843 = vmatprep.subr.bf16.mxu0 0
    %844 = vmatpush1.bf16.msra.mxu0 %v825
    %845 = vmatprep.subr.bf16.mxu0 0
    %846 = vmatpush1.bf16.msra.mxu0 %v824
    %847 = vmatprep.subr.bf16.mxu0 0
    %848 = vmatpush2.bf16.msra.mxu0 0
    %849 = vmatprep.subr.bf16.mxu0 0
    %850 = vmatpush2.bf16.msra.mxu0 0
    %851 = vmatprep.subr.bf16.mxu0 0
    %852 = vmatpush2.bf16.msra.mxu0 0
    %853 = vmatprep.subr.bf16.mxu0 0
    %854 = vmatpush2.bf16.msra.mxu0 0
    %855 = vmatprep.subr.bf16.mxu0 0
    %856 = vmatpush2.bf16.msra.mxu0 0
    %857 = vmatprep.subr.bf16.mxu0 0
    %858 = vmatpush2.bf16.msra.mxu0 0
    %859 = vmatprep.subr.bf16.mxu0 0
    %860 = vmatpush2.bf16.msra.mxu0 0
    %861 = vmatprep.subr.bf16.mxu0 0
    %862 = vmatpush2.bf16.msra.mxu0 0
    %863 = vmatprep.mubr.bf16.mxu0 0
    %864 = vmatmul.mubr.bf16.gmra.mxu0 %v829
    %v865 = vpop.f32.mrf.mxu0
    %v866 = vadd.f32 0.0, %v865
    %v867 = vpop.f32.mrf.mxu0
    %v868 = vpop.f32.mrf.mxu0
    %v869 = vpop.f32.mrf.mxu0
    %870 = vdwg.mxu0
    %v871 = vadd.f32 %v809, %v866
    %v872 = vxor.u32 %v871, 2147483648
    %v873 = vmul.f32 %v872, 1.442695
    %v874 = vpow.pop %v873
    %v875 = vadd.f32 %v874, 1.0
    %v876 = vrcp.pop %v875
    %v877 = vmul.f32 1.0, %v876
    %v878 = vtanh.pop %v871
    %v879 = vmul.f32 %v877, %v780
    %881 = vrot.lane.b32.xlu0 %v878, 64
    %v882 = vpop.permute.xlu0 %881
    %v884 = vmul.f32 %v877, %v882
    %886 = vrot.lane.b32.xlu0 %v884, 32
    %v887 = vpop.permute.xlu0 %886
    %v889 = vadd.f32 %v879, %v887
    %v890 = vtanh.pop %v889
    %892 = vrot.lane.b32.xlu0 %v890, 64
    %v893 = vpop.permute.xlu0 %892
    %v895 = vmul.f32 %v877, %v893
    %v896 = vpack.c.bf16 %v895, %v895
    %v899 = vunpack.c.l.s4 1966171168
    %v900 = vunpack.c.0.s8 %v899
    %v901 = vlaneseq
    %v902 = vshrl.u32 %v901, 7
    %v903 = vsub.s32 %v900, %v902
    %v904 = vrot.slane %v896, %v903
    %v906 = vunpack.c.l.s4 1966171168
    %v907 = vunpack.c.0.s8 %v906
    %v908 = vlaneseq
    %v909 = vshrl.u32 %v908, 7
    %v910 = vsub.s32 %v907, %v909
    %v911 = vrot.slane %v904, %v910
    %912 = vrot.lane.b32.xlu0 %v911, 32
    %v913 = vpop.permute.xlu0 %912
    %s915 = scalar_lea.vmem [#allocation11], 6
    %916 = vst.msk [vmem:[%s915] sm:$0x1] %vm261, %v913
    %v917 = vld [vmem:[#allocation4 + $0xe] sm:$0x3]
    %v918 = vadd.f32 %v917, %v149
    %v919 = vld [vmem:[#allocation10] sm:$0xf]
    %v920 = vld [vmem:[#allocation10 + $0x4] sm:$0xf]
    %v921 = vld [vmem:[#allocation10 + $0x8] sm:$0xf]
    %v922 = vld [vmem:[#allocation10 + $0xc] sm:$0xf]
    %923 = vrot.lane.b32.xlu0 %v896, 32
    %v924 = vpop.permute.xlu0 %923
    %v929 = vunpack.c.l.b16 %v919
    %v930 = vunpack.c.l.b16 %v920
    %v931 = vunpack.c.l.b16 %v921
    %v932 = vunpack.c.l.b16 %v922
    %v933 = vpack.c.b16 %v930, %v929
    %v934 = vpack.c.b16 %v932, %v931
    %v938 = vsel %vm169, %v924, 0
    %940 = vmatprep.subr.bf16.mxu0 0
    %941 = vmatpush1.bf16.msra.mxu0 0
    %942 = vmatprep.subr.bf16.mxu0 0
    %943 = vmatpush1.bf16.msra.mxu0 0
    %944 = vmatprep.subr.bf16.mxu0 0
    %945 = vmatpush1.bf16.msra.mxu0 0
    %946 = vmatprep.subr.bf16.mxu0 0
    %947 = vmatpush1.bf16.msra.mxu0 0
    %948 = vmatprep.subr.bf16.mxu0 0
    %949 = vmatpush1.bf16.msra.mxu0 0
    %950 = vmatprep.subr.bf16.mxu0 0
    %951 = vmatpush1.bf16.msra.mxu0 0
    %952 = vmatprep.subr.bf16.mxu0 0
    %953 = vmatpush1.bf16.msra.mxu0 %v934
    %954 = vmatprep.subr.bf16.mxu0 0
    %955 = vmatpush1.bf16.msra.mxu0 %v933
    %956 = vmatprep.subr.bf16.mxu0 0
    %957 = vmatpush2.bf16.msra.mxu0 0
    %958 = vmatprep.subr.bf16.mxu0 0
    %959 = vmatpush2.bf16.msra.mxu0 0
    %960 = vmatprep.subr.bf16.mxu0 0
    %961 = vmatpush2.bf16.msra.mxu0 0
    %962 = vmatprep.subr.bf16.mxu0 0
    %963 = vmatpush2.bf16.msra.mxu0 0
    %964 = vmatprep.subr.bf16.mxu0 0
    %965 = vmatpush2.bf16.msra.mxu0 0
    %966 = vmatprep.subr.bf16.mxu0 0
    %967 = vmatpush2.bf16.msra.mxu0 0
    %968 = vmatprep.subr.bf16.mxu0 0
    %969 = vmatpush2.bf16.msra.mxu0 0
    %970 = vmatprep.subr.bf16.mxu0 0
    %971 = vmatpush2.bf16.msra.mxu0 0
    %972 = vmatprep.mubr.bf16.mxu0 0
    %973 = vmatmul.mubr.bf16.gmra.mxu0 %v938
    %v974 = vpop.f32.mrf.mxu0
    %v975 = vadd.f32 0.0, %v974
    %v976 = vpop.f32.mrf.mxu0
    %v977 = vpop.f32.mrf.mxu0
    %v978 = vpop.f32.mrf.mxu0
    %979 = vdwg.mxu0
    %v980 = vadd.f32 %v918, %v975
    %v981 = vxor.u32 %v980, 2147483648
    %v982 = vmul.f32 %v981, 1.442695
    %v983 = vpow.pop %v982
    %v984 = vadd.f32 %v983, 1.0
    %v985 = vrcp.pop %v984
    %v986 = vmul.f32 1.0, %v985
    %v987 = vtanh.pop %v980
    %v988 = vmul.f32 %v986, %v889
    %990 = vrot.lane.b32.xlu0 %v987, 64
    %v991 = vpop.permute.xlu0 %990
    %v993 = vmul.f32 %v986, %v991
    %995 = vrot.lane.b32.xlu0 %v993, 32
    %v996 = vpop.permute.xlu0 %995
    %v998 = vadd.f32 %v988, %v996
    %v999 = vtanh.pop %v998
    %1001 = vrot.lane.b32.xlu0 %v999, 64
    %v1002 = vpop.permute.xlu0 %1001
    %v1004 = vmul.f32 %v986, %v1002
    %v1005 = vpack.c.bf16 %v1004, %v1004
    %v1008 = vunpack.c.l.s4 1966171168
    %v1009 = vunpack.c.0.s8 %v1008
    %v1010 = vlaneseq
    %v1011 = vshrl.u32 %v1010, 7
    %v1012 = vsub.s32 %v1009, %v1011
    %v1013 = vrot.slane %v1005, %v1012
    %v1015 = vunpack.c.l.s4 1966171168
    %v1016 = vunpack.c.0.s8 %v1015
    %v1017 = vlaneseq
    %v1018 = vshrl.u32 %v1017, 7
    %v1019 = vsub.s32 %v1016, %v1018
    %v1020 = vrot.slane %v1013, %v1019
    %1021 = vrot.lane.b32.xlu0 %v1020, 32
    %v1022 = vpop.permute.xlu0 %1021
    %s1024 = scalar_lea.vmem [#allocation11], 7
    %1025 = vst.msk [vmem:[%s1024] sm:$0x1] %vm261, %v1022
    %1027 = vrot.lane.b32.xlu0 %v1004, 32
    %v1028 = vpop.permute.xlu0 %1027
    %vm1030 = vcmask 254976
    %1031 = vst.msk [vmem:[#allocation2] sm:$0x3] %vm1030, %v1028
    %1033 = vrot.lane.b32.xlu0 %v998, 96
    %v1034 = vpop.permute.xlu0 %1033
    %1036 = vst.msk [vmem:[#allocation3] sm:$0x3] %vm1030, %v1034
    // Predicated region
    $region42: #{tpu_custom_call.1} parent=1 // pred_check
      %p1037 = pneg %p70
    $region43: #{tpu_custom_call.1} parent=1 // pred_check_branch
      %1039 = sbr.rel (%p1037) target = $region45
    $region44: #{tpu_custom_call.1} parent=1 // pred_region
      %1040 = vst.msk [vmem:[#allocation12] sm:$0x3] %vm1030, %v1028
      %1041 = vst.msk [vmem:[#allocation14] sm:$0x3] %vm1030, %v1034
    $region45: #{tpu_custom_call.1} parent=1 // pred_fallthru
      _
    // Predicated region
    $region46: #{tpu_custom_call.1} parent=1 // pred_check
      _
    $region47: #{tpu_custom_call.1} parent=1 // pred_check_branch
      %1043 = sbr.rel (0) target = $region49
    $region48: #{tpu_custom_call.1} parent=1 // pred_region
      %s1045 = ssub.s32 128, 128
      %1046 = vsyncadd [#allocation7], %s1045
      %s1047 = sshll.u32 [#allocation11], 4
      %s1048 = int_to_ptr.vmem [resolvable:$true] %s1047
      %1053 = dma.vmem_to_hbm [thread:$0]  %s1048, 128, %s6, [#allocation7], 16, 16, 1
    $region49: #{tpu_custom_call.1} parent=1 // pred_fallthru
      _
    // Predicated region
    $region50: #{tpu_custom_call.1} parent=1 // pred_check
      _
    $region51: #{tpu_custom_call.1} parent=1 // pred_check_branch
      %1055 = sbr.rel (0) target = $region53
    $region52: #{tpu_custom_call.1} parent=1 // pred_region
      %s1057 = ssub.s32 32, 32
      %1058 = vsyncadd [#allocation13], %s1057
      %s1060 = sshll.u32 [#allocation12], 4
      %s1061 = int_to_ptr.vmem [resolvable:$true] %s1060
      %1063 = dma.vmem_to_hbm [thread:$0]  %s1061, 32, %s7, [#allocation13]
    $region53: #{tpu_custom_call.1} parent=1 // pred_fallthru
      _
    // Predicated region
    $region54: #{tpu_custom_call.1} parent=1 // pred_check
      _
    $region55: #{tpu_custom_call.1} parent=1 // pred_check_branch
      %1065 = sbr.rel (0) target = $region57
    $region56: #{tpu_custom_call.1} parent=1 // pred_region
      %s1067 = ssub.s32 32, 32
      %1068 = vsyncadd [#allocation13], %s1067
      %s1070 = sshll.u32 [#allocation14], 4
      %s1071 = int_to_ptr.vmem [resolvable:$true] %s1070
      %1073 = dma.vmem_to_hbm [thread:$0]  %s1071, 32, %s8, [#allocation13]
    $region57: #{tpu_custom_call.1} parent=1 // pred_fallthru
      _
    // Predicated region
    $region58: #{tpu_custom_call.1} parent=1 // pred_check
      _
    $region59: #{tpu_custom_call.1} parent=1 // pred_check_branch
      %1075 = sbr.rel (0) target = $region61
    $region60: #{tpu_custom_call.1} parent=1 // pred_region
      %1076 = dma.done [#allocation7], 128
    $region61: #{tpu_custom_call.1} parent=1 // pred_fallthru
      _
    // Predicated region
    $region62: #{tpu_custom_call.1} parent=1 // pred_check
      _
    $region63: #{tpu_custom_call.1} parent=1 // pred_check_branch
      %1078 = sbr.rel (0) target = $region65
    $region64: #{tpu_custom_call.1} parent=1 // pred_region
      %1079 = dma.done [#allocation13], 32
    $region65: #{tpu_custom_call.1} parent=1 // pred_fallthru
      _
    // Predicated region
    $region66: #{tpu_custom_call.1} parent=1 // pred_check
      _
    $region67: #{tpu_custom_call.1} parent=1 // pred_check_branch
      %1081 = sbr.rel (0) target = $region69
    $region68: #{tpu_custom_call.1} parent=1 // pred_region
      %1082 = dma.done [#allocation13], 32
    $region69: #{tpu_custom_call.1} parent=1 // pred_fallthru
      _
    %1083 = vsyncpa [#allocation6], 1
    %1084 = vsyncpa [#allocation9], 1
    %1085 = vsyncpa [#allocation7], 1
    %1086 = vsyncpa [#allocation13], 1

// kernel: tpu_custom_call.1
$region0: #{tpu_custom_call.1}
  #allocation0 [shape = 'u32[]', space=smem, size = 0x4, offset = 0x4, fixed_abs, tag = 'smem constant byte address 0x4 - core index']
  #allocation1 [shape = 'u32[144,128]{1,0:T(1,128)}', space=vmem, size = 0x12000, scoped, tag = 'internal scratch']
  #allocation2 [shape = 'f32[2,32]{1,0:T(2,128)}', space=vmem, size = 0x400, scoped, tag = 'scratch operand']
  #allocation3 [shape = 'f32[2,32]{1,0:T(2,128)}', space=vmem, size = 0x400, scoped, tag = 'scratch operand']
  #allocation4 [shape = 'f32[16,128]{1,0:T(8,128)}', space=vmem, size = 0x2000, scoped, tag = 'scratch operand']
  %s0 = inlined_call_operand.hbm [shape: bf16[1,16,16], index: 0, kind: input, shape index: {}]
  %s1 = inlined_call_operand.hbm [shape: bf16[16,128], index: 1, kind: input, shape index: {}]
  %s2 = inlined_call_operand.hbm [shape: bf16[32,128], index: 2, kind: input, shape index: {}]
  %s3 = inlined_call_operand.vmem [shape: f32[1,128], index: 3, kind: input, shape index: {}]
  %s4 = inlined_call_operand.vmem [shape: f32[1,2,32], index: 4, kind: input, shape index: {}]
  %s5 = inlined_call_operand.vmem [shape: f32[1,2,32], index: 5, kind: input, shape index: {}]
  %s6 = inlined_call_operand.hbm [shape: bf16[1,8,2,32], index: 6, kind: output, shape index: {0}]
  %s7 = inlined_call_operand.hbm [shape: f32[1,2,32], index: 7, kind: output, shape index: {1}]
  %s8 = inlined_call_operand.hbm [shape: f32[1,2,32], index: 8, kind: output, shape index: {2}]
  %9 = xla_tuple %s6, %s7, %s8
  %s10 = sld [smem:[#allocation0]]
  $region70: #{tpu_custom_call.1} parent=0
    _
  %s12 = ssub.s32 1, %s10
  %s13 = scalar_select 0, %s12, %s10
  $region1: #{tpu_custom_call.1} parent=0
    #allocation5 [shape = 'u8[4096]{0}', space=vmem, size = 0x1000, scoped, tag = 'input window, operand 0, single buffered']
    #allocation6 [shape = 's32[1]{0}', space=sflag, size = 0x4, scoped, tag = 'scoped memory for tpu_custom_call.1']
    #allocation7 [shape = 's32[1]{0}', space=sflag, size = 0x4, scoped, tag = 'scoped memory for tpu_custom_call.1']
    #allocation8 [shape = 'u8[4096]{0}', space=vmem, size = 0x1000, scoped, tag = 'input window, operand 1, single buffered']
    #allocation9 [shape = 's32[1]{0}', space=sflag, size = 0x4, scoped, tag = 'scoped memory for tpu_custom_call.1']
    #allocation10 [shape = 'u8[8192]{0}', space=vmem, size = 0x2000, scoped, tag = 'input window, operand 2, single buffered']
    #allocation11 [shape = 'u8[4096]{0}', space=vmem, size = 0x1000, scoped, tag = 'output window, operand 0, single buffered']
    #allocation12 [shape = 'u8[1024]{0}', space=vmem, size = 0x400, scoped, tag = 'output window, operand 1, single buffered']
    #allocation13 [shape = 's32[1]{0}', space=sflag, size = 0x4, scoped, tag = 'scoped memory for tpu_custom_call.1']
    #allocation14 [shape = 'u8[1024]{0}', space=vmem, size = 0x400, scoped, tag = 'output window, operand 2, single buffered']
    %14 = vsyncpa [#allocation6], 0
    %15 = vsyncpa [#allocation9], 0
    %16 = vsyncpa [#allocation7], 0
    %17 = vsyncpa [#allocation13], 0
    // Predicated region
    $region2: #{tpu_custom_call.1} parent=1 // pred_check
      _
    $region3: #{tpu_custom_call.1} parent=1 // pred_check_branch
      %19 = sbr.rel (0) target = $region5
    $region4: #{tpu_custom_call.1} parent=1 // pred_region
      %s21 = ssub.s32 128, 128
      %22 = vsyncadd [#allocation6], %s21
      %s23 = sshll.u32 [#allocation5], 4
      %s24 = int_to_ptr.vmem [resolvable:$true] %s23
      %29 = dma.hbm_to_vmem [thread:$0]  %s0, 128, %s24, [#allocation6], 64, 64, 4
    $region5: #{tpu_custom_call.1} parent=1 // pred_fallthru
      _
    // Predicated region
    $region6: #{tpu_custom_call.1} parent=1 // pred_check
      _
    $region7: #{tpu_custom_call.1} parent=1 // pred_check_branch
      %31 = sbr.rel (0) target = $region9
    $region8: #{tpu_custom_call.1} parent=1 // pred_region
      %s33 = ssub.s32 128, 128
      %34 = vsyncadd [#allocation9], %s33
      %s35 = sshll.u32 [#allocation8], 4
      %s36 = int_to_ptr.vmem [resolvable:$true] %s35
      %41 = dma.hbm_to_vmem [thread:$0]  %s1, 128, %s36, [#allocation9], 64, 64, 4
    $region9: #{tpu_custom_call.1} parent=1 // pred_fallthru
      _
    // Predicated region
    $region10: #{tpu_custom_call.1} parent=1 // pred_check
      _
    $region11: #{tpu_custom_call.1} parent=1 // pred_check_branch
      %43 = sbr.rel (0) target = $region13
    $region12: #{tpu_custom_call.1} parent=1 // pred_region
      %s45 = ssub.s32 256, 256
      %46 = vsyncadd [#allocation9], %s45
      %s47 = sshll.u32 [#allocation10], 4
      %s48 = int_to_ptr.vmem [resolvable:$true] %s47
      %53 = dma.hbm_to_vmem [thread:$0]  %s2, 256, %s48, [#allocation9], 64, 64, 4
    $region13: #{tpu_custom_call.1} parent=1 // pred_fallthru
      _
    // Predicated region
    $region14: #{tpu_custom_call.1} parent=1 // pred_check
      _
    $region15: #{tpu_custom_call.1} parent=1 // pred_check_branch
      %55 = sbr.rel (0) target = $region17
    $region16: #{tpu_custom_call.1} parent=1 // pred_region
      _
    $region17: #{tpu_custom_call.1} parent=1 // pred_fallthru
      _
    // Predicated region
    $region18: #{tpu_custom_call.1} parent=1 // pred_check
      _
    $region19: #{tpu_custom_call.1} parent=1 // pred_check_branch
      %57 = sbr.rel (0) target = $region21
    $region20: #{tpu_custom_call.1} parent=1 // pred_region
      _
    $region21: #{tpu_custom_call.1} parent=1 // pred_fallthru
      _
    // Predicated region
    $region22: #{tpu_custom_call.1} parent=1 // pred_check
      _
    $region23: #{tpu_custom_call.1} parent=1 // pred_check_branch
      %59 = sbr.rel (0) target = $region25
    $region24: #{tpu_custom_call.1} parent=1 // pred_region
      _
    $region25: #{tpu_custom_call.1} parent=1 // pred_fallthru
      _
    // Predicated region
    $region26: #{tpu_custom_call.1} parent=1 // pred_check
      _
    $region27: #{tpu_custom_call.1} parent=1 // pred_check_branch
      %61 = sbr.rel (0) target = $region29
    $region28: #{tpu_custom_call.1} parent=1 // pred_region
      %62 = dma.done [#allocation6], 128
    $region29: #{tpu_custom_call.1} parent=1 // pred_fallthru
      _
    // Predicated region
    $region30: #{tpu_custom_call.1} parent=1 // pred_check
      _
    $region31: #{tpu_custom_call.1} parent=1 // pred_check_branch
      %64 = sbr.rel (0) target = $region33
    $region32: #{tpu_custom_call.1} parent=1 // pred_region
      %65 = dma.done [#allocation9], 128
    $region33: #{tpu_custom_call.1} parent=1 // pred_fallthru
      _
    // Predicated region
    $region34: #{tpu_custom_call.1} parent=1 // pred_check
      _
    $region35: #{tpu_custom_call.1} parent=1 // pred_check_branch
      %67 = sbr.rel (0) target = $region37
    $region36: #{tpu_custom_call.1} parent=1 // pred_region
      %68 = dma.done [#allocation9], 256
    $region37: #{tpu_custom_call.1} parent=1 // pred_fallthru
      _
    %p70 = scmp.eq.s32.totalorder 0, 0
    // Predicated region
    $region38: #{tpu_custom_call.1} parent=1 // pred_check
      %p71 = pneg %p70
    $region39: #{tpu_custom_call.1} parent=1 // pred_check_branch
      %73 = sbr.rel (%p71) target = $region41
    $region40: #{tpu_custom_call.1} parent=1 // pred_region
      %v74 = vld [vmem:[%s4] sm:$0x3]
      %vm75 = vcmask 254976
      %76 = vst.msk [vmem:[#allocation2] sm:$0x3] %vm75, %v74
      %v77 = vld [vmem:[%s5] sm:$0x3]
      %78 = vst.msk [vmem:[#allocation3] sm:$0x3] %vm75, %v77
    $region41: #{tpu_custom_call.1} parent=1 // pred_fallthru
      _
    %v79 = vld [vmem:[#allocation5] sm:$0xf]
    %v80 = vld [vmem:[#allocation5 + $0x4] sm:$0xf]
    %v81 = vld [vmem:[#allocation8] sm:$0xf]
    %v82 = vld [vmem:[#allocation8 + $0x4] sm:$0xf]
    %v85 = vunpack.c.l.b16 %v79
    %v86 = vunpack.c.l.b16 %v80
    %v87 = vpack.c.b16 %v86, %v85
    %v90 = vunpack.c.l.b16 %v81
    %v91 = vunpack.c.l.b16 %v82
    %v92 = vpack.c.b16 %v91, %v90
    %vm94 = vcmask 130048
    %v96 = vsel %vm94, %v87, 0
    %98 = vmatprep.subr.bf16.mxu0 0
    %99 = vmatpush1.bf16.msra.mxu0 0
    %100 = vmatprep.subr.bf16.mxu0 0
    %101 = vmatpush1.bf16.msra.mxu0 0
    %102 = vmatprep.subr.bf16.mxu0 0
    %103 = vmatpush1.bf16.msra.mxu0 0
    %104 = vmatprep.subr.bf16.mxu0 0
    %105 = vmatpush1.bf16.msra.mxu0 0
    %106 = vmatprep.subr.bf16.mxu0 0
    %107 = vmatpush1.bf16.msra.mxu0 0
    %108 = vmatprep.subr.bf16.mxu0 0
    %109 = vmatpush1.bf16.msra.mxu0 0
    %110 = vmatprep.subr.bf16.mxu0 0
    %111 = vmatpush1.bf16.msra.mxu0 0
    %112 = vmatprep.subr.bf16.mxu0 0
    %113 = vmatpush1.bf16.msra.mxu0 %v92
    %114 = vmatprep.subr.bf16.mxu0 0
    %115 = vmatpush2.bf16.msra.mxu0 0
    %116 = vmatprep.subr.bf16.mxu0 0
    %117 = vmatpush2.bf16.msra.mxu0 0
    %118 = vmatprep.subr.bf16.mxu0 0
    %119 = vmatpush2.bf16.msra.mxu0 0
    %120 = vmatprep.subr.bf16.mxu0 0
    %121 = vmatpush2.bf16.msra.mxu0 0
    %122 = vmatprep.subr.bf16.mxu0 0
    %123 = vmatpush2.bf16.msra.mxu0 0
    %124 = vmatprep.subr.bf16.mxu0 0
    %125 = vmatpush2.bf16.msra.mxu0 0
    %126 = vmatprep.subr.bf16.mxu0 0
    %127 = vmatpush2.bf16.msra.mxu0 0
    %128 = vmatprep.subr.bf16.mxu0 0
    %129 = vmatpush2.bf16.msra.mxu0 0
    %130 = vmatprep.mubr.bf16.mxu0 0
    %131 = vmatmul.mubr.bf16.gmra.mxu0 %v96
    %v132 = vpop.f32.mrf.mxu0
    %v133 = vadd.f32 0.0, %v132
    %v134 = vpop.f32.mrf.mxu0
    %v135 = vpop.f32.mrf.mxu0
    %v136 = vadd.f32 0.0, %v135
    %v137 = vpop.f32.mrf.mxu0
    %138 = vdwg.mxu0
    %139 = vst [vmem:[#allocation4] sm:$0xff] %v133
    %140 = vst [vmem:[#allocation4 + $0x8] sm:$0xff] %v136
    %v141 = vld [vmem:[%s3] sm:$0x1]
    %v142 = vld [vmem:[#allocation2] sm:$0x3]
    %v143 = vld [vmem:[#allocation3] sm:$0x3]
    %v144 = vld [vmem:[#allocation4] sm:$0x3]
    %v146 = vlaneseq
    %v147 = vshrl.u32 %v146, 7
    %v148 = vsub.s32 0, %v147
    %v149 = vrot.slane %v141, %v148
    %v151 = vadd.f32 %v144, %v149
    %v152 = vpack.c.bf16 %v142, %v142
    %v153 = vld [vmem:[#allocation10] sm:$0xf]
    %v154 = vld [vmem:[#allocation10 + $0x4] sm:$0xf]
    %v155 = vld [vmem:[#allocation10 + $0x8] sm:$0xf]
    %v156 = vld [vmem:[#allocation10 + $0xc] sm:$0xf]
    %v161 = vunpack.c.l.b16 %v153
    %v162 = vunpack.c.l.b16 %v154
    %v163 = vunpack.c.l.b16 %v155
    %v164 = vunpack.c.l.b16 %v156
    %v165 = vpack.c.b16 %v162, %v161
    %v166 = vpack.c.b16 %v164, %v163
    %vm169 = vcmask 261120
    %v171 = vsel %vm169, %v152, 0
    %173 = vmatprep.subr.bf16.mxu0 0
    %174 = vmatpush1.bf16.msra.mxu0 0
    %175 = vmatprep.subr.bf16.mxu0 0
    %176 = vmatpush1.bf16.msra.mxu0 0
    %177 = vmatprep.subr.bf16.mxu0 0
    %178 = vmatpush1.bf16.msra.mxu0 0
    %179 = vmatprep.subr.bf16.mxu0 0
    %180 = vmatpush1.bf16.msra.mxu0 0
    %181 = vmatprep.subr.bf16.mxu0 0
    %182 = vmatpush1.bf16.msra.mxu0 0
    %183 = vmatprep.subr.bf16.mxu0 0
    %184 = vmatpush1.bf16.msra.mxu0 0
    %185 = vmatprep.subr.bf16.mxu0 0
    %186 = vmatpush1.bf16.msra.mxu0 %v166
    %187 = vmatprep.subr.bf16.mxu0 0
    %188 = vmatpush1.bf16.msra.mxu0 %v165
    %189 = vmatprep.subr.bf16.mxu0 0
    %190 = vmatpush2.bf16.msra.mxu0 0
    %191 = vmatprep.subr.bf16.mxu0 0
    %192 = vmatpush2.bf16.msra.mxu0 0
    %193 = vmatprep.subr.bf16.mxu0 0
    %194 = vmatpush2.bf16.msra.mxu0 0
    %195 = vmatprep.subr.bf16.mxu0 0
    %196 = vmatpush2.bf16.msra.mxu0 0
    %197 = vmatprep.subr.bf16.mxu0 0
    %198 = vmatpush2.bf16.msra.mxu0 0
    %199 = vmatprep.subr.bf16.mxu0 0
    %200 = vmatpush2.bf16.msra.mxu0 0
    %201 = vmatprep.subr.bf16.mxu0 0
    %202 = vmatpush2.bf16.msra.mxu0 0
    %203 = vmatprep.subr.bf16.mxu0 0
    %204 = vmatpush2.bf16.msra.mxu0 0
    %205 = vmatprep.mubr.bf16.mxu0 0
    %206 = vmatmul.mubr.bf16.gmra.mxu0 %v171
    %v207 = vpop.f32.mrf.mxu0
    %v208 = vadd.f32 0.0, %v207
    %v209 = vpop.f32.mrf.mxu0
    %v210 = vpop.f32.mrf.mxu0
    %v211 = vpop.f32.mrf.mxu0
    %212 = vdwg.mxu0
    %v213 = vadd.f32 %v151, %v208
    %v214 = vxor.u32 %v213, 2147483648
    %v215 = vmul.f32 %v214, 1.442695
    %v216 = vpow.pop %v215
    %v217 = vadd.f32 %v216, 1.0
    %v218 = vrcp.pop %v217
    %v219 = vmul.f32 1.0, %v218
    %v220 = vtanh.pop %v213
    %222 = vrot.lane.b32.xlu0 %v143, 32
    %v223 = vpop.permute.xlu0 %222
    %v225 = vmul.f32 %v219, %v223
    %227 = vrot.lane.b32.xlu0 %v220, 64
    %v228 = vpop.permute.xlu0 %227
    %v230 = vmul.f32 %v219, %v228
    %232 = vrot.lane.b32.xlu0 %v230, 32
    %v233 = vpop.permute.xlu0 %232
    %v235 = vadd.f32 %v225, %v233
    %v236 = vtanh.pop %v235
    %238 = vrot.lane.b32.xlu0 %v236, 64
    %v239 = vpop.permute.xlu0 %238
    %v241 = vmul.f32 %v219, %v239
    %v242 = vpack.c.bf16 %v241, %v241
    %v245 = vunpack.c.l.s4 1966171168
    %v246 = vunpack.c.0.s8 %v245
    %v247 = vlaneseq
    %v248 = vshrl.u32 %v247, 7
    %v249 = vsub.s32 %v246, %v248
    %v250 = vrot.slane %v242, %v249
    %v252 = vunpack.c.l.s4 1966171168
    %v253 = vunpack.c.0.s8 %v252
    %v254 = vlaneseq
    %v255 = vshrl.u32 %v254, 7
    %v256 = vsub.s32 %v253, %v255
    %v257 = vrot.slane %v250, %v256
    %258 = vrot.lane.b32.xlu0 %v257, 32
    %v259 = vpop.permute.xlu0 %258
    %vm261 = vcmask 253952
    %262 = vst.msk [vmem:[#allocation11] sm:$0x1] %vm261, %v259
    %v263 = vld [vmem:[#allocation4 + $0x2] sm:$0x3]
    %v264 = vadd.f32 %v263, %v149
    %v265 = vld [vmem:[#allocation10] sm:$0xf]
    %v266 = vld [vmem:[#allocation10 + $0x4] sm:$0xf]
    %v267 = vld [vmem:[#allocation10 + $0x8] sm:$0xf]
    %v268 = vld [vmem:[#allocation10 + $0xc] sm:$0xf]
    %269 = vrot.lane.b32.xlu0 %v242, 32
    %v270 = vpop.permute.xlu0 %269
    %v275 = vunpack.c.l.b16 %v265
    %v276 = vunpack.c.l.b16 %v266
    %v277 = vunpack.c.l.b16 %v267
    %v278 = vunpack.c.l.b16 %v268
    %v279 = vpack.c.b16 %v276, %v275
    %v280 = vpack.c.b16 %v278, %v277
    %v284 = vsel %vm169, %v270, 0
    %286 = vmatprep.subr.bf16.mxu0 0
    %287 = vmatpush1.bf16.msra.mxu0 0
    %288 = vmatprep.subr.bf16.mxu0 0
    %289 = vmatpush1.bf16.msra.mxu0 0
    %290 = vmatprep.subr.bf16.mxu0 0
    %291 = vmatpush1.bf16.msra.mxu0 0
    %292 = vmatprep.subr.bf16.mxu0 0
    %293 = vmatpush1.bf16.msra.mxu0 0
    %294 = vmatprep.subr.bf16.mxu0 0
    %295 = vmatpush1.bf16.msra.mxu0 0
    %296 = vmatprep.subr.bf16.mxu0 0
    %297 = vmatpush1.bf16.msra.mxu0 0
    %298 = vmatprep.subr.bf16.mxu0 0
    %299 = vmatpush1.bf16.msra.mxu0 %v280
    %300 = vmatprep.subr.bf16.mxu0 0
    %301 = vmatpush1.bf16.msra.mxu0 %v279
    %302 = vmatprep.subr.bf16.mxu0 0
    %303 = vmatpush2.bf16.msra.mxu0 0
    %304 = vmatprep.subr.bf16.mxu0 0
    %305 = vmatpush2.bf16.msra.mxu0 0
    %306 = vmatprep.subr.bf16.mxu0 0
    %307 = vmatpush2.bf16.msra.mxu0 0
    %308 = vmatprep.subr.bf16.mxu0 0
    %309 = vmatpush2.bf16.msra.mxu0 0
    %310 = vmatprep.subr.bf16.mxu0 0
    %311 = vmatpush2.bf16.msra.mxu0 0
    %312 = vmatprep.subr.bf16.mxu0 0
    %313 = vmatpush2.bf16.msra.mxu0 0
    %314 = vmatprep.subr.bf16.mxu0 0
    %315 = vmatpush2.bf16.msra.mxu0 0
    %316 = vmatprep.subr.bf16.mxu0 0
    %317 = vmatpush2.bf16.msra.mxu0 0
    %318 = vmatprep.mubr.bf16.mxu0 0
    %319 = vmatmul.mubr.bf16.gmra.mxu0 %v284
    %v320 = vpop.f32.mrf.mxu0
    %v321 = vadd.f32 0.0, %v320
    %v322 = vpop.f32.mrf.mxu0
    %v323 = vpop.f32.mrf.mxu0
    %v324 = vpop.f32.mrf.mxu0
    %325 = vdwg.mxu0
    %v326 = vadd.f32 %v264, %v321
    %v327 = vxor.u32 %v326, 2147483648
    %v328 = vmul.f32 %v327, 1.442695
    %v329 = vpow.pop %v328
    %v330 = vadd.f32 %v329, 1.0
    %v331 = vrcp.pop %v330
    %v332 = vmul.f32 1.0, %v331
    %v333 = vtanh.pop %v326
    %v334 = vmul.f32 %v332, %v235
    %336 = vrot.lane.b32.xlu0 %v333, 64
    %v337 = vpop.permute.xlu0 %336
    %v339 = vmul.f32 %v332, %v337
    %341 = vrot.lane.b32.xlu0 %v339, 32
    %v342 = vpop.permute.xlu0 %341
    %v344 = vadd.f32 %v334, %v342
    %v345 = vtanh.pop %v344
    %347 = vrot.lane.b32.xlu0 %v345, 64
    %v348 = vpop.permute.xlu0 %347
    %v350 = vmul.f32 %v332, %v348
    %v351 = vpack.c.bf16 %v350, %v350
    %v354 = vunpack.c.l.s4 1966171168
    %v355 = vunpack.c.0.s8 %v354
    %v356 = vlaneseq
    %v357 = vshrl.u32 %v356, 7
    %v358 = vsub.s32 %v355, %v357
    %v359 = vrot.slane %v351, %v358
    %v361 = vunpack.c.l.s4 1966171168
    %v362 = vunpack.c.0.s8 %v361
    %v363 = vlaneseq
    %v364 = vshrl.u32 %v363, 7
    %v365 = vsub.s32 %v362, %v364
    %v366 = vrot.slane %v359, %v365
    %367 = vrot.lane.b32.xlu0 %v366, 32
    %v368 = vpop.permute.xlu0 %367
    %s370 = scalar_lea.vmem [#allocation11], 1
    %371 = vst.msk [vmem:[%s370] sm:$0x1] %vm261, %v368
    %v372 = vld [vmem:[#allocation4 + $0x4] sm:$0x3]
    %v373 = vadd.f32 %v372, %v149
    %v374 = vld [vmem:[#allocation10] sm:$0xf]
    %v375 = vld [vmem:[#allocation10 + $0x4] sm:$0xf]
    %v376 = vld [vmem:[#allocation10 + $0x8] sm:$0xf]
    %v377 = vld [vmem:[#allocation10 + $0xc] sm:$0xf]
    %378 = vrot.lane.b32.xlu0 %v351, 32
    %v379 = vpop.permute.xlu0 %378
    %v384 = vunpack.c.l.b16 %v374
    %v385 = vunpack.c.l.b16 %v375
    %v386 = vunpack.c.l.b16 %v376
    %v387 = vunpack.c.l.b16 %v377
    %v388 = vpack.c.b16 %v385, %v384
    %v389 = vpack.c.b16 %v387, %v386
    %v393 = vsel %vm169, %v379, 0
    %395 = vmatprep.subr.bf16.mxu0 0
    %396 = vmatpush1.bf16.msra.mxu0 0
    %397 = vmatprep.subr.bf16.mxu0 0
    %398 = vmatpush1.bf16.msra.mxu0 0
    %399 = vmatprep.subr.bf16.mxu0 0
    %400 = vmatpush1.bf16.msra.mxu0 0
    %401 = vmatprep.subr.bf16.mxu0 0
    %402 = vmatpush1.bf16.msra.mxu0 0
    %403 = vmatprep.subr.bf16.mxu0 0
    %404 = vmatpush1.bf16.msra.mxu0 0
    %405 = vmatprep.subr.bf16.mxu0 0
    %406 = vmatpush1.bf16.msra.mxu0 0
    %407 = vmatprep.subr.bf16.mxu0 0
    %408 = vmatpush1.bf16.msra.mxu0 %v389
    %409 = vmatprep.subr.bf16.mxu0 0
    %410 = vmatpush1.bf16.msra.mxu0 %v388
    %411 = vmatprep.subr.bf16.mxu0 0
    %412 = vmatpush2.bf16.msra.mxu0 0
    %413 = vmatprep.subr.bf16.mxu0 0
    %414 = vmatpush2.bf16.msra.mxu0 0
    %415 = vmatprep.subr.bf16.mxu0 0
    %416 = vmatpush2.bf16.msra.mxu0 0
    %417 = vmatprep.subr.bf16.mxu0 0
    %418 = vmatpush2.bf16.msra.mxu0 0
    %419 = vmatprep.subr.bf16.mxu0 0
    %420 = vmatpush2.bf16.msra.mxu0 0
    %421 = vmatprep.subr.bf16.mxu0 0
    %422 = vmatpush2.bf16.msra.mxu0 0
    %423 = vmatprep.subr.bf16.mxu0 0
    %424 = vmatpush2.bf16.msra.mxu0 0
    %425 = vmatprep.subr.bf16.mxu0 0
    %426 = vmatpush2.bf16.msra.mxu0 0
    %427 = vmatprep.mubr.bf16.mxu0 0
    %428 = vmatmul.mubr.bf16.gmra.mxu0 %v393
    %v429 = vpop.f32.mrf.mxu0
    %v430 = vadd.f32 0.0, %v429
    %v431 = vpop.f32.mrf.mxu0
    %v432 = vpop.f32.mrf.mxu0
    %v433 = vpop.f32.mrf.mxu0
    %434 = vdwg.mxu0
    %v435 = vadd.f32 %v373, %v430
    %v436 = vxor.u32 %v435, 2147483648
    %v437 = vmul.f32 %v436, 1.442695
    %v438 = vpow.pop %v437
    %v439 = vadd.f32 %v438, 1.0
    %v440 = vrcp.pop %v439
    %v441 = vmul.f32 1.0, %v440
    %v442 = vtanh.pop %v435
    %v443 = vmul.f32 %v441, %v344
    %445 = vrot.lane.b32.xlu0 %v442, 64
    %v446 = vpop.permute.xlu0 %445
    %v448 = vmul.f32 %v441, %v446
    %450 = vrot.lane.b32.xlu0 %v448, 32
    %v451 = vpop.permute.xlu0 %450
    %v453 = vadd.f32 %v443, %v451
    %v454 = vtanh.pop %v453
    %456 = vrot.lane.b32.xlu0 %v454, 64
    %v457 = vpop.permute.xlu0 %456
    %v459 = vmul.f32 %v441, %v457
    %v460 = vpack.c.bf16 %v459, %v459
    %v463 = vunpack.c.l.s4 1966171168
    %v464 = vunpack.c.0.s8 %v463
    %v465 = vlaneseq
    %v466 = vshrl.u32 %v465, 7
    %v467 = vsub.s32 %v464, %v466
    %v468 = vrot.slane %v460, %v467
    %v470 = vunpack.c.l.s4 1966171168
    %v471 = vunpack.c.0.s8 %v470
    %v472 = vlaneseq
    %v473 = vshrl.u32 %v472, 7
    %v474 = vsub.s32 %v471, %v473
    %v475 = vrot.slane %v468, %v474
    %476 = vrot.lane.b32.xlu0 %v475, 32
    %v477 = vpop.permute.xlu0 %476
    %s479 = scalar_lea.vmem [#allocation11], 2
    %480 = vst.msk [vmem:[%s479] sm:$0x1] %vm261, %v477
    %v481 = vld [vmem:[#allocation4 + $0x6] sm:$0x3]
    %v482 = vadd.f32 %v481, %v149
    %v483 = vld [vmem:[#allocation10] sm:$0xf]
    %v484 = vld [vmem:[#allocation10 + $0x4] sm:$0xf]
    %v485 = vld [vmem:[#allocation10 + $0x8] sm:$0xf]
    %v486 = vld [vmem:[#allocation10 + $0xc] sm:$0xf]
    %487 = vrot.lane.b32.xlu0 %v460, 32
    %v488 = vpop.permute.xlu0 %487
    %v493 = vunpack.c.l.b16 %v483
    %v494 = vunpack.c.l.b16 %v484
    %v495 = vunpack.c.l.b16 %v485
    %v496 = vunpack.c.l.b16 %v486
    %v497 = vpack.c.b16 %v494, %v493
    %v498 = vpack.c.b16 %v496, %v495
    %v502 = vsel %vm169, %v488, 0
    %504 = vmatprep.subr.bf16.mxu0 0
    %505 = vmatpush1.bf16.msra.mxu0 0
    %506 = vmatprep.subr.bf16.mxu0 0
    %507 = vmatpush1.bf16.msra.mxu0 0
    %508 = vmatprep.subr.bf16.mxu0 0
    %509 = vmatpush1.bf16.msra.mxu0 0
    %510 = vmatprep.subr.bf16.mxu0 0
    %511 = vmatpush1.bf16.msra.mxu0 0
    %512 = vmatprep.subr.bf16.mxu0 0
    %513 = vmatpush1.bf16.msra.mxu0 0
    %514 = vmatprep.subr.bf16.mxu0 0
    %515 = vmatpush1.bf16.msra.mxu0 0
    %516 = vmatprep.subr.bf16.mxu0 0
    %517 = vmatpush1.bf16.msra.mxu0 %v498
    %518 = vmatprep.subr.bf16.mxu0 0
    %519 = vmatpush1.bf16.msra.mxu0 %v497
    %520 = vmatprep.subr.bf16.mxu0 0
    %521 = vmatpush2.bf16.msra.mxu0 0
    %522 = vmatprep.subr.bf16.mxu0 0
    %523 = vmatpush2.bf16.msra.mxu0 0
    %524 = vmatprep.subr.bf16.mxu0 0
    %525 = vmatpush2.bf16.msra.mxu0 0
    %526 = vmatprep.subr.bf16.mxu0 0
    %527 = vmatpush2.bf16.msra.mxu0 0
    %528 = vmatprep.subr.bf16.mxu0 0
    %529 = vmatpush2.bf16.msra.mxu0 0
    %530 = vmatprep.subr.bf16.mxu0 0
    %531 = vmatpush2.bf16.msra.mxu0 0
    %532 = vmatprep.subr.bf16.mxu0 0
    %533 = vmatpush2.bf16.msra.mxu0 0
    %534 = vmatprep.subr.bf16.mxu0 0
    %535 = vmatpush2.bf16.msra.mxu0 0
    %536 = vmatprep.mubr.bf16.mxu0 0
    %537 = vmatmul.mubr.bf16.gmra.mxu0 %v502
    %v538 = vpop.f32.mrf.mxu0
    %v539 = vadd.f32 0.0, %v538
    %v540 = vpop.f32.mrf.mxu0
    %v541 = vpop.f32.mrf.mxu0
    %v542 = vpop.f32.mrf.mxu0
    %543 = vdwg.mxu0
    %v544 = vadd.f32 %v482, %v539
    %v545 = vxor.u32 %v544, 2147483648
    %v546 = vmul.f32 %v545, 1.442695
    %v547 = vpow.pop %v546
    %v548 = vadd.f32 %v547, 1.0
    %v549 = vrcp.pop %v548
    %v550 = vmul.f32 1.0, %v549
    %v551 = vtanh.pop %v544
    %v552 = vmul.f32 %v550, %v453
    %554 = vrot.lane.b32.xlu0 %v551, 64
    %v555 = vpop.permute.xlu0 %554
    %v557 = vmul.f32 %v550, %v555
    %559 = vrot.lane.b32.xlu0 %v557, 32
    %v560 = vpop.permute.xlu0 %559
    %v562 = vadd.f32 %v552, %v560
    %v563 = vtanh.pop %v562
    %565 = vrot.lane.b32.xlu0 %v563, 64
    %v566 = vpop.permute.xlu0 %565
    %v568 = vmul.f32 %v550, %v566
    %v569 = vpack.c.bf16 %v568, %v568
    %v572 = vunpack.c.l.s4 1966171168
    %v573 = vunpack.c.0.s8 %v572
    %v574 = vlaneseq
    %v575 = vshrl.u32 %v574, 7
    %v576 = vsub.s32 %v573, %v575
    %v577 = vrot.slane %v569, %v576
    %v579 = vunpack.c.l.s4 1966171168
    %v580 = vunpack.c.0.s8 %v579
    %v581 = vlaneseq
    %v582 = vshrl.u32 %v581, 7
    %v583 = vsub.s32 %v580, %v582
    %v584 = vrot.slane %v577, %v583
    %585 = vrot.lane.b32.xlu0 %v584, 32
    %v586 = vpop.permute.xlu0 %585
    %s588 = scalar_lea.vmem [#allocation11], 3
    %589 = vst.msk [vmem:[%s588] sm:$0x1] %vm261, %v586
    %v590 = vld [vmem:[#allocation4 + $0x8] sm:$0x3]
    %v591 = vadd.f32 %v590, %v149
    %v592 = vld [vmem:[#allocation10] sm:$0xf]
    %v593 = vld [vmem:[#allocation10 + $0x4] sm:$0xf]
    %v594 = vld [vmem:[#allocation10 + $0x8] sm:$0xf]
    %v595 = vld [vmem:[#allocation10 + $0xc] sm:$0xf]
    %596 = vrot.lane.b32.xlu0 %v569, 32
    %v597 = vpop.permute.xlu0 %596
    %v602 = vunpack.c.l.b16 %v592
    %v603 = vunpack.c.l.b16 %v593
    %v604 = vunpack.c.l.b16 %v594
    %v605 = vunpack.c.l.b16 %v595
    %v606 = vpack.c.b16 %v603, %v602
    %v607 = vpack.c.b16 %v605, %v604
    %v611 = vsel %vm169, %v597, 0
    %613 = vmatprep.subr.bf16.mxu0 0
    %614 = vmatpush1.bf16.msra.mxu0 0
    %615 = vmatprep.subr.bf16.mxu0 0
    %616 = vmatpush1.bf16.msra.mxu0 0
    %617 = vmatprep.subr.bf16.mxu0 0
    %618 = vmatpush1.bf16.msra.mxu0 0
    %619 = vmatprep.subr.bf16.mxu0 0
    %620 = vmatpush1.bf16.msra.mxu0 0
    %621 = vmatprep.subr.bf16.mxu0 0
    %622 = vmatpush1.bf16.msra.mxu0 0
    %623 = vmatprep.subr.bf16.mxu0 0
    %624 = vmatpush1.bf16.msra.mxu0 0
    %625 = vmatprep.subr.bf16.mxu0 0
    %626 = vmatpush1.bf16.msra.mxu0 %v607
    %627 = vmatprep.subr.bf16.mxu0 0
    %628 = vmatpush1.bf16.msra.mxu0 %v606
    %629 = vmatprep.subr.bf16.mxu0 0
    %630 = vmatpush2.bf16.msra.mxu0 0
    %631 = vmatprep.subr.bf16.mxu0 0
    %632 = vmatpush2.bf16.msra.mxu0 0
    %633 = vmatprep.subr.bf16.mxu0 0
    %634 = vmatpush2.bf16.msra.mxu0 0
    %635 = vmatprep.subr.bf16.mxu0 0
    %636 = vmatpush2.bf16.msra.mxu0 0
    %637 = vmatprep.subr.bf16.mxu0 0
    %638 = vmatpush2.bf16.msra.mxu0 0
    %639 = vmatprep.subr.bf16.mxu0 0
    %640 = vmatpush2.bf16.msra.mxu0 0
    %641 = vmatprep.subr.bf16.mxu0 0
    %642 = vmatpush2.bf16.msra.mxu0 0
    %643 = vmatprep.subr.bf16.mxu0 0
    %644 = vmatpush2.bf16.msra.mxu0 0
    %645 = vmatprep.mubr.bf16.mxu0 0
    %646 = vmatmul.mubr.bf16.gmra.mxu0 %v611
    %v647 = vpop.f32.mrf.mxu0
    %v648 = vadd.f32 0.0, %v647
    %v649 = vpop.f32.mrf.mxu0
    %v650 = vpop.f32.mrf.mxu0
    %v651 = vpop.f32.mrf.mxu0
    %652 = vdwg.mxu0
    %v653 = vadd.f32 %v591, %v648
    %v654 = vxor.u32 %v653, 2147483648
    %v655 = vmul.f32 %v654, 1.442695
    %v656 = vpow.pop %v655
    %v657 = vadd.f32 %v656, 1.0
    %v658 = vrcp.pop %v657
    %v659 = vmul.f32 1.0, %v658
    %v660 = vtanh.pop %v653
    %v661 = vmul.f32 %v659, %v562
    %663 = vrot.lane.b32.xlu0 %v660, 64
    %v664 = vpop.permute.xlu0 %663
    %v666 = vmul.f32 %v659, %v664
    %668 = vrot.lane.b32.xlu0 %v666, 32
    %v669 = vpop.permute.xlu0 %668
    %v671 = vadd.f32 %v661, %v669
    %v672 = vtanh.pop %v671
    %674 = vrot.lane.b32.xlu0 %v672, 64
    %v675 = vpop.permute.xlu0 %674
    %v677 = vmul.f32 %v659, %v675
    %v678 = vpack.c.bf16 %v677, %v677
    %v681 = vunpack.c.l.s4 1966171168
    %v682 = vunpack.c.0.s8 %v681
    %v683 = vlaneseq
    %v684 = vshrl.u32 %v683, 7
    %v685 = vsub.s32 %v682, %v684
    %v686 = vrot.slane %v678, %v685
    %v688 = vunpack.c.l.s4 1966171168
    %v689 = vunpack.c.0.s8 %v688
    %v690 = vlaneseq
    %v691 = vshrl.u32 %v690, 7
    %v692 = vsub.s32 %v689, %v691
    %v693 = vrot.slane %v686, %v692
    %694 = vrot.lane.b32.xlu0 %v693, 32
    %v695 = vpop.permute.xlu0 %694
    %s697 = scalar_lea.vmem [#allocation11], 4
    %698 = vst.msk [vmem:[%s697] sm:$0x1] %vm261, %v695
    %v699 = vld [vmem:[#allocation4 + $0xa] sm:$0x3]
    %v700 = vadd.f32 %v699, %v149
    %v701 = vld [vmem:[#allocation10] sm:$0xf]
    %v702 = vld [vmem:[#allocation10 + $0x4] sm:$0xf]
    %v703 = vld [vmem:[#allocation10 + $0x8] sm:$0xf]
    %v704 = vld [vmem:[#allocation10 + $0xc] sm:$0xf]
    %705 = vrot.lane.b32.xlu0 %v678, 32
    %v706 = vpop.permute.xlu0 %705
    %v711 = vunpack.c.l.b16 %v701
    %v712 = vunpack.c.l.b16 %v702
    %v713 = vunpack.c.l.b16 %v703
    %v714 = vunpack.c.l.b16 %v704
    %v715 = vpack.c.b16 %v712, %v711
    %v716 = vpack.c.b16 %v714, %v713
    %v720 = vsel %vm169, %v706, 0
    %722 = vmatprep.subr.bf16.mxu0 0
    %723 = vmatpush1.bf16.msra.mxu0 0
    %724 = vmatprep.subr.bf16.mxu0 0
    %725 = vmatpush1.bf16.msra.mxu0 0
    %726 = vmatprep.subr.bf16.mxu0 0
    %727 = vmatpush1.bf16.msra.mxu0 0
    %728 = vmatprep.subr.bf16.mxu0 0
    %729 = vmatpush1.bf16.msra.mxu0 0
    %730 = vmatprep.subr.bf16.mxu0 0
    %731 = vmatpush1.bf16.msra.mxu0 0
    %732 = vmatprep.subr.bf16.mxu0 0
    %733 = vmatpush1.bf16.msra.mxu0 0
    %734 = vmatprep.subr.bf16.mxu0 0
    %735 = vmatpush1.bf16.msra.mxu0 %v716
    %736 = vmatprep.subr.bf16.mxu0 0
    %737 = vmatpush1.bf16.msra.mxu0 %v715
    %738 = vmatprep.subr.bf16.mxu0 0
    %739 = vmatpush2.bf16.msra.mxu0 0
    %740 = vmatprep.subr.bf16.mxu0 0
    %741 = vmatpush2.bf16.msra.mxu0 0
    %742 = vmatprep.subr.bf16.mxu0 0
    %743 = vmatpush2.bf16.msra.mxu0 0
    %744 = vmatprep.subr.bf16.mxu0 0
    %745 = vmatpush2.bf16.msra.mxu0 0
    %746 = vmatprep.subr.bf16.mxu0 0
    %747 = vmatpush2.bf16.msra.mxu0 0
    %748 = vmatprep.subr.bf16.mxu0 0
    %749 = vmatpush2.bf16.msra.mxu0 0
    %750 = vmatprep.subr.bf16.mxu0 0
    %751 = vmatpush2.bf16.msra.mxu0 0
    %752 = vmatprep.subr.bf16.mxu0 0
    %753 = vmatpush2.bf16.msra.mxu0 0
    %754 = vmatprep.mubr.bf16.mxu0 0
    %755 = vmatmul.mubr.bf16.gmra.mxu0 %v720
    %v756 = vpop.f32.mrf.mxu0
    %v757 = vadd.f32 0.0, %v756
    %v758 = vpop.f32.mrf.mxu0
    %v759 = vpop.f32.mrf.mxu0
    %v760 = vpop.f32.mrf.mxu0
    %761 = vdwg.mxu0
    %v762 = vadd.f32 %v700, %v757
    %v763 = vxor.u32 %v762, 2147483648
    %v764 = vmul.f32 %v763, 1.442695
    %v765 = vpow.pop %v764
    %v766 = vadd.f32 %v765, 1.0
    %v767 = vrcp.pop %v766
    %v768 = vmul.f32 1.0, %v767
    %v769 = vtanh.pop %v762
    %v770 = vmul.f32 %v768, %v671
    %772 = vrot.lane.b32.xlu0 %v769, 64
    %v773 = vpop.permute.xlu0 %772
    %v775 = vmul.f32 %v768, %v773
    %777 = vrot.lane.b32.xlu0 %v775, 32
    %v778 = vpop.permute.xlu0 %777
    %v780 = vadd.f32 %v770, %v778
    %v781 = vtanh.pop %v780
    %783 = vrot.lane.b32.xlu0 %v781, 64
    %v784 = vpop.permute.xlu0 %783
    %v786 = vmul.f32 %v768, %v784
    %v787 = vpack.c.bf16 %v786, %v786
    %v790 = vunpack.c.l.s4 1966171168
    %v791 = vunpack.c.0.s8 %v790
    %v792 = vlaneseq
    %v793 = vshrl.u32 %v792, 7
    %v794 = vsub.s32 %v791, %v793
    %v795 = vrot.slane %v787, %v794
    %v797 = vunpack.c.l.s4 1966171168
    %v798 = vunpack.c.0.s8 %v797
    %v799 = vlaneseq
    %v800 = vshrl.u32 %v799, 7
    %v801 = vsub.s32 %v798, %v800
    %v802 = vrot.slane %v795, %v801
    %803 = vrot.lane.b32.xlu0 %v802, 32
    %v804 = vpop.permute.xlu0 %803
    %s806 = scalar_lea.vmem [#allocation11], 5
    %807 = vst.msk [vmem:[%s806] sm:$0x1] %vm261, %v804
    %v808 = vld [vmem:[#allocation4 + $0xc] sm:$0x3]
    %v809 = vadd.f32 %v808, %v149
    %v810 = vld [vmem:[#allocation10] sm:$0xf]
    %v811 = vld [vmem:[#allocation10 + $0x4] sm:$0xf]
    %v812 = vld [vmem:[#allocation10 + $0x8] sm:$0xf]
    %v813 = vld [vmem:[#allocation10 + $0xc] sm:$0xf]
    %814 = vrot.lane.b32.xlu0 %v787, 32
    %v815 = vpop.permute.xlu0 %814
    %v820 = vunpack.c.l.b16 %v810
    %v821 = vunpack.c.l.b16 %v811
    %v822 = vunpack.c.l.b16 %v812
    %v823 = vunpack.c.l.b16 %v813
    %v824 = vpack.c.b16 %v821, %v820
    %v825 = vpack.c.b16 %v823, %v822
    %v829 = vsel %vm169, %v815, 0
    %831 = vmatprep.subr.bf16.mxu0 0
    %832 = vmatpush1.bf16.msra.mxu0 0
    %833 = vmatprep.subr.bf16.mxu0 0
    %834 = vmatpush1.bf16.msra.mxu0 0
    %835 = vmatprep.subr.bf16.mxu0 0
    %836 = vmatpush1.bf16.msra.mxu0 0
    %837 = vmatprep.subr.bf16.mxu0 0
    %838 = vmatpush1.bf16.msra.mxu0 0
    %839 = vmatprep.subr.bf16.mxu0 0
    %840 = vmatpush1.bf16.msra.mxu0 0
    %841 = vmatprep.subr.bf16.mxu0 0
    %842 = vmatpush1.bf16.msra.mxu0 0
    %843 = vmatprep.subr.bf16.mxu0 0
    %844 = vmatpush1.bf16.msra.mxu0 %v825
    %845 = vmatprep.subr.bf16.mxu0 0
    %846 = vmatpush1.bf16.msra.mxu0 %v824
    %847 = vmatprep.subr.bf16.mxu0 0
    %848 = vmatpush2.bf16.msra.mxu0 0
    %849 = vmatprep.subr.bf16.mxu0 0
    %850 = vmatpush2.bf16.msra.mxu0 0
    %851 = vmatprep.subr.bf16.mxu0 0
    %852 = vmatpush2.bf16.msra.mxu0 0
    %853 = vmatprep.subr.bf16.mxu0 0
    %854 = vmatpush2.bf16.msra.mxu0 0
    %855 = vmatprep.subr.bf16.mxu0 0
    %856 = vmatpush2.bf16.msra.mxu0 0
    %857 = vmatprep.subr.bf16.mxu0 0
    %858 = vmatpush2.bf16.msra.mxu0 0
    %859 = vmatprep.subr.bf16.mxu0 0
    %860 = vmatpush2.bf16.msra.mxu0 0
    %861 = vmatprep.subr.bf16.mxu0 0
    %862 = vmatpush2.bf16.msra.mxu0 0
    %863 = vmatprep.mubr.bf16.mxu0 0
    %864 = vmatmul.mubr.bf16.gmra.mxu0 %v829
    %v865 = vpop.f32.mrf.mxu0
    %v866 = vadd.f32 0.0, %v865
    %v867 = vpop.f32.mrf.mxu0
    %v868 = vpop.f32.mrf.mxu0
    %v869 = vpop.f32.mrf.mxu0
    %870 = vdwg.mxu0
    %v871 = vadd.f32 %v809, %v866
    %v872 = vxor.u32 %v871, 2147483648
    %v873 = vmul.f32 %v872, 1.442695
    %v874 = vpow.pop %v873
    %v875 = vadd.f32 %v874, 1.0
    %v876 = vrcp.pop %v875
    %v877 = vmul.f32 1.0, %v876
    %v878 = vtanh.pop %v871
    %v879 = vmul.f32 %v877, %v780
    %881 = vrot.lane.b32.xlu0 %v878, 64
    %v882 = vpop.permute.xlu0 %881
    %v884 = vmul.f32 %v877, %v882
    %886 = vrot.lane.b32.xlu0 %v884, 32
    %v887 = vpop.permute.xlu0 %886
    %v889 = vadd.f32 %v879, %v887
    %v890 = vtanh.pop %v889
    %892 = vrot.lane.b32.xlu0 %v890, 64
    %v893 = vpop.permute.xlu0 %892
    %v895 = vmul.f32 %v877, %v893
    %v896 = vpack.c.bf16 %v895, %v895
    %v899 = vunpack.c.l.s4 1966171168
    %v900 = vunpack.c.0.s8 %v899
    %v901 = vlaneseq
    %v902 = vshrl.u32 %v901, 7
    %v903 = vsub.s32 %v900, %v902
    %v904 = vrot.slane %v896, %v903
    %v906 = vunpack.c.l.s4 1966171168
    %v907 = vunpack.c.0.s8 %v906
    %v908 = vlaneseq
    %v909 = vshrl.u32 %v908, 7
    %v910 = vsub.s32 %v907, %v909
    %v911 = vrot.slane %v904, %v910
    %912 = vrot.lane.b32.xlu0 %v911, 32
    %v913 = vpop.permute.xlu0 %912
    %s915 = scalar_lea.vmem [#allocation11], 6
    %916 = vst.msk [vmem:[%s915] sm:$0x1] %vm261, %v913
    %v917 = vld [vmem:[#allocation4 + $0xe] sm:$0x3]
    %v918 = vadd.f32 %v917, %v149
    %v919 = vld [vmem:[#allocation10] sm:$0xf]
    %v920 = vld [vmem:[#allocation10 + $0x4] sm:$0xf]
    %v921 = vld [vmem:[#allocation10 + $0x8] sm:$0xf]
    %v922 = vld [vmem:[#allocation10 + $0xc] sm:$0xf]
    %923 = vrot.lane.b32.xlu0 %v896, 32
    %v924 = vpop.permute.xlu0 %923
    %v929 = vunpack.c.l.b16 %v919
    %v930 = vunpack.c.l.b16 %v920
    %v931 = vunpack.c.l.b16 %v921
    %v932 = vunpack.c.l.b16 %v922
    %v933 = vpack.c.b16 %v930, %v929
    %v934 = vpack.c.b16 %v932, %v931
    %v938 = vsel %vm169, %v924, 0
    %940 = vmatprep.subr.bf16.mxu0 0
    %941 = vmatpush1.bf16.msra.mxu0 0
    %942 = vmatprep.subr.bf16.mxu0 0
    %943 = vmatpush1.bf16.msra.mxu0 0
    %944 = vmatprep.subr.bf16.mxu0 0
    %945 = vmatpush1.bf16.msra.mxu0 0
    %946 = vmatprep.subr.bf16.mxu0 0
    %947 = vmatpush1.bf16.msra.mxu0 0
    %948 = vmatprep.subr.bf16.mxu0 0
    %949 = vmatpush1.bf16.msra.mxu0 0
    %950 = vmatprep.subr.bf16.mxu0 0
    %951 = vmatpush1.bf16.msra.mxu0 0
    %952 = vmatprep.subr.bf16.mxu0 0
    %953 = vmatpush1.bf16.msra.mxu0 %v934
    %954 = vmatprep.subr.bf16.mxu0 0
    %955 = vmatpush1.bf16.msra.mxu0 %v933
    %956 = vmatprep.subr.bf16.mxu0 0
    %957 = vmatpush2.bf16.msra.mxu0 0
    %958 = vmatprep.subr.bf16.mxu0 0
    %959 = vmatpush2.bf16.msra.mxu0 0
    %960 = vmatprep.subr.bf16.mxu0 0
    %961 = vmatpush2.bf16.msra.mxu0 0
    %962 = vmatprep.subr.bf16.mxu0 0
    %963 = vmatpush2.bf16.msra.mxu0 0
    %964 = vmatprep.subr.bf16.mxu0 0
    %965 = vmatpush2.bf16.msra.mxu0 0
    %966 = vmatprep.subr.bf16.mxu0 0
    %967 = vmatpush2.bf16.msra.mxu0 0
    %968 = vmatprep.subr.bf16.mxu0 0
    %969 = vmatpush2.bf16.msra.mxu0 0
    %970 = vmatprep.subr.bf16.mxu0 0
    %971 = vmatpush2.bf16.msra.mxu0 0
    %972 = vmatprep.mubr.bf16.mxu0 0
    %973 = vmatmul.mubr.bf16.gmra.mxu0 %v938
    %v974 = vpop.f32.mrf.mxu0
    %v975 = vadd.f32 0.0, %v974
    %v976 = vpop.f32.mrf.mxu0
    %v977 = vpop.f32.mrf.mxu0
    %v978 = vpop.f32.mrf.mxu0
    %979 = vdwg.mxu0
    %v980 = vadd.f32 %v918, %v975
    %v981 = vxor.u32 %v980, 2147483648
    %v982 = vmul.f32 %v981, 1.442695
    %v983 = vpow.pop %v982
    %v984 = vadd.f32 %v983, 1.0
    %v985 = vrcp.pop %v984
    %v986 = vmul.f32 1.0, %v985
    %v987 = vtanh.pop %v980
    %v988 = vmul.f32 %v986, %v889
    %990 = vrot.lane.b32.xlu0 %v987, 64
    %v991 = vpop.permute.xlu0 %990
    %v993 = vmul.f32 %v986, %v991
    %995 = vrot.lane.b32.xlu0 %v993, 32
    %v996 = vpop.permute.xlu0 %995
    %v998 = vadd.f32 %v988, %v996
    %v999 = vtanh.pop %v998
    %1001 = vrot.lane.b32.xlu0 %v999, 64
    %v1002 = vpop.permute.xlu0 %1001
    %v1004 = vmul.f32 %v986, %v1002
    %v1005 = vpack.c.bf16 %v1004, %v1004
    %v1008 = vunpack.c.l.s4 1966171168
    %v1009 = vunpack.c.0.s8 %v1008
    %v1010 = vlaneseq
    %v1011 = vshrl.u32 %v1010, 7
    %v1012 = vsub.s32 %v1009, %v1011
    %v1013 = vrot.slane %v1005, %v1012
    %v1015 = vunpack.c.l.s4 1966171168
    %v1016 = vunpack.c.0.s8 %v1015
    %v1017 = vlaneseq
    %v1018 = vshrl.u32 %v1017, 7
    %v1019 = vsub.s32 %v1016, %v1018
    %v1020 = vrot.slane %v1013, %v1019
    %1021 = vrot.lane.b32.xlu0 %v1020, 32
    %v1022 = vpop.permute.xlu0 %1021
    %s1024 = scalar_lea.vmem [#allocation11], 7
    %1025 = vst.msk [vmem:[%s1024] sm:$0x1] %vm261, %v1022
    %1027 = vrot.lane.b32.xlu0 %v1004, 32
    %v1028 = vpop.permute.xlu0 %1027
    %vm1030 = vcmask 254976
    %1031 = vst.msk [vmem:[#allocation2] sm:$0x3] %vm1030, %v1028
    %1033 = vrot.lane.b32.xlu0 %v998, 96
    %v1034 = vpop.permute.xlu0 %1033
    %1036 = vst.msk [vmem:[#allocation3] sm:$0x3] %vm1030, %v1034
    // Predicated region
    $region42: #{tpu_custom_call.1} parent=1 // pred_check
      %p1037 = pneg %p70
    $region43: #{tpu_custom_call.1} parent=1 // pred_check_branch
      %1039 = sbr.rel (%p1037) target = $region45
    $region44: #{tpu_custom_call.1} parent=1 // pred_region
      %1040 = vst.msk [vmem:[#allocation12] sm:$0x3] %vm1030, %v1028
      %1041 = vst.msk [vmem:[#allocation14] sm:$0x3] %vm1030, %v1034
    $region45: #{tpu_custom_call.1} parent=1 // pred_fallthru
      _
    // Predicated region
    $region46: #{tpu_custom_call.1} parent=1 // pred_check
      _
    $region47: #{tpu_custom_call.1} parent=1 // pred_check_branch
      %1043 = sbr.rel (0) target = $region49
    $region48: #{tpu_custom_call.1} parent=1 // pred_region
      %s1045 = ssub.s32 128, 128
      %1046 = vsyncadd [#allocation7], %s1045
      %s1047 = sshll.u32 [#allocation11], 4
      %s1048 = int_to_ptr.vmem [resolvable:$true] %s1047
      %1053 = dma.vmem_to_hbm [thread:$0]  %s1048, 128, %s6, [#allocation7], 16, 16, 1
    $region49: #{tpu_custom_call.1} parent=1 // pred_fallthru
      _
    // Predicated region
    $region50: #{tpu_custom_call.1} parent=1 // pred_check
      _
    $region51: #{tpu_custom_call.1} parent=1 // pred_check_branch
      %1055 = sbr.rel (0) target = $region53
    $region52: #{tpu_custom_call.1} parent=1 // pred_region
      %s1057 = ssub.s32 32, 32
      %1058 = vsyncadd [#allocation13], %s1057
      %s1060 = sshll.u32 [#allocation12], 4
      %s1061 = int_to_ptr.vmem [resolvable:$true] %s1060
      %1063 = dma.vmem_to_hbm [thread:$0]  %s1061, 32, %s7, [#allocation13]
    $region53: #{tpu_custom_call.1} parent=1 // pred_fallthru
      _
    // Predicated region
    $region54: #{tpu_custom_call.1} parent=1 // pred_check
      _
    $region55: #{tpu_custom_call.1} parent=1 // pred_check_branch
      %1065 = sbr.rel (0) target = $region57
    $region56: #{tpu_custom_call.1} parent=1 // pred_region
      %s1067 = ssub.s32 32, 32
      %1068 = vsyncadd [#allocation13], %s1067
      %s1070 = sshll.u32 [#allocation14], 4
      %s1071 = int_to_ptr.vmem [resolvable:$true] %s1070
      %1073 = dma.vmem_to_hbm [thread:$0]  %s1071, 32, %s8, [#allocation13]
    $region57: #{tpu_custom_call.1} parent=1 // pred_fallthru
      _
    // Predicated region
    $region58: #{tpu_custom_call.1} parent=1 // pred_check
      _
    $region59: #{tpu_custom_call.1} parent=1 // pred_check_branch
      %1075 = sbr.rel (0) target = $region61
    $region60: #{tpu_custom_call.1} parent=1 // pred_region
      %1076 = dma.done [#allocation7], 128
    $region61: #{tpu_custom_call.1} parent=1 // pred_fallthru
      _
    // Predicated region
    $region62: #{tpu_custom_call.1} parent=1 // pred_check
      _
    $region63: #{tpu_custom_call.1} parent=1 // pred_check_branch
      %1078 = sbr.rel (0) target = $region65
    $region64: #{tpu_custom_call.1} parent=1 // pred_region
      %1079 = dma.done [#allocation13], 32
    $region65: #{tpu_custom_call.1} parent=1 // pred_fallthru
      _
    // Predicated region
    $region66: #{tpu_custom_call.1} parent=1 // pred_check
      _
    $region67: #{tpu_custom_call.1} parent=1 // pred_check_branch
      %1081 = sbr.rel (0) target = $region69
    $region68: #{tpu_custom_call.1} parent=1 // pred_region
      %1082 = dma.done [#allocation13], 32
    $region69: #{tpu_custom_call.1} parent=1 // pred_fallthru
      _
    %1083 = vsyncpa [#allocation6], 1
    %1084 = vsyncpa [#allocation9], 1
    %1085 = vsyncpa [#allocation7], 1
    %1086 = vsyncpa [#allocation13], 1

</llo_original>
